<compile_context>
chip_gen: v6e
topology: v6e:2x2x1
jax: 0.10.0
libtpu: 0.0.40
codegen_flags: <defaults>
</compile_context>

<pallas_src>
import jax
import jax.numpy as jnp
from jax.experimental import pallas as pl

F32 = jnp.float32

# ---------------- hyper-params (small, consistent with the module) ----------
MEO_COLS = 4            # len(meo_col)
ST_FEAT = 2 * 9         # len(st_col) * 9 = 18
VIEW_NUM = 2
PREV_SLOT = 2
NUM_STATION = 4
BATCH = 2
SEQ = 8
N_NODES = 12
N_PAD = 16              # nodes padded to a sublane-aligned count
HID = 32                # hidden_lstm = hidden_linear = hidden_gru = hidden_gnn
ATT_HID = 16
OUT_SIZE = 1
FIN = ST_FEAT + MEO_COLS            # GAT input features = 22
SB = NUM_STATION * BATCH            # 8 rows; also the padded unlabeled-LSTM batch
BNP = BATCH * N_PAD                 # 32


# ============================ slab layouts ===================================
def _pad8(n):
    return (n + 7) // 8 * 8


def _make_layout(entries):
    lay, off = {}, 0
    for name, r, c in entries:
        lay[name] = (off, r, c)
        off += _pad8(r)
    return lay, off


PAR_W = 128
PAR_LAYOUT, PAR_ROWS = _make_layout([
    ("gat_W", FIN, HID),
    ("gat_a", 2 * HID, 1),
    ("cat_w", VIEW_NUM * HID, HID),
    ("cat_b", 1, HID),
    ("un_lin1_w", ST_FEAT, HID),
    ("un_lin1_b", 1, HID),
    ("un_lin2_w", 2 * HID, 2 * HID),
    ("un_lin2_b", 1, 2 * HID),
    ("lab_lin1_w", ST_FEAT + 1, HID),
    ("lab_lin1_b", 1, HID),
    ("lab_lin2_w", 3 * HID, 2 * HID),
    ("lab_lin2_b", 1, 2 * HID),
    ("att_w1", 4 * HID, ATT_HID),
    ("att_b1", 1, ATT_HID),
    ("att_w2", ATT_HID, 1),
    ("att_b2", 1, 1),
    ("gru_w_us", 4 * HID, 3 * HID),     # GRU W_ih rows for [unlabel | sp_approx]
    ("gru_w_t", HID, 3 * HID),          # GRU W_ih rows for temp_approximate
    ("gru_b", 1, 3 * HID),              # b_ih + [b_hh_r, b_hh_z, 0]  (hx == 0)
    ("gru_bhh_n", 1, HID),              # b_hh_n (multiplied by r)
    ("liner_t_w", HID, HID),
    ("liner_t_b", 1, HID),
    ("out_w", HID, OUT_SIZE),
    ("out_b", 1, OUT_SIZE),
])

LSTM_W = 8 * HID                        # fused-gate width (256)
LSTM_LAYOUT, LSTM_ROWS = _make_layout([
    ("wih", 2 * MEO_COLS + 1, 8 * HID),     # [un input cols | lab input cols]
    ("whh", 2 * HID, 8 * HID),              # block-diag [h_un | h_lab]
    ("b", 1, 8 * HID),
])

DATA_W = 32
DATA_LAYOUT, DATA_ROWS = _make_layout([
    ("x", SEQ * SB, 2 * MEO_COLS + 1),      # fused LSTM input, rows t*8 + r
    ("feat_un", BATCH, ST_FEAT),
    ("feat_lab", SB, ST_FEAT + 1),
    ("dis", SB, 1),
    ("h0", BATCH, HID),
    ("node_feat", BNP, FIN),
    ("adj", VIEW_NUM * BNP, BNP),           # per-view block-diagonal adjacency
    ("gid_sel", SB, BNP),                   # one-hot labelled-node gather
    ("tile_sb", SB, BATCH),                 # row s*B+b -> batch b
    ("tile_sbT", BATCH, SB),
    ("sta_oh", SB, NUM_STATION),            # row s*B+b -> station s
])


def _pack(layout, rows, width, arrays):
    slab = jnp.zeros((rows, width), F32)
    for name, arr in arrays.items():
        off, r, c = layout[name]
        slab = slab.at[off:off + r, 0:c].set(jnp.asarray(arr, F32))
    return slab


# ============================ fused Pallas kernel ============================
def _mvgfrnn_kernel(data_ref, par_ref, lstm_ref, out_ref):
    H, B, T = HID, BATCH, SEQ

    def mm(a, b):
        return jnp.dot(a, b, preferred_element_type=jnp.float32)

    def D(name):
        o, r, c = DATA_LAYOUT[name]
        return data_ref[o:o + r, 0:c]

    def P(name):
        o, r, c = PAR_LAYOUT[name]
        return par_ref[o:o + r, 0:c]

    def L(name):
        o, r, c = LSTM_LAYOUT[name]
        return lstm_ref[o:o + r, 0:c]

    def relu(x):
        return jnp.maximum(x, 0.0)

    # ---------- GAT: all (batch, view) pairs batched ----------
    gat_a = P("gat_a")                               # (2H, 1)
    Wh = mm(D("node_feat"), P("gat_W"))              # (B*NP, H)
    src = mm(Wh, gat_a[0:H, :])                      # (B*NP, 1)
    dst = mm(Wh, gat_a[H:2 * H, :])                  # (B*NP, 1)
    e = src + dst.T                                  # (B*NP, B*NP) outer sum
    e = jnp.where(e > 0, e, 0.2 * e)                 # LeakyReLU(0.2)
    e2 = jnp.concatenate([e, e], axis=0)             # (V*B*NP, B*NP) views stacked
    ev = jnp.where(D("adj") > 0, e2, -9.0e15)        # block-diag adj -> per-batch mask
    ev = ev - jnp.max(ev, axis=1, keepdims=True)
    pexp = jnp.exp(ev)
    attn = pexp / jnp.sum(pexp, axis=1, keepdims=True)
    hp = mm(attn, Wh)                                # (V*B*NP, H)
    hv = jnp.where(hp > 0, hp, jnp.exp(jnp.minimum(hp, 0.0)) - 1.0)      # ELU
    fmax = jnp.float32(3.4028235e38)                 # torch.nan_to_num semantics
    hv = jnp.where(jnp.isnan(hv), 0.0, hv)
    hv = jnp.minimum(jnp.maximum(hv, -fmax), fmax)
    cat_w = P("cat_w")                               # (V*H, H)
    stfgn = (mm(hv[0:BNP, :], cat_w[0:H, :])
             + mm(hv[BNP:2 * BNP, :], cat_w[H:2 * H, :]) + P("cat_b"))   # (B*NP, H)
    label_stfgn = mm(D("gid_sel"), stfgn)            # (S*B, H), rows s*B+b

    # ---------- fused LSTMs (unlabeled + labeled) as one block-diag recurrence ----------
    gi = mm(D("x"), L("wih")) + L("b")               # (T*8, 8H): input matmuls hoisted
    whh = L("whh")                                   # (2H, 8H) block-diagonal
    h = jnp.zeros((SB, 2 * H), F32)
    c = jnp.zeros((SB, 2 * H), F32)
    for t in range(T):                               # static unroll, T = 8
        g = gi[t * SB:(t + 1) * SB, :] + mm(h, whh)
        sg = jax.nn.sigmoid(g[:, 0:6 * H])           # [i_un i_lab | f_un f_lab | o_un o_lab]
        gg = jnp.tanh(g[:, 6 * H:8 * H])             # [g_un g_lab]
        c = sg[:, 2 * H:4 * H] * c + sg[:, 0:2 * H] * gg
        h = sg[:, 4 * H:6 * H] * jnp.tanh(c)
    un_time_h = h[0:B, 0:H]                          # (B, H); padded rows discarded
    lab_time_h = h[:, H:2 * H]                       # (S*B, H)

    # ---------- unlabeled / labeled feature branches ----------
    un_fea = relu(mm(D("feat_un"), P("un_lin1_w")) + P("un_lin1_b"))          # (B, H)
    unlabel_data = relu(mm(jnp.concatenate([un_time_h, un_fea], axis=1),
                           P("un_lin2_w")) + P("un_lin2_b"))                  # (B, 2H)

    lab_fea = relu(mm(D("feat_lab"), P("lab_lin1_w")) + P("lab_lin1_b"))      # (S*B, H)
    label_data = relu(
        mm(jnp.concatenate([lab_time_h, lab_fea, label_stfgn], axis=1),
           P("lab_lin2_w")) + P("lab_lin2_b"))                                # (S*B, 2H)

    # ---------- IDW attention + per-batch station softmax (matmul form) ----------
    tile_sb = D("tile_sb")                           # (S*B, B)
    tile_sbT = D("tile_sbT")                         # (B, S*B)
    un_tiled = mm(tile_sb, unlabel_data)             # (S*B, 2H)
    tmp = relu(mm(jnp.concatenate([label_data, un_tiled], axis=1),
                  P("att_w1")) + P("att_b1"))        # (S*B, ATT_HID)
    logit = (mm(tmp, P("att_w2")) + P("att_b2")) * D("dis")                   # (S*B, 1)

    logit_bs = mm(tile_sbT, logit * D("sta_oh"))     # (B, S): exact one-hot gather
    m_b = jnp.max(logit_bs, axis=1, keepdims=True)   # (B, 1) per-batch max
    w = jnp.exp(logit - mm(tile_sb, m_b))            # (S*B, 1)
    denom = mm(tile_sbT, w)                          # (B, 1)
    acc = mm(tile_sbT, w * label_data)               # (B, 2H)
    sp_approx = relu(acc / denom)                    # (B, 2H)

    # ---------- PREV_SLOT recurrence: liner_t -> GRUCell(hx = 0) ----------
    gi_base = (mm(jnp.concatenate([unlabel_data, sp_approx], axis=1),
                  P("gru_w_us")) + P("gru_b"))       # (B, 3H); temp part added per slot
    w_temp = P("gru_w_t")
    bhh_n = P("gru_bhh_n")
    lt_w, lt_b = P("liner_t_w"), P("liner_t_b")
    h_t = D("h0")
    for _ in range(PREV_SLOT):                       # static unroll
        temp = relu(mm(h_t, lt_w) + lt_b)            # liner_t + ReLU
        g = gi_base + mm(temp, w_temp)               # (B, 3H)
        rz = jax.nn.sigmoid(g[:, 0:2 * H])           # r | z (hidden-state terms vanish)
        n = jnp.tanh(g[:, 2 * H:3 * H] + rz[:, 0:H] * bhh_n)
        h_t = (1.0 - rz[:, H:2 * H]) * n

    out_ref[...] = (mm(h_t, P("out_w")) + P("out_b")).astype(out_ref.dtype)


# ============================= parameters ====================================
def init_params(key):
    keys = jax.random.split(key, 40)
    ki = iter(keys)

    def w(shape, scale=0.1):
        return (scale * jax.random.normal(next(ki), shape)).astype(F32)

    return {
        "gat_W": w((FIN, HID)),
        "gat_a": w((2 * HID, 1)),
        "cat_graph_w": w((HID * VIEW_NUM, HID)),
        "cat_graph_b": w((1, HID)),
        "un_lstm_wih": w((MEO_COLS, 4 * HID)),
        "un_lstm_whh": w((HID, 4 * HID)),
        "un_lstm_b": w((1, 4 * HID)),
        "un_lin1_w": w((ST_FEAT, HID)),
        "un_lin1_b": w((1, HID)),
        "un_lin2_w": w((2 * HID, 2 * HID)),
        "un_lin2_b": w((1, 2 * HID)),
        "lab_lstm_wih": w((MEO_COLS + 1, 4 * HID)),
        "lab_lstm_whh": w((HID, 4 * HID)),
        "lab_lstm_b": w((1, 4 * HID)),
        "lab_lin1_w": w((ST_FEAT + 1, HID)),
        "lab_lin1_b": w((1, HID)),
        "lab_lin2_w": w((3 * HID, 2 * HID)),
        "lab_lin2_b": w((1, 2 * HID)),
        "att_w1": w((4 * HID, ATT_HID)),
        "att_b1": w((1, ATT_HID)),
        "att_w2": w((ATT_HID, 1)),
        "att_b2": w((1, 1)),
        # gru_whh is mathematically dead (GRUCell is always called with hx=None,
        # i.e. zero hidden) and is never shipped to the kernel.
        "gru_wih": w((5 * HID, 3 * HID)),
        "gru_whh": w((HID, 3 * HID)),
        "gru_bih": w((1, 3 * HID)),
        "gru_bhh": w((1, 3 * HID)),
        "liner_t_w": w((HID, HID)),
        "liner_t_b": w((1, HID)),
        "out_w": w((HID, OUT_SIZE)),
        "out_b": w((1, OUT_SIZE)),
    }


def _reorder_gates(w4h, part):
    """Map PyTorch-order (i,f,g,o) gate columns of a (*, 4H) matrix into the fused
    column order [i_un i_lab | f_un f_lab | o_un o_lab | g_un g_lab]."""
    H = HID
    i, f, g, o = w4h[:, 0:H], w4h[:, H:2 * H], w4h[:, 2 * H:3 * H], w4h[:, 3 * H:4 * H]
    out = jnp.zeros((w4h.shape[0], 8 * H), F32)
    b = part * H
    out = out.at[:, 0 * 2 * H + b:0 * 2 * H + b + H].set(i)
    out = out.at[:, 1 * 2 * H + b:1 * 2 * H + b + H].set(f)
    out = out.at[:, 2 * 2 * H + b:2 * 2 * H + b + H].set(o)
    out = out.at[:, 3 * 2 * H + b:3 * 2 * H + b + H].set(g)
    return out


def pack_params(p):
    """Repack all module weights into two VMEM slabs (done ONCE, off the call path)."""
    H = HID
    par = {
        "gat_W": p["gat_W"], "gat_a": p["gat_a"],
        "cat_w": p["cat_graph_w"], "cat_b": p["cat_graph_b"],
        "un_lin1_w": p["un_lin1_w"], "un_lin1_b": p["un_lin1_b"],
        "un_lin2_w": p["un_lin2_w"], "un_lin2_b": p["un_lin2_b"],
        "lab_lin1_w": p["lab_lin1_w"], "lab_lin1_b": p["lab_lin1_b"],
        "lab_lin2_w": p["lab_lin2_w"], "lab_lin2_b": p["lab_lin2_b"],
        "att_w1": p["att_w1"], "att_b1": p["att_b1"],
        "att_w2": p["att_w2"], "att_b2": p["att_b2"],
        "gru_w_us": jnp.concatenate([p["gru_wih"][0:2 * H], p["gru_wih"][3 * H:5 * H]],
                                    axis=0),
        "gru_w_t": p["gru_wih"][2 * H:3 * H],
        "gru_b": p["gru_bih"] + jnp.concatenate(
            [p["gru_bhh"][:, 0:2 * H], jnp.zeros((1, H), F32)], axis=1),
        "gru_bhh_n": p["gru_bhh"][:, 2 * H:3 * H],
        "liner_t_w": p["liner_t_w"], "liner_t_b": p["liner_t_b"],
        "out_w": p["out_w"], "out_b": p["out_b"],
    }
    par_slab = _pack(PAR_LAYOUT, PAR_ROWS, PAR_W, par)
    lstm = {
        "wih": jnp.concatenate([_reorder_gates(p["un_lstm_wih"], 0),
                                _reorder_gates(p["lab_lstm_wih"], 1)], axis=0),
        "whh": jnp.concatenate([_reorder_gates(p["un_lstm_whh"], 0),
                                _reorder_gates(p["lab_lstm_whh"], 1)], axis=0),
        "b": _reorder_gates(p["un_lstm_b"], 0) + _reorder_gates(p["lab_lstm_b"], 1),
    }
    lstm_slab = _pack(LSTM_LAYOUT, LSTM_ROWS, LSTM_W, lstm)
    return par_slab, lstm_slab


# ============================ forward wrapper ================================
def mvgfrnn_forward(par_slab, lstm_slab, inputs):
    (meo_unlabel, feature_unlabel, ovi_label, meo_label, feature_label,
     dis_label, h_t, node_feat, multi_view_adj, gid_idx) = inputs

    # ---- pure layout packing of per-call data into ONE slab (no compute) ----
    un_t = jnp.zeros((SEQ, SB, MEO_COLS), F32).at[:, :BATCH, :].set(
        jnp.transpose(meo_unlabel, (1, 0, 2)))
    lab_t = jnp.concatenate([ovi_label[..., None], meo_label], axis=3)   # (B,S,T,meo+1)
    lab_flat = jnp.transpose(lab_t, (2, 1, 0, 3)).reshape(SEQ * SB, MEO_COLS + 1)
    x_comb = jnp.concatenate([un_t.reshape(SEQ * SB, MEO_COLS), lab_flat], axis=1)

    feat_lab = jnp.transpose(feature_label, (1, 0, 2)).reshape(SB, ST_FEAT + 1)
    dis = jnp.transpose(dis_label, (1, 0)).reshape(SB, 1)                # row s*B+b

    nf = jnp.zeros((BATCH, N_PAD, FIN), F32).at[:, :N_NODES, :].set(node_feat)
    adj_pad = jnp.zeros((BATCH, VIEW_NUM, N_PAD, N_PAD), F32).at[
        :, :, :N_NODES, :N_NODES].set(multi_view_adj)
    adj_bd = jnp.zeros((VIEW_NUM, BNP, BNP), F32)
    for b in range(BATCH):
        adj_bd = adj_bd.at[:, b * N_PAD:(b + 1) * N_PAD,
                           b * N_PAD:(b + 1) * N_PAD].set(adj_pad[b])

    bb = jnp.tile(jnp.arange(BATCH), NUM_STATION)          # row s*B+b -> b
    ss = jnp.repeat(jnp.arange(NUM_STATION), BATCH)        # row s*B+b -> s
    cols = bb * N_PAD + gid_idx[bb, ss]
    gid_sel = (jnp.arange(BNP)[None, :] == cols[:, None]).astype(F32)
    tile_sb = (jnp.arange(BATCH)[None, :] == bb[:, None]).astype(F32)
    sta_oh = (jnp.arange(NUM_STATION)[None, :] == ss[:, None]).astype(F32)

    data = {
        "x": x_comb, "feat_un": feature_unlabel, "feat_lab": feat_lab,
        "dis": dis, "h0": h_t, "node_feat": nf.reshape(BNP, FIN),
        "adj": adj_bd.reshape(VIEW_NUM * BNP, BNP), "gid_sel": gid_sel,
        "tile_sb": tile_sb, "tile_sbT": tile_sb.T, "sta_oh": sta_oh,
    }
    data_slab = _pack(DATA_LAYOUT, DATA_ROWS, DATA_W, data)

    return pl.pallas_call(
        _mvgfrnn_kernel,
        out_shape=jax.ShapeDtypeStruct((BATCH, OUT_SIZE), F32),
    )(data_slab, par_slab, lstm_slab)


# ================================ main =======================================
if __name__ == "__main__":
    key = jax.random.PRNGKey(0)
    kp, kd = jax.random.split(key)
    params = init_params(kp)
    par_slab, lstm_slab = pack_params(params)      # once, outside the per-call path

    ks = jax.random.split(kd, 10)
    meo_unlabel = jax.random.normal(ks[0], (BATCH, SEQ, MEO_COLS), F32)
    feature_unlabel = jax.random.normal(ks[1], (BATCH, ST_FEAT), F32)
    ovi_label = jax.random.normal(ks[2], (BATCH, NUM_STATION, SEQ), F32)
    meo_label = jax.random.normal(ks[3], (BATCH, NUM_STATION, SEQ, MEO_COLS), F32)
    feature_label = jax.random.normal(ks[4], (BATCH, NUM_STATION, ST_FEAT + 1), F32)
    dis_label = jax.random.uniform(ks[5], (BATCH, NUM_STATION), F32, 0.1, 1.0)
    h_t = jax.random.normal(ks[6], (BATCH, HID), F32)

    # synthetic graph data (replaces read_fusion_graph's disk reads)
    node_feat = jax.random.normal(ks[7], (BATCH, N_NODES, FIN), F32)
    adj = (jax.random.uniform(ks[8], (BATCH, VIEW_NUM, N_NODES, N_NODES)) > 0.5).astype(F32)
    adj = jnp.maximum(adj, jnp.eye(N_NODES, dtype=F32)[None, None])   # self-loops
    gid_idx = ((jnp.arange(NUM_STATION)[None, :] + jnp.arange(BATCH)[:, None])
               % N_NODES).astype(jnp.int32)                            # labelled-node indices

    inputs = (meo_unlabel, feature_unlabel, ovi_label, meo_label, feature_label,
              dis_label, h_t, node_feat, adj, gid_idx)

    fwd = jax.jit(mvgfrnn_forward)
    out = fwd(par_slab, lstm_slab, inputs)
    out = jax.block_until_ready(out)
    assert out.shape == (BATCH, OUT_SIZE)
    print("KERNEL_OK")
</pallas_src>

<mosaic_0001>
module attributes {stable_mosaic.version = 11 : i64} {
  func.func @_mvgfrnn_kernel(%arg0: memref<224x32xf32, #tpu.memory_space<vmem>>, %arg1: memref<816x128xf32, #tpu.memory_space<vmem>>, %arg2: memref<88x256xf32, #tpu.memory_space<vmem>>, %arg3: memref<2x1xf32, #tpu.memory_space<vmem>>) attributes {dimension_semantics = [], scalar_prefetch = 0 : i64, scratch_operands = 0 : i64, tpu.core_type = #tpu.core_type<tc>} {
    %c24 = arith.constant 24 : index
    %c0 = arith.constant 0 : index
    %0 = vector.load %arg1[%c24, %c0] : memref<816x128xf32, #tpu.memory_space<vmem>>, vector<64x1xf32>
    %c96 = arith.constant 96 : index
    %c0_0 = arith.constant 0 : index
    %1 = vector.load %arg0[%c96, %c0_0] : memref<224x32xf32, #tpu.memory_space<vmem>>, vector<32x22xf32>
    %c0_1 = arith.constant 0 : index
    %c0_2 = arith.constant 0 : index
    %2 = vector.load %arg1[%c0_1, %c0_2] : memref<816x128xf32, #tpu.memory_space<vmem>>, vector<22x32xf32>
    %cst = arith.constant dense<0.000000e+00> : vector<32x32xf32>
    %3 = tpu.matmul %1, %2, %cst {dimension_numbers = #tpu.dot_dimension_numbers<[1], [0], [0], [1], [0, 0, 1, 1], [], []>} : vector<32x22xf32>, vector<22x32xf32>, vector<32x32xf32> -> vector<32x32xf32>
    %4 = vector.extract_strided_slice %0 {offsets = [0, 0], sizes = [32, 1], strides = [1, 1]} : vector<64x1xf32> to vector<32x1xf32>
    %cst_3 = arith.constant dense<0.000000e+00> : vector<32x1xf32>
    %5 = tpu.matmul %3, %4, %cst_3 {dimension_numbers = #tpu.dot_dimension_numbers<[1], [0], [0], [1], [0, 0, 1, 1], [], []>} : vector<32x32xf32>, vector<32x1xf32>, vector<32x1xf32> -> vector<32x1xf32>
    %6 = vector.extract_strided_slice %0 {offsets = [32, 0], sizes = [32, 1], strides = [1, 1]} : vector<64x1xf32> to vector<32x1xf32>
    %cst_4 = arith.constant dense<0.000000e+00> : vector<32x1xf32>
    %7 = tpu.matmul %3, %6, %cst_4 {dimension_numbers = #tpu.dot_dimension_numbers<[1], [0], [0], [1], [0, 0, 1, 1], [], []>} : vector<32x32xf32>, vector<32x1xf32>, vector<32x1xf32> -> vector<32x1xf32>
    %8 = tpu.transpose %7, [1, 0] : vector<32x1xf32> -> vector<1x32xf32>
    %9 = vector.broadcast %5 : vector<32x1xf32> to vector<32x32xf32>
    %10 = vector.broadcast %8 : vector<1x32xf32> to vector<32x32xf32>
    %11 = arith.addf %9, %10 : vector<32x32xf32>
    %cst_5 = arith.constant 0.000000e+00 : f32
    %12 = vector.broadcast %cst_5 : f32 to vector<32x32xf32>
    %13 = arith.cmpf ogt, %11, %12 : vector<32x32xf32>
    %cst_6 = arith.constant 2.000000e-01 : f32
    %14 = vector.broadcast %cst_6 : f32 to vector<32x32xf32>
    %15 = arith.mulf %14, %11 : vector<32x32xf32>
    %16 = arith.select %13, %11, %15 : vector<32x32xi1>, vector<32x32xf32>
    %17 = tpu.concatenate %16, %16 in 0 : vector<32x32xf32>, vector<32x32xf32> -> vector<64x32xf32>
    %c128 = arith.constant 128 : index
    %c0_7 = arith.constant 0 : index
    %18 = vector.load %arg0[%c128, %c0_7] : memref<224x32xf32, #tpu.memory_space<vmem>>, vector<64x32xf32>
    %cst_8 = arith.constant 0.000000e+00 : f32
    %19 = vector.broadcast %cst_8 : f32 to vector<64x32xf32>
    %20 = arith.cmpf ogt, %18, %19 : vector<64x32xf32>
    %cst_9 = arith.constant -9.000000e+15 : f32
    %21 = vector.broadcast %cst_9 : f32 to vector<64x32xf32>
    %22 = arith.select %20, %17, %21 : vector<64x32xi1>, vector<64x32xf32>
    %cst_10 = arith.constant dense<0xFF800000> : vector<64xf32>
    %23 = vector.multi_reduction <maximumf>, %22, %cst_10 [1] : vector<64x32xf32> to vector<64xf32>
    %24 = vector.shape_cast %23 : vector<64xf32> to vector<64x1xf32>
    %25 = vector.broadcast %24 : vector<64x1xf32> to vector<64x32xf32>
    %26 = arith.subf %22, %25 : vector<64x32xf32>
    %27 = math.exp %26 : vector<64x32xf32>
    %cst_11 = arith.constant dense<0.000000e+00> : vector<64xf32>
    %28 = vector.multi_reduction <add>, %27, %cst_11 [1] : vector<64x32xf32> to vector<64xf32>
    %29 = vector.shape_cast %28 : vector<64xf32> to vector<64x1xf32>
    %30 = vector.broadcast %29 : vector<64x1xf32> to vector<64x32xf32>
    %31 = arith.divf %27, %30 : vector<64x32xf32>
    %cst_12 = arith.constant dense<0.000000e+00> : vector<64x32xf32>
    %32 = tpu.matmul %31, %3, %cst_12 {dimension_numbers = #tpu.dot_dimension_numbers<[1], [0], [0], [1], [0, 0, 1, 1], [], []>} : vector<64x32xf32>, vector<32x32xf32>, vector<64x32xf32> -> vector<64x32xf32>
    %cst_13 = arith.constant 0.000000e+00 : f32
    %33 = vector.broadcast %cst_13 : f32 to vector<64x32xf32>
    %34 = arith.cmpf ogt, %32, %33 : vector<64x32xf32>
    %cst_14 = arith.constant 0.000000e+00 : f32
    %35 = vector.broadcast %cst_14 : f32 to vector<64x32xf32>
    %36 = arith.minimumf %32, %35 : vector<64x32xf32>
    %37 = math.exp %36 : vector<64x32xf32>
    %cst_15 = arith.constant 1.000000e+00 : f32
    %38 = vector.broadcast %cst_15 : f32 to vector<64x32xf32>
    %39 = arith.subf %37, %38 : vector<64x32xf32>
    %40 = arith.select %34, %32, %39 : vector<64x32xi1>, vector<64x32xf32>
    %41 = arith.cmpf one, %40, %40 : vector<64x32xf32>
    %cst_16 = arith.constant 0.000000e+00 : f32
    %42 = vector.broadcast %cst_16 : f32 to vector<64x32xf32>
    %43 = arith.select %41, %42, %40 : vector<64x32xi1>, vector<64x32xf32>
    %cst_17 = arith.constant 0.000000e+00 : f32
    %cst_18 = arith.constant 3.40282347E+38 : f32
    %44 = arith.subf %cst_17, %cst_18 : f32
    %45 = vector.broadcast %44 : f32 to vector<64x32xf32>
    %46 = arith.maximumf %43, %45 : vector<64x32xf32>
    %cst_19 = arith.constant 3.40282347E+38 : f32
    %47 = vector.broadcast %cst_19 : f32 to vector<64x32xf32>
    %48 = arith.minimumf %46, %47 : vector<64x32xf32>
    %c88 = arith.constant 88 : index
    %c0_20 = arith.constant 0 : index
    %49 = vector.load %arg1[%c88, %c0_20] : memref<816x128xf32, #tpu.memory_space<vmem>>, vector<64x32xf32>
    %50 = vector.extract_strided_slice %48 {offsets = [0, 0], sizes = [32, 32], strides = [1, 1]} : vector<64x32xf32> to vector<32x32xf32>
    %51 = vector.extract_strided_slice %49 {offsets = [0, 0], sizes = [32, 32], strides = [1, 1]} : vector<64x32xf32> to vector<32x32xf32>
    %cst_21 = arith.constant dense<0.000000e+00> : vector<32x32xf32>
    %52 = tpu.matmul %50, %51, %cst_21 {dimension_numbers = #tpu.dot_dimension_numbers<[1], [0], [0], [1], [0, 0, 1, 1], [], []>} : vector<32x32xf32>, vector<32x32xf32>, vector<32x32xf32> -> vector<32x32xf32>
    %53 = vector.extract_strided_slice %48 {offsets = [32, 0], sizes = [32, 32], strides = [1, 1]} : vector<64x32xf32> to vector<32x32xf32>
    %54 = vector.extract_strided_slice %49 {offsets = [32, 0], sizes = [32, 32], strides = [1, 1]} : vector<64x32xf32> to vector<32x32xf32>
    %cst_22 = arith.constant dense<0.000000e+00> : vector<32x32xf32>
    %55 = tpu.matmul %53, %54, %cst_22 {dimension_numbers = #tpu.dot_dimension_numbers<[1], [0], [0], [1], [0, 0, 1, 1], [], []>} : vector<32x32xf32>, vector<32x32xf32>, vector<32x32xf32> -> vector<32x32xf32>
    %56 = arith.addf %52, %55 : vector<32x32xf32>
    %c152 = arith.constant 152 : index
    %c0_23 = arith.constant 0 : index
    %57 = vector.load %arg1[%c152, %c0_23] : memref<816x128xf32, #tpu.memory_space<vmem>>, vector<1x32xf32>
    %58 = vector.broadcast %57 : vector<1x32xf32> to vector<32x32xf32>
    %59 = arith.addf %56, %58 : vector<32x32xf32>
    %c192 = arith.constant 192 : index
    %c0_24 = arith.constant 0 : index
    %60 = vector.load %arg0[%c192, %c0_24] : memref<224x32xf32, #tpu.memory_space<vmem>>, vector<8x32xf32>
    %cst_25 = arith.constant dense<0.000000e+00> : vector<8x32xf32>
    %61 = tpu.matmul %60, %59, %cst_25 {dimension_numbers = #tpu.dot_dimension_numbers<[1], [0], [0], [1], [0, 0, 1, 1], [], []>} : vector<8x32xf32>, vector<32x32xf32>, vector<8x32xf32> -> vector<8x32xf32>
    %c0_26 = arith.constant 0 : index
    %c0_27 = arith.constant 0 : index
    %62 = vector.load %arg0[%c0_26, %c0_27] : memref<224x32xf32, #tpu.memory_space<vmem>>, vector<64x9xf32>
    %c0_28 = arith.constant 0 : index
    %c0_29 = arith.constant 0 : index
    %63 = vector.load %arg2[%c0_28, %c0_29] : memref<88x256xf32, #tpu.memory_space<vmem>>, vector<9x256xf32>
    %cst_30 = arith.constant dense<0.000000e+00> : vector<64x256xf32>
    %64 = tpu.matmul %62, %63, %cst_30 {dimension_numbers = #tpu.dot_dimension_numbers<[1], [0], [0], [1], [0, 0, 1, 1], [], []>} : vector<64x9xf32>, vector<9x256xf32>, vector<64x256xf32> -> vector<64x256xf32>
    %c80 = arith.constant 80 : index
    %c0_31 = arith.constant 0 : index
    %65 = vector.load %arg2[%c80, %c0_31] : memref<88x256xf32, #tpu.memory_space<vmem>>, vector<1x256xf32>
    %66 = vector.broadcast %65 : vector<1x256xf32> to vector<64x256xf32>
    %67 = arith.addf %64, %66 : vector<64x256xf32>
    %c16 = arith.constant 16 : index
    %c0_32 = arith.constant 0 : index
    %68 = vector.load %arg2[%c16, %c0_32] : memref<88x256xf32, #tpu.memory_space<vmem>>, vector<64x256xf32>
    %cst_33 = arith.constant 0.000000e+00 : f32
    %69 = vector.broadcast %cst_33 : f32 to vector<8x64xf32>
    %cst_34 = arith.constant 0.000000e+00 : f32
    %70 = vector.broadcast %cst_34 : f32 to vector<8x64xf32>
    %71 = vector.extract_strided_slice %67 {offsets = [0, 0], sizes = [8, 256], strides = [1, 1]} : vector<64x256xf32> to vector<8x256xf32>
    %cst_35 = arith.constant dense<0.000000e+00> : vector<8x256xf32>
    %72 = tpu.matmul %69, %68, %cst_35 {dimension_numbers = #tpu.dot_dimension_numbers<[1], [0], [0], [1], [0, 0, 1, 1], [], []>} : vector<8x64xf32>, vector<64x256xf32>, vector<8x256xf32> -> vector<8x256xf32>
    %73 = arith.addf %71, %72 : vector<8x256xf32>
    %74 = vector.extract_strided_slice %73 {offsets = [0, 0], sizes = [8, 192], strides = [1, 1]} : vector<8x256xf32> to vector<8x192xf32>
    %75 = arith.negf %74 : vector<8x192xf32>
    %76 = math.exp %75 : vector<8x192xf32>
    %cst_36 = arith.constant 1.000000e+00 : f32
    %77 = vector.broadcast %cst_36 : f32 to vector<8x192xf32>
    %78 = arith.addf %77, %76 : vector<8x192xf32>
    %79 = arith.divf %77, %78 : vector<8x192xf32>
    %80 = vector.extract_strided_slice %73 {offsets = [0, 192], sizes = [8, 64], strides = [1, 1]} : vector<8x256xf32> to vector<8x64xf32>
    %81 = math.tanh %80 : vector<8x64xf32>
    %82 = vector.extract_strided_slice %79 {offsets = [0, 64], sizes = [8, 64], strides = [1, 1]} : vector<8x192xf32> to vector<8x64xf32>
    %83 = arith.mulf %82, %70 : vector<8x64xf32>
    %84 = vector.extract_strided_slice %79 {offsets = [0, 0], sizes = [8, 64], strides = [1, 1]} : vector<8x192xf32> to vector<8x64xf32>
    %85 = arith.mulf %84, %81 : vector<8x64xf32>
    %86 = arith.addf %83, %85 : vector<8x64xf32>
    %87 = vector.extract_strided_slice %79 {offsets = [0, 128], sizes = [8, 64], strides = [1, 1]} : vector<8x192xf32> to vector<8x64xf32>
    %88 = math.tanh %86 : vector<8x64xf32>
    %89 = arith.mulf %87, %88 : vector<8x64xf32>
    %90 = vector.extract_strided_slice %67 {offsets = [8, 0], sizes = [8, 256], strides = [1, 1]} : vector<64x256xf32> to vector<8x256xf32>
    %cst_37 = arith.constant dense<0.000000e+00> : vector<8x256xf32>
    %91 = tpu.matmul %89, %68, %cst_37 {dimension_numbers = #tpu.dot_dimension_numbers<[1], [0], [0], [1], [0, 0, 1, 1], [], []>} : vector<8x64xf32>, vector<64x256xf32>, vector<8x256xf32> -> vector<8x256xf32>
    %92 = arith.addf %90, %91 : vector<8x256xf32>
    %93 = vector.extract_strided_slice %92 {offsets = [0, 0], sizes = [8, 192], strides = [1, 1]} : vector<8x256xf32> to vector<8x192xf32>
    %94 = arith.negf %93 : vector<8x192xf32>
    %95 = math.exp %94 : vector<8x192xf32>
    %cst_38 = arith.constant 1.000000e+00 : f32
    %96 = vector.broadcast %cst_38 : f32 to vector<8x192xf32>
    %97 = arith.addf %96, %95 : vector<8x192xf32>
    %98 = arith.divf %96, %97 : vector<8x192xf32>
    %99 = vector.extract_strided_slice %92 {offsets = [0, 192], sizes = [8, 64], strides = [1, 1]} : vector<8x256xf32> to vector<8x64xf32>
    %100 = math.tanh %99 : vector<8x64xf32>
    %101 = vector.extract_strided_slice %98 {offsets = [0, 64], sizes = [8, 64], strides = [1, 1]} : vector<8x192xf32> to vector<8x64xf32>
    %102 = arith.mulf %101, %86 : vector<8x64xf32>
    %103 = vector.extract_strided_slice %98 {offsets = [0, 0], sizes = [8, 64], strides = [1, 1]} : vector<8x192xf32> to vector<8x64xf32>
    %104 = arith.mulf %103, %100 : vector<8x64xf32>
    %105 = arith.addf %102, %104 : vector<8x64xf32>
    %106 = vector.extract_strided_slice %98 {offsets = [0, 128], sizes = [8, 64], strides = [1, 1]} : vector<8x192xf32> to vector<8x64xf32>
    %107 = math.tanh %105 : vector<8x64xf32>
    %108 = arith.mulf %106, %107 : vector<8x64xf32>
    %109 = vector.extract_strided_slice %67 {offsets = [16, 0], sizes = [8, 256], strides = [1, 1]} : vector<64x256xf32> to vector<8x256xf32>
    %cst_39 = arith.constant dense<0.000000e+00> : vector<8x256xf32>
    %110 = tpu.matmul %108, %68, %cst_39 {dimension_numbers = #tpu.dot_dimension_numbers<[1], [0], [0], [1], [0, 0, 1, 1], [], []>} : vector<8x64xf32>, vector<64x256xf32>, vector<8x256xf32> -> vector<8x256xf32>
    %111 = arith.addf %109, %110 : vector<8x256xf32>
    %112 = vector.extract_strided_slice %111 {offsets = [0, 0], sizes = [8, 192], strides = [1, 1]} : vector<8x256xf32> to vector<8x192xf32>
    %113 = arith.negf %112 : vector<8x192xf32>
    %114 = math.exp %113 : vector<8x192xf32>
    %cst_40 = arith.constant 1.000000e+00 : f32
    %115 = vector.broadcast %cst_40 : f32 to vector<8x192xf32>
    %116 = arith.addf %115, %114 : vector<8x192xf32>
    %117 = arith.divf %115, %116 : vector<8x192xf32>
    %118 = vector.extract_strided_slice %111 {offsets = [0, 192], sizes = [8, 64], strides = [1, 1]} : vector<8x256xf32> to vector<8x64xf32>
    %119 = math.tanh %118 : vector<8x64xf32>
    %120 = vector.extract_strided_slice %117 {offsets = [0, 64], sizes = [8, 64], strides = [1, 1]} : vector<8x192xf32> to vector<8x64xf32>
    %121 = arith.mulf %120, %105 : vector<8x64xf32>
    %122 = vector.extract_strided_slice %117 {offsets = [0, 0], sizes = [8, 64], strides = [1, 1]} : vector<8x192xf32> to vector<8x64xf32>
    %123 = arith.mulf %122, %119 : vector<8x64xf32>
    %124 = arith.addf %121, %123 : vector<8x64xf32>
    %125 = vector.extract_strided_slice %117 {offsets = [0, 128], sizes = [8, 64], strides = [1, 1]} : vector<8x192xf32> to vector<8x64xf32>
    %126 = math.tanh %124 : vector<8x64xf32>
    %127 = arith.mulf %125, %126 : vector<8x64xf32>
    %128 = vector.extract_strided_slice %67 {offsets = [24, 0], sizes = [8, 256], strides = [1, 1]} : vector<64x256xf32> to vector<8x256xf32>
    %cst_41 = arith.constant dense<0.000000e+00> : vector<8x256xf32>
    %129 = tpu.matmul %127, %68, %cst_41 {dimension_numbers = #tpu.dot_dimension_numbers<[1], [0], [0], [1], [0, 0, 1, 1], [], []>} : vector<8x64xf32>, vector<64x256xf32>, vector<8x256xf32> -> vector<8x256xf32>
    %130 = arith.addf %128, %129 : vector<8x256xf32>
    %131 = vector.extract_strided_slice %130 {offsets = [0, 0], sizes = [8, 192], strides = [1, 1]} : vector<8x256xf32> to vector<8x192xf32>
    %132 = arith.negf %131 : vector<8x192xf32>
    %133 = math.exp %132 : vector<8x192xf32>
    %cst_42 = arith.constant 1.000000e+00 : f32
    %134 = vector.broadcast %cst_42 : f32 to vector<8x192xf32>
    %135 = arith.addf %134, %133 : vector<8x192xf32>
    %136 = arith.divf %134, %135 : vector<8x192xf32>
    %137 = vector.extract_strided_slice %130 {offsets = [0, 192], sizes = [8, 64], strides = [1, 1]} : vector<8x256xf32> to vector<8x64xf32>
    %138 = math.tanh %137 : vector<8x64xf32>
    %139 = vector.extract_strided_slice %136 {offsets = [0, 64], sizes = [8, 64], strides = [1, 1]} : vector<8x192xf32> to vector<8x64xf32>
    %140 = arith.mulf %139, %124 : vector<8x64xf32>
    %141 = vector.extract_strided_slice %136 {offsets = [0, 0], sizes = [8, 64], strides = [1, 1]} : vector<8x192xf32> to vector<8x64xf32>
    %142 = arith.mulf %141, %138 : vector<8x64xf32>
    %143 = arith.addf %140, %142 : vector<8x64xf32>
    %144 = vector.extract_strided_slice %136 {offsets = [0, 128], sizes = [8, 64], strides = [1, 1]} : vector<8x192xf32> to vector<8x64xf32>
    %145 = math.tanh %143 : vector<8x64xf32>
    %146 = arith.mulf %144, %145 : vector<8x64xf32>
    %147 = vector.extract_strided_slice %67 {offsets = [32, 0], sizes = [8, 256], strides = [1, 1]} : vector<64x256xf32> to vector<8x256xf32>
    %cst_43 = arith.constant dense<0.000000e+00> : vector<8x256xf32>
    %148 = tpu.matmul %146, %68, %cst_43 {dimension_numbers = #tpu.dot_dimension_numbers<[1], [0], [0], [1], [0, 0, 1, 1], [], []>} : vector<8x64xf32>, vector<64x256xf32>, vector<8x256xf32> -> vector<8x256xf32>
    %149 = arith.addf %147, %148 : vector<8x256xf32>
    %150 = vector.extract_strided_slice %149 {offsets = [0, 0], sizes = [8, 192], strides = [1, 1]} : vector<8x256xf32> to vector<8x192xf32>
    %151 = arith.negf %150 : vector<8x192xf32>
    %152 = math.exp %151 : vector<8x192xf32>
    %cst_44 = arith.constant 1.000000e+00 : f32
    %153 = vector.broadcast %cst_44 : f32 to vector<8x192xf32>
    %154 = arith.addf %153, %152 : vector<8x192xf32>
    %155 = arith.divf %153, %154 : vector<8x192xf32>
    %156 = vector.extract_strided_slice %149 {offsets = [0, 192], sizes = [8, 64], strides = [1, 1]} : vector<8x256xf32> to vector<8x64xf32>
    %157 = math.tanh %156 : vector<8x64xf32>
    %158 = vector.extract_strided_slice %155 {offsets = [0, 64], sizes = [8, 64], strides = [1, 1]} : vector<8x192xf32> to vector<8x64xf32>
    %159 = arith.mulf %158, %143 : vector<8x64xf32>
    %160 = vector.extract_strided_slice %155 {offsets = [0, 0], sizes = [8, 64], strides = [1, 1]} : vector<8x192xf32> to vector<8x64xf32>
    %161 = arith.mulf %160, %157 : vector<8x64xf32>
    %162 = arith.addf %159, %161 : vector<8x64xf32>
    %163 = vector.extract_strided_slice %155 {offsets = [0, 128], sizes = [8, 64], strides = [1, 1]} : vector<8x192xf32> to vector<8x64xf32>
    %164 = math.tanh %162 : vector<8x64xf32>
    %165 = arith.mulf %163, %164 : vector<8x64xf32>
    %166 = vector.extract_strided_slice %67 {offsets = [40, 0], sizes = [8, 256], strides = [1, 1]} : vector<64x256xf32> to vector<8x256xf32>
    %cst_45 = arith.constant dense<0.000000e+00> : vector<8x256xf32>
    %167 = tpu.matmul %165, %68, %cst_45 {dimension_numbers = #tpu.dot_dimension_numbers<[1], [0], [0], [1], [0, 0, 1, 1], [], []>} : vector<8x64xf32>, vector<64x256xf32>, vector<8x256xf32> -> vector<8x256xf32>
    %168 = arith.addf %166, %167 : vector<8x256xf32>
    %169 = vector.extract_strided_slice %168 {offsets = [0, 0], sizes = [8, 192], strides = [1, 1]} : vector<8x256xf32> to vector<8x192xf32>
    %170 = arith.negf %169 : vector<8x192xf32>
    %171 = math.exp %170 : vector<8x192xf32>
    %cst_46 = arith.constant 1.000000e+00 : f32
    %172 = vector.broadcast %cst_46 : f32 to vector<8x192xf32>
    %173 = arith.addf %172, %171 : vector<8x192xf32>
    %174 = arith.divf %172, %173 : vector<8x192xf32>
    %175 = vector.extract_strided_slice %168 {offsets = [0, 192], sizes = [8, 64], strides = [1, 1]} : vector<8x256xf32> to vector<8x64xf32>
    %176 = math.tanh %175 : vector<8x64xf32>
    %177 = vector.extract_strided_slice %174 {offsets = [0, 64], sizes = [8, 64], strides = [1, 1]} : vector<8x192xf32> to vector<8x64xf32>
    %178 = arith.mulf %177, %162 : vector<8x64xf32>
    %179 = vector.extract_strided_slice %174 {offsets = [0, 0], sizes = [8, 64], strides = [1, 1]} : vector<8x192xf32> to vector<8x64xf32>
    %180 = arith.mulf %179, %176 : vector<8x64xf32>
    %181 = arith.addf %178, %180 : vector<8x64xf32>
    %182 = vector.extract_strided_slice %174 {offsets = [0, 128], sizes = [8, 64], strides = [1, 1]} : vector<8x192xf32> to vector<8x64xf32>
    %183 = math.tanh %181 : vector<8x64xf32>
    %184 = arith.mulf %182, %183 : vector<8x64xf32>
    %185 = vector.extract_strided_slice %67 {offsets = [48, 0], sizes = [8, 256], strides = [1, 1]} : vector<64x256xf32> to vector<8x256xf32>
    %cst_47 = arith.constant dense<0.000000e+00> : vector<8x256xf32>
    %186 = tpu.matmul %184, %68, %cst_47 {dimension_numbers = #tpu.dot_dimension_numbers<[1], [0], [0], [1], [0, 0, 1, 1], [], []>} : vector<8x64xf32>, vector<64x256xf32>, vector<8x256xf32> -> vector<8x256xf32>
    %187 = arith.addf %185, %186 : vector<8x256xf32>
    %188 = vector.extract_strided_slice %187 {offsets = [0, 0], sizes = [8, 192], strides = [1, 1]} : vector<8x256xf32> to vector<8x192xf32>
    %189 = arith.negf %188 : vector<8x192xf32>
    %190 = math.exp %189 : vector<8x192xf32>
    %cst_48 = arith.constant 1.000000e+00 : f32
    %191 = vector.broadcast %cst_48 : f32 to vector<8x192xf32>
    %192 = arith.addf %191, %190 : vector<8x192xf32>
    %193 = arith.divf %191, %192 : vector<8x192xf32>
    %194 = vector.extract_strided_slice %187 {offsets = [0, 192], sizes = [8, 64], strides = [1, 1]} : vector<8x256xf32> to vector<8x64xf32>
    %195 = math.tanh %194 : vector<8x64xf32>
    %196 = vector.extract_strided_slice %193 {offsets = [0, 64], sizes = [8, 64], strides = [1, 1]} : vector<8x192xf32> to vector<8x64xf32>
    %197 = arith.mulf %196, %181 : vector<8x64xf32>
    %198 = vector.extract_strided_slice %193 {offsets = [0, 0], sizes = [8, 64], strides = [1, 1]} : vector<8x192xf32> to vector<8x64xf32>
    %199 = arith.mulf %198, %195 : vector<8x64xf32>
    %200 = arith.addf %197, %199 : vector<8x64xf32>
    %201 = vector.extract_strided_slice %193 {offsets = [0, 128], sizes = [8, 64], strides = [1, 1]} : vector<8x192xf32> to vector<8x64xf32>
    %202 = math.tanh %200 : vector<8x64xf32>
    %203 = arith.mulf %201, %202 : vector<8x64xf32>
    %204 = vector.extract_strided_slice %67 {offsets = [56, 0], sizes = [8, 256], strides = [1, 1]} : vector<64x256xf32> to vector<8x256xf32>
    %cst_49 = arith.constant dense<0.000000e+00> : vector<8x256xf32>
    %205 = tpu.matmul %203, %68, %cst_49 {dimension_numbers = #tpu.dot_dimension_numbers<[1], [0], [0], [1], [0, 0, 1, 1], [], []>} : vector<8x64xf32>, vector<64x256xf32>, vector<8x256xf32> -> vector<8x256xf32>
    %206 = arith.addf %204, %205 : vector<8x256xf32>
    %207 = vector.extract_strided_slice %206 {offsets = [0, 0], sizes = [8, 192], strides = [1, 1]} : vector<8x256xf32> to vector<8x192xf32>
    %208 = arith.negf %207 : vector<8x192xf32>
    %209 = math.exp %208 : vector<8x192xf32>
    %cst_50 = arith.constant 1.000000e+00 : f32
    %210 = vector.broadcast %cst_50 : f32 to vector<8x192xf32>
    %211 = arith.addf %210, %209 : vector<8x192xf32>
    %212 = arith.divf %210, %211 : vector<8x192xf32>
    %213 = vector.extract_strided_slice %206 {offsets = [0, 192], sizes = [8, 64], strides = [1, 1]} : vector<8x256xf32> to vector<8x64xf32>
    %214 = math.tanh %213 : vector<8x64xf32>
    %215 = vector.extract_strided_slice %212 {offsets = [0, 64], sizes = [8, 64], strides = [1, 1]} : vector<8x192xf32> to vector<8x64xf32>
    %216 = arith.mulf %215, %200 : vector<8x64xf32>
    %217 = vector.extract_strided_slice %212 {offsets = [0, 0], sizes = [8, 64], strides = [1, 1]} : vector<8x192xf32> to vector<8x64xf32>
    %218 = arith.mulf %217, %214 : vector<8x64xf32>
    %219 = arith.addf %216, %218 : vector<8x64xf32>
    %220 = vector.extract_strided_slice %212 {offsets = [0, 128], sizes = [8, 64], strides = [1, 1]} : vector<8x192xf32> to vector<8x64xf32>
    %221 = math.tanh %219 : vector<8x64xf32>
    %222 = arith.mulf %220, %221 : vector<8x64xf32>
    %223 = vector.extract_strided_slice %222 {offsets = [0, 0], sizes = [2, 32], strides = [1, 1]} : vector<8x64xf32> to vector<2x32xf32>
    %224 = vector.extract_strided_slice %222 {offsets = [0, 32], sizes = [8, 32], strides = [1, 1]} : vector<8x64xf32> to vector<8x32xf32>
    %c64 = arith.constant 64 : index
    %c0_51 = arith.constant 0 : index
    %225 = vector.load %arg0[%c64, %c0_51] : memref<224x32xf32, #tpu.memory_space<vmem>>, vector<2x18xf32>
    %c160 = arith.constant 160 : index
    %c0_52 = arith.constant 0 : index
    %226 = vector.load %arg1[%c160, %c0_52] : memref<816x128xf32, #tpu.memory_space<vmem>>, vector<18x32xf32>
    %cst_53 = arith.constant dense<0.000000e+00> : vector<2x32xf32>
    %227 = tpu.matmul %225, %226, %cst_53 {dimension_numbers = #tpu.dot_dimension_numbers<[1], [0], [0], [1], [0, 0, 1, 1], [], []>} : vector<2x18xf32>, vector<18x32xf32>, vector<2x32xf32> -> vector<2x32xf32>
    %c184 = arith.constant 184 : index
    %c0_54 = arith.constant 0 : index
    %228 = vector.load %arg1[%c184, %c0_54] : memref<816x128xf32, #tpu.memory_space<vmem>>, vector<1x32xf32>
    %229 = vector.broadcast %228 : vector<1x32xf32> to vector<2x32xf32>
    %230 = arith.addf %227, %229 : vector<2x32xf32>
    %cst_55 = arith.constant 0.000000e+00 : f32
    %231 = vector.broadcast %cst_55 : f32 to vector<2x32xf32>
    %232 = arith.maximumf %230, %231 : vector<2x32xf32>
    %233 = tpu.concatenate %223, %232 in 1 : vector<2x32xf32>, vector<2x32xf32> -> vector<2x64xf32>
    %c192_56 = arith.constant 192 : index
    %c0_57 = arith.constant 0 : index
    %234 = vector.load %arg1[%c192_56, %c0_57] : memref<816x128xf32, #tpu.memory_space<vmem>>, vector<64x64xf32>
    %cst_58 = arith.constant dense<0.000000e+00> : vector<2x64xf32>
    %235 = tpu.matmul %233, %234, %cst_58 {dimension_numbers = #tpu.dot_dimension_numbers<[1], [0], [0], [1], [0, 0, 1, 1], [], []>} : vector<2x64xf32>, vector<64x64xf32>, vector<2x64xf32> -> vector<2x64xf32>
    %c256 = arith.constant 256 : index
    %c0_59 = arith.constant 0 : index
    %236 = vector.load %arg1[%c256, %c0_59] : memref<816x128xf32, #tpu.memory_space<vmem>>, vector<1x64xf32>
    %237 = vector.broadcast %236 : vector<1x64xf32> to vector<2x64xf32>
    %238 = arith.addf %235, %237 : vector<2x64xf32>
    %cst_60 = arith.constant 0.000000e+00 : f32
    %239 = vector.broadcast %cst_60 : f32 to vector<2x64xf32>
    %240 = arith.maximumf %238, %239 : vector<2x64xf32>
    %c72 = arith.constant 72 : index
    %c0_61 = arith.constant 0 : index
    %241 = vector.load %arg0[%c72, %c0_61] : memref<224x32xf32, #tpu.memory_space<vmem>>, vector<8x19xf32>
    %c264 = arith.constant 264 : index
    %c0_62 = arith.constant 0 : index
    %242 = vector.load %arg1[%c264, %c0_62] : memref<816x128xf32, #tpu.memory_space<vmem>>, vector<19x32xf32>
    %cst_63 = arith.constant dense<0.000000e+00> : vector<8x32xf32>
    %243 = tpu.matmul %241, %242, %cst_63 {dimension_numbers = #tpu.dot_dimension_numbers<[1], [0], [0], [1], [0, 0, 1, 1], [], []>} : vector<8x19xf32>, vector<19x32xf32>, vector<8x32xf32> -> vector<8x32xf32>
    %c288 = arith.constant 288 : index
    %c0_64 = arith.constant 0 : index
    %244 = vector.load %arg1[%c288, %c0_64] : memref<816x128xf32, #tpu.memory_space<vmem>>, vector<1x32xf32>
    %245 = vector.broadcast %244 : vector<1x32xf32> to vector<8x32xf32>
    %246 = arith.addf %243, %245 : vector<8x32xf32>
    %cst_65 = arith.constant 0.000000e+00 : f32
    %247 = vector.broadcast %cst_65 : f32 to vector<8x32xf32>
    %248 = arith.maximumf %246, %247 : vector<8x32xf32>
    %249 = tpu.concatenate %224, %248, %61 in 1 : vector<8x32xf32>, vector<8x32xf32>, vector<8x32xf32> -> vector<8x96xf32>
    %c296 = arith.constant 296 : index
    %c0_66 = arith.constant 0 : index
    %250 = vector.load %arg1[%c296, %c0_66] : memref<816x128xf32, #tpu.memory_space<vmem>>, vector<96x64xf32>
    %cst_67 = arith.constant dense<0.000000e+00> : vector<8x64xf32>
    %251 = tpu.matmul %249, %250, %cst_67 {dimension_numbers = #tpu.dot_dimension_numbers<[1], [0], [0], [1], [0, 0, 1, 1], [], []>} : vector<8x96xf32>, vector<96x64xf32>, vector<8x64xf32> -> vector<8x64xf32>
    %c392 = arith.constant 392 : index
    %c0_68 = arith.constant 0 : index
    %252 = vector.load %arg1[%c392, %c0_68] : memref<816x128xf32, #tpu.memory_space<vmem>>, vector<1x64xf32>
    %253 = vector.broadcast %252 : vector<1x64xf32> to vector<8x64xf32>
    %254 = arith.addf %251, %253 : vector<8x64xf32>
    %cst_69 = arith.constant 0.000000e+00 : f32
    %255 = vector.broadcast %cst_69 : f32 to vector<8x64xf32>
    %256 = arith.maximumf %254, %255 : vector<8x64xf32>
    %c200 = arith.constant 200 : index
    %c0_70 = arith.constant 0 : index
    %257 = vector.load %arg0[%c200, %c0_70] : memref<224x32xf32, #tpu.memory_space<vmem>>, vector<8x2xf32>
    %c208 = arith.constant 208 : index
    %c0_71 = arith.constant 0 : index
    %258 = vector.load %arg0[%c208, %c0_71] : memref<224x32xf32, #tpu.memory_space<vmem>>, vector<2x8xf32>
    %cst_72 = arith.constant dense<0.000000e+00> : vector<8x64xf32>
    %259 = tpu.matmul %257, %240, %cst_72 {dimension_numbers = #tpu.dot_dimension_numbers<[1], [0], [0], [1], [0, 0, 1, 1], [], []>} : vector<8x2xf32>, vector<2x64xf32>, vector<8x64xf32> -> vector<8x64xf32>
    %260 = tpu.concatenate %256, %259 in 1 : vector<8x64xf32>, vector<8x64xf32> -> vector<8x128xf32>
    %c400 = arith.constant 400 : index
    %c0_73 = arith.constant 0 : index
    %261 = vector.load %arg1[%c400, %c0_73] : memref<816x128xf32, #tpu.memory_space<vmem>>, vector<128x16xf32>
    %cst_74 = arith.constant dense<0.000000e+00> : vector<8x16xf32>
    %262 = tpu.matmul %260, %261, %cst_74 {dimension_numbers = #tpu.dot_dimension_numbers<[1], [0], [0], [1], [0, 0, 1, 1], [], []>} : vector<8x128xf32>, vector<128x16xf32>, vector<8x16xf32> -> vector<8x16xf32>
    %c528 = arith.constant 528 : index
    %c0_75 = arith.constant 0 : index
    %263 = vector.load %arg1[%c528, %c0_75] : memref<816x128xf32, #tpu.memory_space<vmem>>, vector<1x16xf32>
    %264 = vector.broadcast %263 : vector<1x16xf32> to vector<8x16xf32>
    %265 = arith.addf %262, %264 : vector<8x16xf32>
    %cst_76 = arith.constant 0.000000e+00 : f32
    %266 = vector.broadcast %cst_76 : f32 to vector<8x16xf32>
    %267 = arith.maximumf %265, %266 : vector<8x16xf32>
    %c536 = arith.constant 536 : index
    %c0_77 = arith.constant 0 : index
    %268 = vector.load %arg1[%c536, %c0_77] : memref<816x128xf32, #tpu.memory_space<vmem>>, vector<16x1xf32>
    %cst_78 = arith.constant dense<0.000000e+00> : vector<8x1xf32>
    %269 = tpu.matmul %267, %268, %cst_78 {dimension_numbers = #tpu.dot_dimension_numbers<[1], [0], [0], [1], [0, 0, 1, 1], [], []>} : vector<8x16xf32>, vector<16x1xf32>, vector<8x1xf32> -> vector<8x1xf32>
    %c552 = arith.constant 552 : index
    %c0_79 = arith.constant 0 : index
    %270 = vector.load %arg1[%c552, %c0_79] : memref<816x128xf32, #tpu.memory_space<vmem>>, vector<1x1xf32>
    %271 = vector.broadcast %270 : vector<1x1xf32> to vector<8x1xf32>
    %272 = arith.addf %269, %271 : vector<8x1xf32>
    %c80_80 = arith.constant 80 : index
    %c0_81 = arith.constant 0 : index
    %273 = vector.load %arg0[%c80_80, %c0_81] : memref<224x32xf32, #tpu.memory_space<vmem>>, vector<8x1xf32>
    %274 = arith.mulf %272, %273 : vector<8x1xf32>
    %c216 = arith.constant 216 : index
    %c0_82 = arith.constant 0 : index
    %275 = vector.load %arg0[%c216, %c0_82] : memref<224x32xf32, #tpu.memory_space<vmem>>, vector<8x4xf32>
    %276 = vector.broadcast %274 : vector<8x1xf32> to vector<8x4xf32>
    %277 = arith.mulf %276, %275 : vector<8x4xf32>
    %cst_83 = arith.constant dense<0.000000e+00> : vector<2x4xf32>
    %278 = tpu.matmul %258, %277, %cst_83 {dimension_numbers = #tpu.dot_dimension_numbers<[1], [0], [0], [1], [0, 0, 1, 1], [], []>} : vector<2x8xf32>, vector<8x4xf32>, vector<2x4xf32> -> vector<2x4xf32>
    %cst_84 = arith.constant dense<0xFF800000> : vector<2xf32>
    %279 = vector.multi_reduction <maximumf>, %278, %cst_84 [1] : vector<2x4xf32> to vector<2xf32>
    %280 = vector.shape_cast %279 : vector<2xf32> to vector<2x1xf32>
    %cst_85 = arith.constant dense<0.000000e+00> : vector<8x1xf32>
    %281 = tpu.matmul %257, %280, %cst_85 {dimension_numbers = #tpu.dot_dimension_numbers<[1], [0], [0], [1], [0, 0, 1, 1], [], []>} : vector<8x2xf32>, vector<2x1xf32>, vector<8x1xf32> -> vector<8x1xf32>
    %282 = arith.subf %274, %281 : vector<8x1xf32>
    %283 = math.exp %282 : vector<8x1xf32>
    %cst_86 = arith.constant dense<0.000000e+00> : vector<2x1xf32>
    %284 = tpu.matmul %258, %283, %cst_86 {dimension_numbers = #tpu.dot_dimension_numbers<[1], [0], [0], [1], [0, 0, 1, 1], [], []>} : vector<2x8xf32>, vector<8x1xf32>, vector<2x1xf32> -> vector<2x1xf32>
    %285 = vector.broadcast %283 : vector<8x1xf32> to vector<8x64xf32>
    %286 = arith.mulf %285, %256 : vector<8x64xf32>
    %cst_87 = arith.constant dense<0.000000e+00> : vector<2x64xf32>
    %287 = tpu.matmul %258, %286, %cst_87 {dimension_numbers = #tpu.dot_dimension_numbers<[1], [0], [0], [1], [0, 0, 1, 1], [], []>} : vector<2x8xf32>, vector<8x64xf32>, vector<2x64xf32> -> vector<2x64xf32>
    %288 = vector.broadcast %284 : vector<2x1xf32> to vector<2x64xf32>
    %289 = arith.divf %287, %288 : vector<2x64xf32>
    %cst_88 = arith.constant 0.000000e+00 : f32
    %290 = vector.broadcast %cst_88 : f32 to vector<2x64xf32>
    %291 = arith.maximumf %289, %290 : vector<2x64xf32>
    %292 = tpu.concatenate %240, %291 in 1 : vector<2x64xf32>, vector<2x64xf32> -> vector<2x128xf32>
    %c560 = arith.constant 560 : index
    %c0_89 = arith.constant 0 : index
    %293 = vector.load %arg1[%c560, %c0_89] : memref<816x128xf32, #tpu.memory_space<vmem>>, vector<128x96xf32>
    %cst_90 = arith.constant dense<0.000000e+00> : vector<2x96xf32>
    %294 = tpu.matmul %292, %293, %cst_90 {dimension_numbers = #tpu.dot_dimension_numbers<[1], [0], [0], [1], [0, 0, 1, 1], [], []>} : vector<2x128xf32>, vector<128x96xf32>, vector<2x96xf32> -> vector<2x96xf32>
    %c720 = arith.constant 720 : index
    %c0_91 = arith.constant 0 : index
    %295 = vector.load %arg1[%c720, %c0_91] : memref<816x128xf32, #tpu.memory_space<vmem>>, vector<1x96xf32>
    %296 = vector.broadcast %295 : vector<1x96xf32> to vector<2x96xf32>
    %297 = arith.addf %294, %296 : vector<2x96xf32>
    %c688 = arith.constant 688 : index
    %c0_92 = arith.constant 0 : index
    %298 = vector.load %arg1[%c688, %c0_92] : memref<816x128xf32, #tpu.memory_space<vmem>>, vector<32x96xf32>
    %c728 = arith.constant 728 : index
    %c0_93 = arith.constant 0 : index
    %299 = vector.load %arg1[%c728, %c0_93] : memref<816x128xf32, #tpu.memory_space<vmem>>, vector<1x32xf32>
    %c736 = arith.constant 736 : index
    %c0_94 = arith.constant 0 : index
    %300 = vector.load %arg1[%c736, %c0_94] : memref<816x128xf32, #tpu.memory_space<vmem>>, vector<32x32xf32>
    %c768 = arith.constant 768 : index
    %c0_95 = arith.constant 0 : index
    %301 = vector.load %arg1[%c768, %c0_95] : memref<816x128xf32, #tpu.memory_space<vmem>>, vector<1x32xf32>
    %c88_96 = arith.constant 88 : index
    %c0_97 = arith.constant 0 : index
    %302 = vector.load %arg0[%c88_96, %c0_97] : memref<224x32xf32, #tpu.memory_space<vmem>>, vector<2x32xf32>
    %cst_98 = arith.constant dense<0.000000e+00> : vector<2x32xf32>
    %303 = tpu.matmul %302, %300, %cst_98 {dimension_numbers = #tpu.dot_dimension_numbers<[1], [0], [0], [1], [0, 0, 1, 1], [], []>} : vector<2x32xf32>, vector<32x32xf32>, vector<2x32xf32> -> vector<2x32xf32>
    %304 = vector.broadcast %301 : vector<1x32xf32> to vector<2x32xf32>
    %305 = arith.addf %303, %304 : vector<2x32xf32>
    %cst_99 = arith.constant 0.000000e+00 : f32
    %306 = vector.broadcast %cst_99 : f32 to vector<2x32xf32>
    %307 = arith.maximumf %305, %306 : vector<2x32xf32>
    %cst_100 = arith.constant dense<0.000000e+00> : vector<2x96xf32>
    %308 = tpu.matmul %307, %298, %cst_100 {dimension_numbers = #tpu.dot_dimension_numbers<[1], [0], [0], [1], [0, 0, 1, 1], [], []>} : vector<2x32xf32>, vector<32x96xf32>, vector<2x96xf32> -> vector<2x96xf32>
    %309 = arith.addf %297, %308 : vector<2x96xf32>
    %310 = vector.extract_strided_slice %309 {offsets = [0, 0], sizes = [2, 64], strides = [1, 1]} : vector<2x96xf32> to vector<2x64xf32>
    %311 = arith.negf %310 : vector<2x64xf32>
    %312 = math.exp %311 : vector<2x64xf32>
    %cst_101 = arith.constant 1.000000e+00 : f32
    %313 = vector.broadcast %cst_101 : f32 to vector<2x64xf32>
    %314 = arith.addf %313, %312 : vector<2x64xf32>
    %315 = arith.divf %313, %314 : vector<2x64xf32>
    %316 = vector.extract_strided_slice %309 {offsets = [0, 64], sizes = [2, 32], strides = [1, 1]} : vector<2x96xf32> to vector<2x32xf32>
    %317 = vector.extract_strided_slice %315 {offsets = [0, 0], sizes = [2, 32], strides = [1, 1]} : vector<2x64xf32> to vector<2x32xf32>
    %318 = vector.broadcast %299 : vector<1x32xf32> to vector<2x32xf32>
    %319 = arith.mulf %317, %318 : vector<2x32xf32>
    %320 = arith.addf %316, %319 : vector<2x32xf32>
    %321 = math.tanh %320 : vector<2x32xf32>
    %322 = vector.extract_strided_slice %315 {offsets = [0, 32], sizes = [2, 32], strides = [1, 1]} : vector<2x64xf32> to vector<2x32xf32>
    %cst_102 = arith.constant 1.000000e+00 : f32
    %323 = vector.broadcast %cst_102 : f32 to vector<2x32xf32>
    %324 = arith.subf %323, %322 : vector<2x32xf32>
    %325 = arith.mulf %324, %321 : vector<2x32xf32>
    %cst_103 = arith.constant dense<0.000000e+00> : vector<2x32xf32>
    %326 = tpu.matmul %325, %300, %cst_103 {dimension_numbers = #tpu.dot_dimension_numbers<[1], [0], [0], [1], [0, 0, 1, 1], [], []>} : vector<2x32xf32>, vector<32x32xf32>, vector<2x32xf32> -> vector<2x32xf32>
    %327 = vector.broadcast %301 : vector<1x32xf32> to vector<2x32xf32>
    %328 = arith.addf %326, %327 : vector<2x32xf32>
    %cst_104 = arith.constant 0.000000e+00 : f32
    %329 = vector.broadcast %cst_104 : f32 to vector<2x32xf32>
    %330 = arith.maximumf %328, %329 : vector<2x32xf32>
    %cst_105 = arith.constant dense<0.000000e+00> : vector<2x96xf32>
    %331 = tpu.matmul %330, %298, %cst_105 {dimension_numbers = #tpu.dot_dimension_numbers<[1], [0], [0], [1], [0, 0, 1, 1], [], []>} : vector<2x32xf32>, vector<32x96xf32>, vector<2x96xf32> -> vector<2x96xf32>
    %332 = arith.addf %297, %331 : vector<2x96xf32>
    %333 = vector.extract_strided_slice %332 {offsets = [0, 0], sizes = [2, 64], strides = [1, 1]} : vector<2x96xf32> to vector<2x64xf32>
    %334 = arith.negf %333 : vector<2x64xf32>
    %335 = math.exp %334 : vector<2x64xf32>
    %cst_106 = arith.constant 1.000000e+00 : f32
    %336 = vector.broadcast %cst_106 : f32 to vector<2x64xf32>
    %337 = arith.addf %336, %335 : vector<2x64xf32>
    %338 = arith.divf %336, %337 : vector<2x64xf32>
    %339 = vector.extract_strided_slice %332 {offsets = [0, 64], sizes = [2, 32], strides = [1, 1]} : vector<2x96xf32> to vector<2x32xf32>
    %340 = vector.extract_strided_slice %338 {offsets = [0, 0], sizes = [2, 32], strides = [1, 1]} : vector<2x64xf32> to vector<2x32xf32>
    %341 = vector.broadcast %299 : vector<1x32xf32> to vector<2x32xf32>
    %342 = arith.mulf %340, %341 : vector<2x32xf32>
    %343 = arith.addf %339, %342 : vector<2x32xf32>
    %344 = math.tanh %343 : vector<2x32xf32>
    %345 = vector.extract_strided_slice %338 {offsets = [0, 32], sizes = [2, 32], strides = [1, 1]} : vector<2x64xf32> to vector<2x32xf32>
    %cst_107 = arith.constant 1.000000e+00 : f32
    %346 = vector.broadcast %cst_107 : f32 to vector<2x32xf32>
    %347 = arith.subf %346, %345 : vector<2x32xf32>
    %348 = arith.mulf %347, %344 : vector<2x32xf32>
    %c776 = arith.constant 776 : index
    %c0_108 = arith.constant 0 : index
    %349 = vector.load %arg1[%c776, %c0_108] : memref<816x128xf32, #tpu.memory_space<vmem>>, vector<32x1xf32>
    %cst_109 = arith.constant dense<0.000000e+00> : vector<2x1xf32>
    %350 = tpu.matmul %348, %349, %cst_109 {dimension_numbers = #tpu.dot_dimension_numbers<[1], [0], [0], [1], [0, 0, 1, 1], [], []>} : vector<2x32xf32>, vector<32x1xf32>, vector<2x1xf32> -> vector<2x1xf32>
    %c808 = arith.constant 808 : index
    %c0_110 = arith.constant 0 : index
    %351 = vector.load %arg1[%c808, %c0_110] : memref<816x128xf32, #tpu.memory_space<vmem>>, vector<1x1xf32>
    %352 = vector.broadcast %351 : vector<1x1xf32> to vector<2x1xf32>
    %353 = arith.addf %350, %352 : vector<2x1xf32>
    %c0_111 = arith.constant 0 : index
    %c0_112 = arith.constant 0 : index
    %354 = vector.load %arg3[%c0_111, %c0_112] : memref<2x1xf32, #tpu.memory_space<vmem>>, vector<2x1xf32>
    tpu.vector_store %arg3[%c0_111, %c0_112], %353 {strides = array<i32>} : memref<2x1xf32, #tpu.memory_space<vmem>>, vector<2x1xf32>,
    return
  }
}

</mosaic_0001>

<llo_original>
// kernel: mvgfrnn_forward.1
$region0: #{mvgfrnn_forward.1}
  #allocation0 [shape = 'u32[]', space=smem, size = 0x4, offset = 0x4, fixed_abs, tag = 'smem constant byte address 0x4 - core index']
  #allocation1 [shape = 'u32[144,128]{1,0:T(1,128)}', space=vmem, size = 0x12000, scoped, tag = 'internal scratch']
  %s0 = inlined_call_operand.vmem [shape: f32[224,32], index: 0, kind: input, shape index: {}]
  %s1 = inlined_call_operand.vmem [shape: f32[816,128], index: 1, kind: input, shape index: {}]
  %s2 = inlined_call_operand.vmem [shape: f32[88,256], index: 2, kind: input, shape index: {}]
  %s3 = inlined_call_operand.vmem [shape: f32[2,1], index: 3, kind: output, shape index: {}]
  %s4 = sld [smem:[#allocation0]]
  $region22: #{mvgfrnn_forward.1} parent=0
    _
  %s6 = ssub.s32 1, %s4
  %s7 = scalar_select 0, %s6, %s4
  // Predicated region
  $region2: #{mvgfrnn_forward.1} parent=0 // pred_check
    _
  $region3: #{mvgfrnn_forward.1} parent=0 // pred_check_branch
    %9 = sbr.rel (0) target = $region5
  $region4: #{mvgfrnn_forward.1} parent=0 // pred_region
    _
  $region5: #{mvgfrnn_forward.1} parent=0 // pred_fallthru
    _
  // Predicated region
  $region6: #{mvgfrnn_forward.1} parent=0 // pred_check
    _
  $region7: #{mvgfrnn_forward.1} parent=0 // pred_check_branch
    %11 = sbr.rel (0) target = $region9
  $region8: #{mvgfrnn_forward.1} parent=0 // pred_region
    _
  $region9: #{mvgfrnn_forward.1} parent=0 // pred_fallthru
    _
  // Predicated region
  $region10: #{mvgfrnn_forward.1} parent=0 // pred_check
    _
  $region11: #{mvgfrnn_forward.1} parent=0 // pred_check_branch
    %13 = sbr.rel (0) target = $region13
  $region12: #{mvgfrnn_forward.1} parent=0 // pred_region
    _
  $region13: #{mvgfrnn_forward.1} parent=0 // pred_fallthru
    _
  %v14 = vld [vmem:[%s1 + $0x18] sm:$0xff]
  %v15 = vld [vmem:[%s1 + $0x20] sm:$0xff]
  %v16 = vld [vmem:[%s1 + $0x28] sm:$0xff]
  %v17 = vld [vmem:[%s1 + $0x30] sm:$0xff]
  %v18 = vld [vmem:[%s1 + $0x38] sm:$0xff]
  %v19 = vld [vmem:[%s1 + $0x40] sm:$0xff]
  %v20 = vld [vmem:[%s1 + $0x48] sm:$0xff]
  %v21 = vld [vmem:[%s1 + $0x50] sm:$0xff]
  %v22 = vld [vmem:[%s0 + $0x60] sm:$0xff]
  %v23 = vld [vmem:[%s0 + $0x68] sm:$0xff]
  %v24 = vld [vmem:[%s0 + $0x70] sm:$0xff]
  %v25 = vld [vmem:[%s0 + $0x78] sm:$0xff]
  %v26 = vld [vmem:[%s1] sm:$0xff]
  %v27 = vld [vmem:[%s1 + $0x8] sm:$0xff]
  %v28 = vld [vmem:[%s1 + $0x10] sm:$0x3f]
  %vm29 = vcmask 179200
  %v31 = vsel %vm29, %v22, 0
  %v34 = vsel %vm29, %v23, 0
  %v37 = vsel %vm29, %v24, 0
  %v40 = vsel %vm29, %v25, 0
  %vm42 = vcmask 1045504
  %v44 = vsel %vm42, %v28, 0
  %46 = vmatprep.subr.mxu0 0.0
  %47 = vmatpush1.msra.mxu0 0.0
  %48 = vmatprep.subr.mxu0 0.0
  %49 = vmatpush1.msra.mxu0 0.0
  %50 = vmatprep.subr.mxu0 0.0
  %51 = vmatpush1.msra.mxu0 0.0
  %52 = vmatprep.subr.mxu0 0.0
  %53 = vmatpush1.msra.mxu0 0.0
  %54 = vmatprep.subr.mxu0 0.0
  %55 = vmatpush1.msra.mxu0 0.0
  %56 = vmatprep.subr.mxu0 0.0
  %57 = vmatpush1.msra.mxu0 0.0
  %58 = vmatprep.subr.mxu0 0.0
  %59 = vmatpush1.msra.mxu0 0.0
  %60 = vmatprep.subr.mxu0 0.0
  %61 = vmatpush1.msra.mxu0 0.0
  %62 = vmatprep.subr.mxu0 0.0
  %63 = vmatpush1.msra.mxu0 0.0
  %64 = vmatprep.subr.mxu0 0.0
  %65 = vmatpush1.msra.mxu0 0.0
  %66 = vmatprep.subr.mxu0 0.0
  %67 = vmatpush1.msra.mxu0 0.0
  %68 = vmatprep.subr.mxu0 0.0
  %69 = vmatpush1.msra.mxu0 0.0
  %70 = vmatprep.subr.mxu0 0.0
  %71 = vmatpush1.msra.mxu0 0.0
  %72 = vmatprep.subr.mxu0 0.0
  %73 = vmatpush1.msra.mxu0 %v44
  %74 = vmatprep.subr.mxu0 0.0
  %75 = vmatpush1.msra.mxu0 %v27
  %76 = vmatprep.subr.mxu0 0.0
  %77 = vmatpush1.msra.mxu0 %v26
  %78 = vmatprep.subr.mxu0 0.0
  %79 = vmatpush2.msra.mxu0 0.0
  %80 = vmatprep.subr.mxu0 0.0
  %81 = vmatpush2.msra.mxu0 0.0
  %82 = vmatprep.subr.mxu0 0.0
  %83 = vmatpush2.msra.mxu0 0.0
  %84 = vmatprep.subr.mxu0 0.0
  %85 = vmatpush2.msra.mxu0 0.0
  %86 = vmatprep.subr.mxu0 0.0
  %87 = vmatpush2.msra.mxu0 0.0
  %88 = vmatprep.subr.mxu0 0.0
  %89 = vmatpush2.msra.mxu0 0.0
  %90 = vmatprep.subr.mxu0 0.0
  %91 = vmatpush2.msra.mxu0 0.0
  %92 = vmatprep.subr.mxu0 0.0
  %93 = vmatpush2.msra.mxu0 0.0
  %94 = vmatprep.subr.mxu0 0.0
  %95 = vmatpush2.msra.mxu0 0.0
  %96 = vmatprep.subr.mxu0 0.0
  %97 = vmatpush2.msra.mxu0 0.0
  %98 = vmatprep.subr.mxu0 0.0
  %99 = vmatpush2.msra.mxu0 0.0
  %100 = vmatprep.subr.mxu0 0.0
  %101 = vmatpush2.msra.mxu0 0.0
  %102 = vmatprep.subr.mxu0 0.0
  %103 = vmatpush2.msra.mxu0 0.0
  %104 = vmatprep.subr.mxu0 0.0
  %105 = vmatpush2.msra.mxu0 0.0
  %106 = vmatprep.subr.mxu0 0.0
  %107 = vmatpush2.msra.mxu0 0.0
  %108 = vmatprep.subr.mxu0 0.0
  %109 = vmatpush2.msra.mxu0 0.0
  %110 = vmatprep.mubr.f32.mxu0 0.0
  %111 = vmatmul.mubr.f32.gmra.mxu0 %v31
  %v112 = vpop.f32.mrf.mxu0
  %v113 = vadd.f32 0.0, %v112
  %v114 = vpop.f32.mrf.mxu0
  %115 = vmatprep.mubr.f32.mxu0 0.0
  %116 = vmatmul.mubr.f32.gmra.mxu0 %v34
  %v117 = vpop.f32.mrf.mxu0
  %v118 = vadd.f32 0.0, %v117
  %v119 = vpop.f32.mrf.mxu0
  %120 = vmatprep.mubr.f32.mxu0 0.0
  %121 = vmatmul.mubr.f32.gmra.mxu0 %v37
  %v122 = vpop.f32.mrf.mxu0
  %v123 = vadd.f32 0.0, %v122
  %v124 = vpop.f32.mrf.mxu0
  %125 = vmatprep.mubr.f32.mxu0 0.0
  %126 = vmatmul.mubr.f32.gmra.mxu0 %v40
  %v127 = vpop.f32.mrf.mxu0
  %v128 = vadd.f32 0.0, %v127
  %v129 = vpop.f32.mrf.mxu0
  %130 = vdwg.mxu0
  %vm131 = vcmask 261120
  %v133 = vsel %vm131, %v113, 0
  %v136 = vsel %vm131, %v118, 0
  %v139 = vsel %vm131, %v123, 0
  %v142 = vsel %vm131, %v128, 0
  %144 = vmatprep.subr.mxu0 0.0
  %145 = vmatpush1.msra.mxu0 0.0
  %146 = vmatprep.subr.mxu0 0.0
  %147 = vmatpush1.msra.mxu0 0.0
  %148 = vmatprep.subr.mxu0 0.0
  %149 = vmatpush1.msra.mxu0 0.0
  %150 = vmatprep.subr.mxu0 0.0
  %151 = vmatpush1.msra.mxu0 0.0
  %152 = vmatprep.subr.mxu0 0.0
  %153 = vmatpush1.msra.mxu0 0.0
  %154 = vmatprep.subr.mxu0 0.0
  %155 = vmatpush1.msra.mxu0 0.0
  %156 = vmatprep.subr.mxu0 0.0
  %157 = vmatpush1.msra.mxu0 0.0
  %158 = vmatprep.subr.mxu0 0.0
  %159 = vmatpush1.msra.mxu0 0.0
  %160 = vmatprep.subr.mxu0 0.0
  %161 = vmatpush1.msra.mxu0 0.0
  %162 = vmatprep.subr.mxu0 0.0
  %163 = vmatpush1.msra.mxu0 0.0
  %164 = vmatprep.subr.mxu0 0.0
  %165 = vmatpush1.msra.mxu0 0.0
  %166 = vmatprep.subr.mxu0 0.0
  %167 = vmatpush1.msra.mxu0 0.0
  %168 = vmatprep.subr.mxu0 0.0
  %169 = vmatpush1.msra.mxu0 %v17
  %170 = vmatprep.subr.mxu0 0.0
  %171 = vmatpush1.msra.mxu0 %v16
  %172 = vmatprep.subr.mxu0 0.0
  %173 = vmatpush1.msra.mxu0 %v15
  %174 = vmatprep.subr.mxu0 0.0
  %175 = vmatpush1.msra.mxu0 %v14
  %176 = vmatprep.subr.mxu0 0.0
  %177 = vmatpush2.msra.mxu0 0.0
  %178 = vmatprep.subr.mxu0 0.0
  %179 = vmatpush2.msra.mxu0 0.0
  %180 = vmatprep.subr.mxu0 0.0
  %181 = vmatpush2.msra.mxu0 0.0
  %182 = vmatprep.subr.mxu0 0.0
  %183 = vmatpush2.msra.mxu0 0.0
  %184 = vmatprep.subr.mxu0 0.0
  %185 = vmatpush2.msra.mxu0 0.0
  %186 = vmatprep.subr.mxu0 0.0
  %187 = vmatpush2.msra.mxu0 0.0
  %188 = vmatprep.subr.mxu0 0.0
  %189 = vmatpush2.msra.mxu0 0.0
  %190 = vmatprep.subr.mxu0 0.0
  %191 = vmatpush2.msra.mxu0 0.0
  %192 = vmatprep.subr.mxu0 0.0
  %193 = vmatpush2.msra.mxu0 0.0
  %194 = vmatprep.subr.mxu0 0.0
  %195 = vmatpush2.msra.mxu0 0.0
  %196 = vmatprep.subr.mxu0 0.0
  %197 = vmatpush2.msra.mxu0 0.0
  %198 = vmatprep.subr.mxu0 0.0
  %199 = vmatpush2.msra.mxu0 0.0
  %200 = vmatprep.subr.mxu0 0.0
  %201 = vmatpush2.msra.mxu0 0.0
  %202 = vmatprep.subr.mxu0 0.0
  %203 = vmatpush2.msra.mxu0 0.0
  %204 = vmatprep.subr.mxu0 0.0
  %205 = vmatpush2.msra.mxu0 0.0
  %206 = vmatprep.subr.mxu0 0.0
  %207 = vmatpush2.msra.mxu0 0.0
  %208 = vmatprep.mubr.f32.mxu0 0.0
  %209 = vmatmul.mubr.f32.gmra.mxu0 %v133
  %v210 = vpop.f32.mrf.mxu0
  %v211 = vadd.f32 0.0, %v210
  %v212 = vpop.f32.mrf.mxu0
  %213 = vmatprep.mubr.f32.mxu0 0.0
  %214 = vmatmul.mubr.f32.gmra.mxu0 %v136
  %v215 = vpop.f32.mrf.mxu0
  %v216 = vadd.f32 0.0, %v215
  %v217 = vpop.f32.mrf.mxu0
  %218 = vmatprep.mubr.f32.mxu0 0.0
  %219 = vmatmul.mubr.f32.gmra.mxu0 %v139
  %v220 = vpop.f32.mrf.mxu0
  %v221 = vadd.f32 0.0, %v220
  %v222 = vpop.f32.mrf.mxu0
  %223 = vmatprep.mubr.f32.mxu0 0.0
  %224 = vmatmul.mubr.f32.gmra.mxu0 %v142
  %v225 = vpop.f32.mrf.mxu0
  %v226 = vadd.f32 0.0, %v225
  %v227 = vpop.f32.mrf.mxu0
  %228 = vdwg.mxu0
  %229 = vmatprep.subr.mxu0 0.0
  %230 = vmatpush1.msra.mxu0 0.0
  %231 = vmatprep.subr.mxu0 0.0
  %232 = vmatpush1.msra.mxu0 0.0
  %233 = vmatprep.subr.mxu0 0.0
  %234 = vmatpush1.msra.mxu0 0.0
  %235 = vmatprep.subr.mxu0 0.0
  %236 = vmatpush1.msra.mxu0 0.0
  %237 = vmatprep.subr.mxu0 0.0
  %238 = vmatpush1.msra.mxu0 0.0
  %239 = vmatprep.subr.mxu0 0.0
  %240 = vmatpush1.msra.mxu0 0.0
  %241 = vmatprep.subr.mxu0 0.0
  %242 = vmatpush1.msra.mxu0 0.0
  %243 = vmatprep.subr.mxu0 0.0
  %244 = vmatpush1.msra.mxu0 0.0
  %245 = vmatprep.subr.mxu0 0.0
  %246 = vmatpush1.msra.mxu0 0.0
  %247 = vmatprep.subr.mxu0 0.0
  %248 = vmatpush1.msra.mxu0 0.0
  %249 = vmatprep.subr.mxu0 0.0
  %250 = vmatpush1.msra.mxu0 0.0
  %251 = vmatprep.subr.mxu0 0.0
  %252 = vmatpush1.msra.mxu0 0.0
  %253 = vmatprep.subr.mxu0 0.0
  %254 = vmatpush1.msra.mxu0 %v21
  %255 = vmatprep.subr.mxu0 0.0
  %256 = vmatpush1.msra.mxu0 %v20
  %257 = vmatprep.subr.mxu0 0.0
  %258 = vmatpush1.msra.mxu0 %v19
  %259 = vmatprep.subr.mxu0 0.0
  %260 = vmatpush1.msra.mxu0 %v18
  %261 = vmatprep.subr.mxu0 0.0
  %262 = vmatpush2.msra.mxu0 0.0
  %263 = vmatprep.subr.mxu0 0.0
  %264 = vmatpush2.msra.mxu0 0.0
  %265 = vmatprep.subr.mxu0 0.0
  %266 = vmatpush2.msra.mxu0 0.0
  %267 = vmatprep.subr.mxu0 0.0
  %268 = vmatpush2.msra.mxu0 0.0
  %269 = vmatprep.subr.mxu0 0.0
  %270 = vmatpush2.msra.mxu0 0.0
  %271 = vmatprep.subr.mxu0 0.0
  %272 = vmatpush2.msra.mxu0 0.0
  %273 = vmatprep.subr.mxu0 0.0
  %274 = vmatpush2.msra.mxu0 0.0
  %275 = vmatprep.subr.mxu0 0.0
  %276 = vmatpush2.msra.mxu0 0.0
  %277 = vmatprep.subr.mxu0 0.0
  %278 = vmatpush2.msra.mxu0 0.0
  %279 = vmatprep.subr.mxu0 0.0
  %280 = vmatpush2.msra.mxu0 0.0
  %281 = vmatprep.subr.mxu0 0.0
  %282 = vmatpush2.msra.mxu0 0.0
  %283 = vmatprep.subr.mxu0 0.0
  %284 = vmatpush2.msra.mxu0 0.0
  %285 = vmatprep.subr.mxu0 0.0
  %286 = vmatpush2.msra.mxu0 0.0
  %287 = vmatprep.subr.mxu0 0.0
  %288 = vmatpush2.msra.mxu0 0.0
  %289 = vmatprep.subr.mxu0 0.0
  %290 = vmatpush2.msra.mxu0 0.0
  %291 = vmatprep.subr.mxu0 0.0
  %292 = vmatpush2.msra.mxu0 0.0
  %293 = vmatprep.mubr.f32.mxu0 0.0
  %294 = vmatmul.mubr.f32.gmra.mxu0 %v133
  %v295 = vpop.f32.mrf.mxu0
  %v296 = vadd.f32 0.0, %v295
  %v297 = vpop.f32.mrf.mxu0
  %298 = vmatprep.mubr.f32.mxu0 0.0
  %299 = vmatmul.mubr.f32.gmra.mxu0 %v136
  %v300 = vpop.f32.mrf.mxu0
  %v301 = vadd.f32 0.0, %v300
  %v302 = vpop.f32.mrf.mxu0
  %303 = vmatprep.mubr.f32.mxu0 0.0
  %304 = vmatmul.mubr.f32.gmra.mxu0 %v139
  %v305 = vpop.f32.mrf.mxu0
  %v306 = vadd.f32 0.0, %v305
  %v307 = vpop.f32.mrf.mxu0
  %308 = vmatprep.mubr.f32.mxu0 0.0
  %309 = vmatmul.mubr.f32.gmra.mxu0 %v142
  %v310 = vpop.f32.mrf.mxu0
  %v311 = vadd.f32 0.0, %v310
  %v312 = vpop.f32.mrf.mxu0
  %313 = vdwg.mxu0
  %314 = vxpose.xlu0.b32.start [1/16] %v296, 128
  %315 = vxpose.xlu0.b32.cont [2/16] %v301, 128
  %316 = vxpose.xlu0.b32.cont [3/16] %v306, 128
  %317 = vxpose.xlu0.b32.cont [4/16] %v311, 128
  %318 = vxpose.xlu0.b32.cont [5/16] 0.0, 128
  %319 = vxpose.xlu0.b32.cont [6/16] 0.0, 128
  %320 = vxpose.xlu0.b32.cont [7/16] 0.0, 128
  %321 = vxpose.xlu0.b32.cont [8/16] 0.0, 128
  %322 = vxpose.xlu0.b32.cont [9/16] 0.0, 128
  %323 = vxpose.xlu0.b32.cont [10/16] 0.0, 128
  %324 = vxpose.xlu0.b32.cont [11/16] 0.0, 128
  %325 = vxpose.xlu0.b32.cont [12/16] 0.0, 128
  %326 = vxpose.xlu0.b32.cont [13/16] 0.0, 128
  %327 = vxpose.xlu0.b32.cont [14/16] 0.0, 128
  %328 = vxpose.xlu0.b32.cont [15/16] 0.0, 128
  %329 = vxpose.xlu0.b32.end [16/16] 0.0, 128
  %v330 = vpop.trf.xlu0
  %v331 = vpop.trf.xlu0
  %v332 = vpop.trf.xlu0
  %v333 = vpop.trf.xlu0
  %v334 = vpop.trf.xlu0
  %v335 = vpop.trf.xlu0
  %v336 = vpop.trf.xlu0
  %v337 = vpop.trf.xlu0
  %v338 = vpop.trf.xlu0
  %v339 = vpop.trf.xlu0
  %v340 = vpop.trf.xlu0
  %v341 = vpop.trf.xlu0
  %v342 = vpop.trf.xlu0
  %v343 = vpop.trf.xlu0
  %v344 = vpop.trf.xlu0
  %v345 = vpop.trf.xlu0
  %347 = vset.pattern.permute.xlu0 0
  %348 = vperm.xlu0 %347, %v211
  %v349 = vpop.permute.xlu0 %348
  %352 = vset.pattern.permute.xlu0 0
  %353 = vperm.xlu0 %352, %v216
  %v354 = vpop.permute.xlu0 %353
  %357 = vset.pattern.permute.xlu0 0
  %358 = vperm.xlu0 %357, %v221
  %v359 = vpop.permute.xlu0 %358
  %362 = vset.pattern.permute.xlu0 0
  %363 = vperm.xlu0 %362, %v226
  %v364 = vpop.permute.xlu0 %363
  %v366 = vlaneseq
  %v367 = vshrl.u32 %v366, 7
  %v368 = vsub.s32 0, %v367
  %v369 = vrot.slane %v330, %v368
  %v370 = vadd.f32 %v349, %v369
  %v371 = vadd.f32 %v354, %v369
  %v372 = vadd.f32 %v359, %v369
  %v373 = vadd.f32 %v364, %v369
  %vm374 = vcmp.gt.f32.partialorder %v370, 0.0
  %vm375 = vcmp.gt.f32.partialorder %v371, 0.0
  %vm376 = vcmp.gt.f32.partialorder %v372, 0.0
  %vm377 = vcmp.gt.f32.partialorder %v373, 0.0
  %v378 = vmul.f32 %v370, 0.2
  %v379 = vmul.f32 %v371, 0.2
  %v380 = vmul.f32 %v372, 0.2
  %v381 = vmul.f32 %v373, 0.2
  %v382 = vsel %vm374, %v370, %v378
  %v383 = vsel %vm375, %v371, %v379
  %v384 = vsel %vm376, %v372, %v380
  %v385 = vsel %vm377, %v373, %v381
  %v386 = vld [vmem:[%s0 + $0x80] sm:$0xff]
  %v387 = vld [vmem:[%s0 + $0x88] sm:$0xff]
  %v388 = vld [vmem:[%s0 + $0x90] sm:$0xff]
  %v389 = vld [vmem:[%s0 + $0x98] sm:$0xff]
  %v390 = vld [vmem:[%s0 + $0xa0] sm:$0xff]
  %v391 = vld [vmem:[%s0 + $0xa8] sm:$0xff]
  %v392 = vld [vmem:[%s0 + $0xb0] sm:$0xff]
  %v393 = vld [vmem:[%s0 + $0xb8] sm:$0xff]
  %vm394 = vcmp.gt.f32.partialorder %v386, 0.0
  %vm395 = vcmp.gt.f32.partialorder %v387, 0.0
  %vm396 = vcmp.gt.f32.partialorder %v388, 0.0
  %vm397 = vcmp.gt.f32.partialorder %v389, 0.0
  %vm398 = vcmp.gt.f32.partialorder %v390, 0.0
  %vm399 = vcmp.gt.f32.partialorder %v391, 0.0
  %vm400 = vcmp.gt.f32.partialorder %v392, 0.0
  %vm401 = vcmp.gt.f32.partialorder %v393, 0.0
  %v402 = vsel %vm394, %v382, -9e+15
  %v403 = vsel %vm395, %v383, -9e+15
  %v404 = vsel %vm396, %v384, -9e+15
  %v405 = vsel %vm397, %v385, -9e+15
  %v406 = vsel %vm398, %v382, -9e+15
  %v407 = vsel %vm399, %v383, -9e+15
  %v408 = vsel %vm400, %v384, -9e+15
  %v409 = vsel %vm401, %v385, -9e+15
  %v410 = vsel %vm131, %v402, -inf
  %411 = vmax.xlane.f32.xlu0 %v410
  %v412 = vpop.xlane.xlu0 %411
  %v413 = vsel %vm131, %v403, -inf
  %414 = vmax.xlane.f32.xlu0 %v413
  %v415 = vpop.xlane.xlu0 %414
  %v416 = vsel %vm131, %v404, -inf
  %417 = vmax.xlane.f32.xlu0 %v416
  %v418 = vpop.xlane.xlu0 %417
  %v419 = vsel %vm131, %v405, -inf
  %420 = vmax.xlane.f32.xlu0 %v419
  %v421 = vpop.xlane.xlu0 %420
  %v422 = vsel %vm131, %v406, -inf
  %423 = vmax.xlane.f32.xlu0 %v422
  %v424 = vpop.xlane.xlu0 %423
  %v425 = vsel %vm131, %v407, -inf
  %426 = vmax.xlane.f32.xlu0 %v425
  %v427 = vpop.xlane.xlu0 %426
  %v428 = vsel %vm131, %v408, -inf
  %429 = vmax.xlane.f32.xlu0 %v428
  %v430 = vpop.xlane.xlu0 %429
  %v431 = vsel %vm131, %v409, -inf
  %432 = vmax.xlane.f32.xlu0 %v431
  %v433 = vpop.xlane.xlu0 %432
  %v434 = vsub.f32 %v402, %v412
  %v435 = vsub.f32 %v403, %v415
  %v436 = vsub.f32 %v404, %v418
  %v437 = vsub.f32 %v405, %v421
  %v438 = vsub.f32 %v406, %v424
  %v439 = vsub.f32 %v407, %v427
  %v440 = vsub.f32 %v408, %v430
  %v441 = vsub.f32 %v409, %v433
  %v442 = vmul.f32 %v434, 1.442695
  %v443 = vpow.pop %v442
  %v444 = vmul.f32 %v435, 1.442695
  %v445 = vpow.pop %v444
  %v446 = vmul.f32 %v436, 1.442695
  %v447 = vpow.pop %v446
  %v448 = vmul.f32 %v437, 1.442695
  %v449 = vpow.pop %v448
  %v450 = vmul.f32 %v438, 1.442695
  %v451 = vpow.pop %v450
  %v452 = vmul.f32 %v439, 1.442695
  %v453 = vpow.pop %v452
  %v454 = vmul.f32 %v440, 1.442695
  %v455 = vpow.pop %v454
  %v456 = vmul.f32 %v441, 1.442695
  %v457 = vpow.pop %v456
  %v458 = vsel %vm131, %v443, 0.0
  %459 = vadd.xlane.f32.xlu0 %v458
  %v460 = vpop.xlane.xlu0 %459
  %v461 = vsel %vm131, %v445, 0.0
  %462 = vadd.xlane.f32.xlu0 %v461
  %v463 = vpop.xlane.xlu0 %462
  %v464 = vsel %vm131, %v447, 0.0
  %465 = vadd.xlane.f32.xlu0 %v464
  %v466 = vpop.xlane.xlu0 %465
  %v467 = vsel %vm131, %v449, 0.0
  %468 = vadd.xlane.f32.xlu0 %v467
  %v469 = vpop.xlane.xlu0 %468
  %v470 = vsel %vm131, %v451, 0.0
  %471 = vadd.xlane.f32.xlu0 %v470
  %v472 = vpop.xlane.xlu0 %471
  %v473 = vsel %vm131, %v453, 0.0
  %474 = vadd.xlane.f32.xlu0 %v473
  %v475 = vpop.xlane.xlu0 %474
  %v476 = vsel %vm131, %v455, 0.0
  %477 = vadd.xlane.f32.xlu0 %v476
  %v478 = vpop.xlane.xlu0 %477
  %v479 = vsel %vm131, %v457, 0.0
  %480 = vadd.xlane.f32.xlu0 %v479
  %v481 = vpop.xlane.xlu0 %480
  %v482 = vrcp.pop %v460
  %v483 = vmul.f32 %v443, %v482
  %v484 = vrcp.pop %v463
  %v485 = vmul.f32 %v445, %v484
  %v486 = vrcp.pop %v466
  %v487 = vmul.f32 %v447, %v486
  %v488 = vrcp.pop %v469
  %v489 = vmul.f32 %v449, %v488
  %v490 = vrcp.pop %v472
  %v491 = vmul.f32 %v451, %v490
  %v492 = vrcp.pop %v475
  %v493 = vmul.f32 %v453, %v492
  %v494 = vrcp.pop %v478
  %v495 = vmul.f32 %v455, %v494
  %v496 = vrcp.pop %v481
  %v497 = vmul.f32 %v457, %v496
  %v499 = vsel %vm131, %v483, 0
  %v502 = vsel %vm131, %v485, 0
  %v505 = vsel %vm131, %v487, 0
  %v508 = vsel %vm131, %v489, 0
  %v511 = vsel %vm131, %v491, 0
  %v514 = vsel %vm131, %v493, 0
  %v517 = vsel %vm131, %v495, 0
  %v520 = vsel %vm131, %v497, 0
  %522 = vmatprep.subr.mxu0 0.0
  %523 = vmatpush1.msra.mxu0 0.0
  %524 = vmatprep.subr.mxu0 0.0
  %525 = vmatpush1.msra.mxu0 0.0
  %526 = vmatprep.subr.mxu0 0.0
  %527 = vmatpush1.msra.mxu0 0.0
  %528 = vmatprep.subr.mxu0 0.0
  %529 = vmatpush1.msra.mxu0 0.0
  %530 = vmatprep.subr.mxu0 0.0
  %531 = vmatpush1.msra.mxu0 0.0
  %532 = vmatprep.subr.mxu0 0.0
  %533 = vmatpush1.msra.mxu0 0.0
  %534 = vmatprep.subr.mxu0 0.0
  %535 = vmatpush1.msra.mxu0 0.0
  %536 = vmatprep.subr.mxu0 0.0
  %537 = vmatpush1.msra.mxu0 0.0
  %538 = vmatprep.subr.mxu0 0.0
  %539 = vmatpush1.msra.mxu0 0.0
  %540 = vmatprep.subr.mxu0 0.0
  %541 = vmatpush1.msra.mxu0 0.0
  %542 = vmatprep.subr.mxu0 0.0
  %543 = vmatpush1.msra.mxu0 0.0
  %544 = vmatprep.subr.mxu0 0.0
  %545 = vmatpush1.msra.mxu0 0.0
  %546 = vmatprep.subr.mxu0 0.0
  %547 = vmatpush1.msra.mxu0 %v128
  %548 = vmatprep.subr.mxu0 0.0
  %549 = vmatpush1.msra.mxu0 %v123
  %550 = vmatprep.subr.mxu0 0.0
  %551 = vmatpush1.msra.mxu0 %v118
  %552 = vmatprep.subr.mxu0 0.0
  %553 = vmatpush1.msra.mxu0 %v113
  %554 = vmatprep.subr.mxu0 0.0
  %555 = vmatpush2.msra.mxu0 0.0
  %556 = vmatprep.subr.mxu0 0.0
  %557 = vmatpush2.msra.mxu0 0.0
  %558 = vmatprep.subr.mxu0 0.0
  %559 = vmatpush2.msra.mxu0 0.0
  %560 = vmatprep.subr.mxu0 0.0
  %561 = vmatpush2.msra.mxu0 0.0
  %562 = vmatprep.subr.mxu0 0.0
  %563 = vmatpush2.msra.mxu0 0.0
  %564 = vmatprep.subr.mxu0 0.0
  %565 = vmatpush2.msra.mxu0 0.0
  %566 = vmatprep.subr.mxu0 0.0
  %567 = vmatpush2.msra.mxu0 0.0
  %568 = vmatprep.subr.mxu0 0.0
  %569 = vmatpush2.msra.mxu0 0.0
  %570 = vmatprep.subr.mxu0 0.0
  %571 = vmatpush2.msra.mxu0 0.0
  %572 = vmatprep.subr.mxu0 0.0
  %573 = vmatpush2.msra.mxu0 0.0
  %574 = vmatprep.subr.mxu0 0.0
  %575 = vmatpush2.msra.mxu0 0.0
  %576 = vmatprep.subr.mxu0 0.0
  %577 = vmatpush2.msra.mxu0 0.0
  %578 = vmatprep.subr.mxu0 0.0
  %579 = vmatpush2.msra.mxu0 0.0
  %580 = vmatprep.subr.mxu0 0.0
  %581 = vmatpush2.msra.mxu0 0.0
  %582 = vmatprep.subr.mxu0 0.0
  %583 = vmatpush2.msra.mxu0 0.0
  %584 = vmatprep.subr.mxu0 0.0
  %585 = vmatpush2.msra.mxu0 0.0
  %586 = vmatprep.mubr.f32.mxu0 0.0
  %587 = vmatmul.mubr.f32.gmra.mxu0 %v499
  %v588 = vpop.f32.mrf.mxu0
  %v589 = vadd.f32 0.0, %v588
  %v590 = vpop.f32.mrf.mxu0
  %591 = vmatprep.mubr.f32.mxu0 0.0
  %592 = vmatmul.mubr.f32.gmra.mxu0 %v502
  %v593 = vpop.f32.mrf.mxu0
  %v594 = vadd.f32 0.0, %v593
  %v595 = vpop.f32.mrf.mxu0
  %596 = vmatprep.mubr.f32.mxu0 0.0
  %597 = vmatmul.mubr.f32.gmra.mxu0 %v505
  %v598 = vpop.f32.mrf.mxu0
  %v599 = vadd.f32 0.0, %v598
  %v600 = vpop.f32.mrf.mxu0
  %601 = vmatprep.mubr.f32.mxu0 0.0
  %602 = vmatmul.mubr.f32.gmra.mxu0 %v508
  %v603 = vpop.f32.mrf.mxu0
  %v604 = vadd.f32 0.0, %v603
  %v605 = vpop.f32.mrf.mxu0
  %606 = vmatprep.mubr.f32.mxu0 0.0
  %607 = vmatmul.mubr.f32.gmra.mxu0 %v511
  %v608 = vpop.f32.mrf.mxu0
  %v609 = vadd.f32 0.0, %v608
  %v610 = vpop.f32.mrf.mxu0
  %611 = vmatprep.mubr.f32.mxu0 0.0
  %612 = vmatmul.mubr.f32.gmra.mxu0 %v514
  %v613 = vpop.f32.mrf.mxu0
  %v614 = vadd.f32 0.0, %v613
  %v615 = vpop.f32.mrf.mxu0
  %616 = vmatprep.mubr.f32.mxu0 0.0
  %617 = vmatmul.mubr.f32.gmra.mxu0 %v517
  %v618 = vpop.f32.mrf.mxu0
  %v619 = vadd.f32 0.0, %v618
  %v620 = vpop.f32.mrf.mxu0
  %621 = vmatprep.mubr.f32.mxu0 0.0
  %622 = vmatmul.mubr.f32.gmra.mxu0 %v520
  %v623 = vpop.f32.mrf.mxu0
  %v624 = vadd.f32 0.0, %v623
  %v625 = vpop.f32.mrf.mxu0
  %626 = vdwg.mxu0
  %vm627 = vcmp.gt.f32.partialorder %v589, 0.0
  %vm628 = vcmp.gt.f32.partialorder %v594, 0.0
  %vm629 = vcmp.gt.f32.partialorder %v599, 0.0
  %vm630 = vcmp.gt.f32.partialorder %v604, 0.0
  %vm631 = vcmp.gt.f32.partialorder %v609, 0.0
  %vm632 = vcmp.gt.f32.partialorder %v614, 0.0
  %vm633 = vcmp.gt.f32.partialorder %v619, 0.0
  %vm634 = vcmp.gt.f32.partialorder %v624, 0.0
  %v635 = vmin.f32 %v589, 0.0
  %v636 = vmin.f32 %v594, 0.0
  %v637 = vmin.f32 %v599, 0.0
  %v638 = vmin.f32 %v604, 0.0
  %v639 = vmin.f32 %v609, 0.0
  %v640 = vmin.f32 %v614, 0.0
  %v641 = vmin.f32 %v619, 0.0
  %v642 = vmin.f32 %v624, 0.0
  %v643 = vmul.f32 %v635, 1.442695
  %v644 = vpow.pop %v643
  %v645 = vmul.f32 %v636, 1.442695
  %v646 = vpow.pop %v645
  %v647 = vmul.f32 %v637, 1.442695
  %v648 = vpow.pop %v647
  %v649 = vmul.f32 %v638, 1.442695
  %v650 = vpow.pop %v649
  %v651 = vmul.f32 %v639, 1.442695
  %v652 = vpow.pop %v651
  %v653 = vmul.f32 %v640, 1.442695
  %v654 = vpow.pop %v653
  %v655 = vmul.f32 %v641, 1.442695
  %v656 = vpow.pop %v655
  %v657 = vmul.f32 %v642, 1.442695
  %v658 = vpow.pop %v657
  %v659 = vsub.f32 %v644, 1.0
  %v660 = vsub.f32 %v646, 1.0
  %v661 = vsub.f32 %v648, 1.0
  %v662 = vsub.f32 %v650, 1.0
  %v663 = vsub.f32 %v652, 1.0
  %v664 = vsub.f32 %v654, 1.0
  %v665 = vsub.f32 %v656, 1.0
  %v666 = vsub.f32 %v658, 1.0
  %v667 = vsel %vm627, %v589, %v659
  %v668 = vsel %vm628, %v594, %v660
  %v669 = vsel %vm629, %v599, %v661
  %v670 = vsel %vm630, %v604, %v662
  %v671 = vsel %vm631, %v609, %v663
  %v672 = vsel %vm632, %v614, %v664
  %v673 = vsel %vm633, %v619, %v665
  %v674 = vsel %vm634, %v624, %v666
  %vm675 = vcmp.ne.f32.partialorder %v667, %v667
  %vm676 = vcmp.ne.f32.partialorder %v668, %v668
  %vm677 = vcmp.ne.f32.partialorder %v669, %v669
  %vm678 = vcmp.ne.f32.partialorder %v670, %v670
  %vm679 = vcmp.ne.f32.partialorder %v671, %v671
  %vm680 = vcmp.ne.f32.partialorder %v672, %v672
  %vm681 = vcmp.ne.f32.partialorder %v673, %v673
  %vm682 = vcmp.ne.f32.partialorder %v674, %v674
  %v683 = vsel %vm675, 0.0, %v667
  %v684 = vsel %vm676, 0.0, %v668
  %v685 = vsel %vm677, 0.0, %v669
  %v686 = vsel %vm678, 0.0, %v670
  %v687 = vsel %vm679, 0.0, %v671
  %v688 = vsel %vm680, 0.0, %v672
  %v689 = vsel %vm681, 0.0, %v673
  %v690 = vsel %vm682, 0.0, %v674
  %v691 = vmax.f32 %v683, -3.4028235e+38
  %v692 = vmax.f32 %v684, -3.4028235e+38
  %v693 = vmax.f32 %v685, -3.4028235e+38
  %v694 = vmax.f32 %v686, -3.4028235e+38
  %v695 = vmax.f32 %v687, -3.4028235e+38
  %v696 = vmax.f32 %v688, -3.4028235e+38
  %v697 = vmax.f32 %v689, -3.4028235e+38
  %v698 = vmax.f32 %v690, -3.4028235e+38
  %v699 = vmin.f32 %v691, 3.4028235e+38
  %v700 = vmin.f32 %v692, 3.4028235e+38
  %v701 = vmin.f32 %v693, 3.4028235e+38
  %v702 = vmin.f32 %v694, 3.4028235e+38
  %v703 = vmin.f32 %v695, 3.4028235e+38
  %v704 = vmin.f32 %v696, 3.4028235e+38
  %v705 = vmin.f32 %v697, 3.4028235e+38
  %v706 = vmin.f32 %v698, 3.4028235e+38
  %v707 = vld [vmem:[%s1 + $0x58] sm:$0xff]
  %v708 = vld [vmem:[%s1 + $0x60] sm:$0xff]
  %v709 = vld [vmem:[%s1 + $0x68] sm:$0xff]
  %v710 = vld [vmem:[%s1 + $0x70] sm:$0xff]
  %v711 = vld [vmem:[%s1 + $0x78] sm:$0xff]
  %v712 = vld [vmem:[%s1 + $0x80] sm:$0xff]
  %v713 = vld [vmem:[%s1 + $0x88] sm:$0xff]
  %v714 = vld [vmem:[%s1 + $0x90] sm:$0xff]
  %v716 = vsel %vm131, %v703, 0
  %v719 = vsel %vm131, %v704, 0
  %v722 = vsel %vm131, %v705, 0
  %v725 = vsel %vm131, %v706, 0
  %727 = vmatprep.subr.mxu0 0.0
  %728 = vmatpush1.msra.mxu0 0.0
  %729 = vmatprep.subr.mxu0 0.0
  %730 = vmatpush1.msra.mxu0 0.0
  %731 = vmatprep.subr.mxu0 0.0
  %732 = vmatpush1.msra.mxu0 0.0
  %733 = vmatprep.subr.mxu0 0.0
  %734 = vmatpush1.msra.mxu0 0.0
  %735 = vmatprep.subr.mxu0 0.0
  %736 = vmatpush1.msra.mxu0 0.0
  %737 = vmatprep.subr.mxu0 0.0
  %738 = vmatpush1.msra.mxu0 0.0
  %739 = vmatprep.subr.mxu0 0.0
  %740 = vmatpush1.msra.mxu0 0.0
  %741 = vmatprep.subr.mxu0 0.0
  %742 = vmatpush1.msra.mxu0 0.0
  %743 = vmatprep.subr.mxu0 0.0
  %744 = vmatpush1.msra.mxu0 0.0
  %745 = vmatprep.subr.mxu0 0.0
  %746 = vmatpush1.msra.mxu0 0.0
  %747 = vmatprep.subr.mxu0 0.0
  %748 = vmatpush1.msra.mxu0 0.0
  %749 = vmatprep.subr.mxu0 0.0
  %750 = vmatpush1.msra.mxu0 0.0
  %751 = vmatprep.subr.mxu0 0.0
  %752 = vmatpush1.msra.mxu0 %v714
  %753 = vmatprep.subr.mxu0 0.0
  %754 = vmatpush1.msra.mxu0 %v713
  %755 = vmatprep.subr.mxu0 0.0
  %756 = vmatpush1.msra.mxu0 %v712
  %757 = vmatprep.subr.mxu0 0.0
  %758 = vmatpush1.msra.mxu0 %v711
  %759 = vmatprep.subr.mxu0 0.0
  %760 = vmatpush2.msra.mxu0 0.0
  %761 = vmatprep.subr.mxu0 0.0
  %762 = vmatpush2.msra.mxu0 0.0
  %763 = vmatprep.subr.mxu0 0.0
  %764 = vmatpush2.msra.mxu0 0.0
  %765 = vmatprep.subr.mxu0 0.0
  %766 = vmatpush2.msra.mxu0 0.0
  %767 = vmatprep.subr.mxu0 0.0
  %768 = vmatpush2.msra.mxu0 0.0
  %769 = vmatprep.subr.mxu0 0.0
  %770 = vmatpush2.msra.mxu0 0.0
  %771 = vmatprep.subr.mxu0 0.0
  %772 = vmatpush2.msra.mxu0 0.0
  %773 = vmatprep.subr.mxu0 0.0
  %774 = vmatpush2.msra.mxu0 0.0
  %775 = vmatprep.subr.mxu0 0.0
  %776 = vmatpush2.msra.mxu0 0.0
  %777 = vmatprep.subr.mxu0 0.0
  %778 = vmatpush2.msra.mxu0 0.0
  %779 = vmatprep.subr.mxu0 0.0
  %780 = vmatpush2.msra.mxu0 0.0
  %781 = vmatprep.subr.mxu0 0.0
  %782 = vmatpush2.msra.mxu0 0.0
  %783 = vmatprep.subr.mxu0 0.0
  %784 = vmatpush2.msra.mxu0 0.0
  %785 = vmatprep.subr.mxu0 0.0
  %786 = vmatpush2.msra.mxu0 0.0
  %787 = vmatprep.subr.mxu0 0.0
  %788 = vmatpush2.msra.mxu0 0.0
  %789 = vmatprep.subr.mxu0 0.0
  %790 = vmatpush2.msra.mxu0 0.0
  %791 = vmatprep.mubr.f32.mxu0 0.0
  %792 = vmatmul.mubr.f32.gmra.mxu0 %v716
  %v793 = vpop.f32.mrf.mxu0
  %v794 = vadd.f32 0.0, %v793
  %v795 = vpop.f32.mrf.mxu0
  %796 = vmatprep.mubr.f32.mxu0 0.0
  %797 = vmatmul.mubr.f32.gmra.mxu0 %v719
  %v798 = vpop.f32.mrf.mxu0
  %v799 = vadd.f32 0.0, %v798
  %v800 = vpop.f32.mrf.mxu0
  %801 = vmatprep.mubr.f32.mxu0 0.0
  %802 = vmatmul.mubr.f32.gmra.mxu0 %v722
  %v803 = vpop.f32.mrf.mxu0
  %v804 = vadd.f32 0.0, %v803
  %v805 = vpop.f32.mrf.mxu0
  %806 = vmatprep.mubr.f32.mxu0 0.0
  %807 = vmatmul.mubr.f32.gmra.mxu0 %v725
  %v808 = vpop.f32.mrf.mxu0
  %v809 = vadd.f32 0.0, %v808
  %v810 = vpop.f32.mrf.mxu0
  %811 = vdwg.mxu0
  %v813 = vsel %vm131, %v699, 0
  %v816 = vsel %vm131, %v700, 0
  %v819 = vsel %vm131, %v701, 0
  %v822 = vsel %vm131, %v702, 0
  %824 = vmatprep.subr.mxu0 0.0
  %825 = vmatpush1.msra.mxu0 0.0
  %826 = vmatprep.subr.mxu0 0.0
  %827 = vmatpush1.msra.mxu0 0.0
  %828 = vmatprep.subr.mxu0 0.0
  %829 = vmatpush1.msra.mxu0 0.0
  %830 = vmatprep.subr.mxu0 0.0
  %831 = vmatpush1.msra.mxu0 0.0
  %832 = vmatprep.subr.mxu0 0.0
  %833 = vmatpush1.msra.mxu0 0.0
  %834 = vmatprep.subr.mxu0 0.0
  %835 = vmatpush1.msra.mxu0 0.0
  %836 = vmatprep.subr.mxu0 0.0
  %837 = vmatpush1.msra.mxu0 0.0
  %838 = vmatprep.subr.mxu0 0.0
  %839 = vmatpush1.msra.mxu0 0.0
  %840 = vmatprep.subr.mxu0 0.0
  %841 = vmatpush1.msra.mxu0 0.0
  %842 = vmatprep.subr.mxu0 0.0
  %843 = vmatpush1.msra.mxu0 0.0
  %844 = vmatprep.subr.mxu0 0.0
  %845 = vmatpush1.msra.mxu0 0.0
  %846 = vmatprep.subr.mxu0 0.0
  %847 = vmatpush1.msra.mxu0 0.0
  %848 = vmatprep.subr.mxu0 0.0
  %849 = vmatpush1.msra.mxu0 %v710
  %850 = vmatprep.subr.mxu0 0.0
  %851 = vmatpush1.msra.mxu0 %v709
  %852 = vmatprep.subr.mxu0 0.0
  %853 = vmatpush1.msra.mxu0 %v708
  %854 = vmatprep.subr.mxu0 0.0
  %855 = vmatpush1.msra.mxu0 %v707
  %856 = vmatprep.subr.mxu0 0.0
  %857 = vmatpush2.msra.mxu0 0.0
  %858 = vmatprep.subr.mxu0 0.0
  %859 = vmatpush2.msra.mxu0 0.0
  %860 = vmatprep.subr.mxu0 0.0
  %861 = vmatpush2.msra.mxu0 0.0
  %862 = vmatprep.subr.mxu0 0.0
  %863 = vmatpush2.msra.mxu0 0.0
  %864 = vmatprep.subr.mxu0 0.0
  %865 = vmatpush2.msra.mxu0 0.0
  %866 = vmatprep.subr.mxu0 0.0
  %867 = vmatpush2.msra.mxu0 0.0
  %868 = vmatprep.subr.mxu0 0.0
  %869 = vmatpush2.msra.mxu0 0.0
  %870 = vmatprep.subr.mxu0 0.0
  %871 = vmatpush2.msra.mxu0 0.0
  %872 = vmatprep.subr.mxu0 0.0
  %873 = vmatpush2.msra.mxu0 0.0
  %874 = vmatprep.subr.mxu0 0.0
  %875 = vmatpush2.msra.mxu0 0.0
  %876 = vmatprep.subr.mxu0 0.0
  %877 = vmatpush2.msra.mxu0 0.0
  %878 = vmatprep.subr.mxu0 0.0
  %879 = vmatpush2.msra.mxu0 0.0
  %880 = vmatprep.subr.mxu0 0.0
  %881 = vmatpush2.msra.mxu0 0.0
  %882 = vmatprep.subr.mxu0 0.0
  %883 = vmatpush2.msra.mxu0 0.0
  %884 = vmatprep.subr.mxu0 0.0
  %885 = vmatpush2.msra.mxu0 0.0
  %886 = vmatprep.subr.mxu0 0.0
  %887 = vmatpush2.msra.mxu0 0.0
  %888 = vmatprep.mubr.f32.mxu0 0.0
  %889 = vmatmul.mubr.f32.gmra.mxu0 %v813
  %v890 = vpop.f32.mrf.mxu0
  %v891 = vadd.f32 %v794, %v890
  %v892 = vpop.f32.mrf.mxu0
  %893 = vmatprep.mubr.f32.mxu0 0.0
  %894 = vmatmul.mubr.f32.gmra.mxu0 %v816
  %v895 = vpop.f32.mrf.mxu0
  %v896 = vadd.f32 %v799, %v895
  %v897 = vpop.f32.mrf.mxu0
  %898 = vmatprep.mubr.f32.mxu0 0.0
  %899 = vmatmul.mubr.f32.gmra.mxu0 %v819
  %v900 = vpop.f32.mrf.mxu0
  %v901 = vadd.f32 %v804, %v900
  %v902 = vpop.f32.mrf.mxu0
  %903 = vmatprep.mubr.f32.mxu0 0.0
  %904 = vmatmul.mubr.f32.gmra.mxu0 %v822
  %v905 = vpop.f32.mrf.mxu0
  %v906 = vadd.f32 %v809, %v905
  %v907 = vpop.f32.mrf.mxu0
  %908 = vdwg.mxu0
  %v909 = vld [vmem:[%s1 + $0x98] sm:$0x1]
  %v910 = vlaneseq
  %v911 = vshrl.u32 %v910, 7
  %v912 = vsub.s32 0, %v911
  %v913 = vrot.slane %v909, %v912
  %v914 = vadd.f32 %v891, %v913
  %v915 = vadd.f32 %v896, %v913
  %v916 = vadd.f32 %v901, %v913
  %v917 = vadd.f32 %v906, %v913
  %v918 = vld [vmem:[%s0 + $0xc0] sm:$0xff]
  %v920 = vsel %vm131, %v918, 0
  %922 = vmatprep.subr.mxu0 0.0
  %923 = vmatpush1.msra.mxu0 0.0
  %924 = vmatprep.subr.mxu0 0.0
  %925 = vmatpush1.msra.mxu0 0.0
  %926 = vmatprep.subr.mxu0 0.0
  %927 = vmatpush1.msra.mxu0 0.0
  %928 = vmatprep.subr.mxu0 0.0
  %929 = vmatpush1.msra.mxu0 0.0
  %930 = vmatprep.subr.mxu0 0.0
  %931 = vmatpush1.msra.mxu0 0.0
  %932 = vmatprep.subr.mxu0 0.0
  %933 = vmatpush1.msra.mxu0 0.0
  %934 = vmatprep.subr.mxu0 0.0
  %935 = vmatpush1.msra.mxu0 0.0
  %936 = vmatprep.subr.mxu0 0.0
  %937 = vmatpush1.msra.mxu0 0.0
  %938 = vmatprep.subr.mxu0 0.0
  %939 = vmatpush1.msra.mxu0 0.0
  %940 = vmatprep.subr.mxu0 0.0
  %941 = vmatpush1.msra.mxu0 0.0
  %942 = vmatprep.subr.mxu0 0.0
  %943 = vmatpush1.msra.mxu0 0.0
  %944 = vmatprep.subr.mxu0 0.0
  %945 = vmatpush1.msra.mxu0 0.0
  %946 = vmatprep.subr.mxu0 0.0
  %947 = vmatpush1.msra.mxu0 %v917
  %948 = vmatprep.subr.mxu0 0.0
  %949 = vmatpush1.msra.mxu0 %v916
  %950 = vmatprep.subr.mxu0 0.0
  %951 = vmatpush1.msra.mxu0 %v915
  %952 = vmatprep.subr.mxu0 0.0
  %953 = vmatpush1.msra.mxu0 %v914
  %954 = vmatprep.subr.mxu0 0.0
  %955 = vmatpush2.msra.mxu0 0.0
  %956 = vmatprep.subr.mxu0 0.0
  %957 = vmatpush2.msra.mxu0 0.0
  %958 = vmatprep.subr.mxu0 0.0
  %959 = vmatpush2.msra.mxu0 0.0
  %960 = vmatprep.subr.mxu0 0.0
  %961 = vmatpush2.msra.mxu0 0.0
  %962 = vmatprep.subr.mxu0 0.0
  %963 = vmatpush2.msra.mxu0 0.0
  %964 = vmatprep.subr.mxu0 0.0
  %965 = vmatpush2.msra.mxu0 0.0
  %966 = vmatprep.subr.mxu0 0.0
  %967 = vmatpush2.msra.mxu0 0.0
  %968 = vmatprep.subr.mxu0 0.0
  %969 = vmatpush2.msra.mxu0 0.0
  %970 = vmatprep.subr.mxu0 0.0
  %971 = vmatpush2.msra.mxu0 0.0
  %972 = vmatprep.subr.mxu0 0.0
  %973 = vmatpush2.msra.mxu0 0.0
  %974 = vmatprep.subr.mxu0 0.0
  %975 = vmatpush2.msra.mxu0 0.0
  %976 = vmatprep.subr.mxu0 0.0
  %977 = vmatpush2.msra.mxu0 0.0
  %978 = vmatprep.subr.mxu0 0.0
  %979 = vmatpush2.msra.mxu0 0.0
  %980 = vmatprep.subr.mxu0 0.0
  %981 = vmatpush2.msra.mxu0 0.0
  %982 = vmatprep.subr.mxu0 0.0
  %983 = vmatpush2.msra.mxu0 0.0
  %984 = vmatprep.subr.mxu0 0.0
  %985 = vmatpush2.msra.mxu0 0.0
  %986 = vmatprep.mubr.f32.mxu0 0.0
  %987 = vmatmul.mubr.f32.gmra.mxu0 %v920
  %v988 = vpop.f32.mrf.mxu0
  %v989 = vadd.f32 0.0, %v988
  %v990 = vpop.f32.mrf.mxu0
  %991 = vdwg.mxu0
  %v992 = vld [vmem:[%s0] sm:$0xff]
  %v993 = vld [vmem:[%s0 + $0x8] sm:$0xff]
  %v994 = vld [vmem:[%s0 + $0x10] sm:$0xff]
  %v995 = vld [vmem:[%s0 + $0x18] sm:$0xff]
  %v996 = vld [vmem:[%s0 + $0x20] sm:$0xff]
  %v997 = vld [vmem:[%s0 + $0x28] sm:$0xff]
  %v998 = vld [vmem:[%s0 + $0x30] sm:$0xff]
  %v999 = vld [vmem:[%s0 + $0x38] sm:$0xff]
  %v1000 = vld [vmem:[%s2] sm:$0xff]
  %v1001 = vld [vmem:[%s2 + $0x8] sm:$0xff]
  %v1002 = vld [vmem:[%s2 + $0x10] sm:$0x1]
  %v1003 = vld [vmem:[%s2 + $0x18] sm:$0x1]
  %s1004 = scalar_lea.vmem %s2, 160
  %v1005 = vld [vmem:[%s1004] ss:$8 sm:$0x3]
  %v1007 = vlaneseq
  %v1008 = vshrl.u32 %v1007, 7
  %v1009 = vsub.s32 0, %v1008
  %v1010 = vrot.slane %v1005, %v1009
  %v1011 = vlaneseq
  %v1012 = vshrl.u32 %v1011, 7
  %v1013 = vsub.s32 1, %v1012
  %v1014 = vrot.slane %v1005, %v1013
  %vm1017 = vcmask 72704
  %v1019 = vsel %vm1017, %v992, 0
  %v1022 = vsel %vm1017, %v993, 0
  %v1025 = vsel %vm1017, %v994, 0
  %v1028 = vsel %vm1017, %v995, 0
  %v1031 = vsel %vm1017, %v996, 0
  %v1034 = vsel %vm1017, %v997, 0
  %v1037 = vsel %vm1017, %v998, 0
  %v1040 = vsel %vm1017, %v999, 0
  %vm1042 = vcmask 1040384
  %v1044 = vsel %vm1042, %v1002, 0
  %v1047 = vsel %vm1042, %v1003, 0
  %1049 = vmatprep.subr.mxu0 0.0
  %1050 = vmatpush1.msra.mxu0 0.0
  %1051 = vmatprep.subr.mxu0 0.0
  %1052 = vmatpush1.msra.mxu0 0.0
  %1053 = vmatprep.subr.mxu0 0.0
  %1054 = vmatpush1.msra.mxu0 0.0
  %1055 = vmatprep.subr.mxu0 0.0
  %1056 = vmatpush1.msra.mxu0 0.0
  %1057 = vmatprep.subr.mxu0 0.0
  %1058 = vmatpush1.msra.mxu0 0.0
  %1059 = vmatprep.subr.mxu0 0.0
  %1060 = vmatpush1.msra.mxu0 0.0
  %1061 = vmatprep.subr.mxu0 0.0
  %1062 = vmatpush1.msra.mxu0 0.0
  %1063 = vmatprep.subr.mxu0 0.0
  %1064 = vmatpush1.msra.mxu0 0.0
  %1065 = vmatprep.subr.mxu0 0.0
  %1066 = vmatpush1.msra.mxu0 0.0
  %1067 = vmatprep.subr.mxu0 0.0
  %1068 = vmatpush1.msra.mxu0 0.0
  %1069 = vmatprep.subr.mxu0 0.0
  %1070 = vmatpush1.msra.mxu0 0.0
  %1071 = vmatprep.subr.mxu0 0.0
  %1072 = vmatpush1.msra.mxu0 0.0
  %1073 = vmatprep.subr.mxu0 0.0
  %1074 = vmatpush1.msra.mxu0 0.0
  %1075 = vmatprep.subr.mxu0 0.0
  %1076 = vmatpush1.msra.mxu0 0.0
  %1077 = vmatprep.subr.mxu0 %v1047
  %1078 = vmatpush1.msra.mxu0 %v1044
  %1079 = vmatprep.subr.mxu0 %v1001
  %1080 = vmatpush1.msra.mxu0 %v1000
  %1081 = vmatprep.subr.mxu0 0.0
  %1082 = vmatpush2.msra.mxu0 0.0
  %1083 = vmatprep.subr.mxu0 0.0
  %1084 = vmatpush2.msra.mxu0 0.0
  %1085 = vmatprep.subr.mxu0 0.0
  %1086 = vmatpush2.msra.mxu0 0.0
  %1087 = vmatprep.subr.mxu0 0.0
  %1088 = vmatpush2.msra.mxu0 0.0
  %1089 = vmatprep.subr.mxu0 0.0
  %1090 = vmatpush2.msra.mxu0 0.0
  %1091 = vmatprep.subr.mxu0 0.0
  %1092 = vmatpush2.msra.mxu0 0.0
  %1093 = vmatprep.subr.mxu0 0.0
  %1094 = vmatpush2.msra.mxu0 0.0
  %1095 = vmatprep.subr.mxu0 0.0
  %1096 = vmatpush2.msra.mxu0 0.0
  %1097 = vmatprep.subr.mxu0 0.0
  %1098 = vmatpush2.msra.mxu0 0.0
  %1099 = vmatprep.subr.mxu0 0.0
  %1100 = vmatpush2.msra.mxu0 0.0
  %1101 = vmatprep.subr.mxu0 0.0
  %1102 = vmatpush2.msra.mxu0 0.0
  %1103 = vmatprep.subr.mxu0 0.0
  %1104 = vmatpush2.msra.mxu0 0.0
  %1105 = vmatprep.subr.mxu0 0.0
  %1106 = vmatpush2.msra.mxu0 0.0
  %1107 = vmatprep.subr.mxu0 0.0
  %1108 = vmatpush2.msra.mxu0 0.0
  %1109 = vmatprep.subr.mxu0 0.0
  %1110 = vmatpush2.msra.mxu0 0.0
  %1111 = vmatprep.subr.mxu0 0.0
  %1112 = vmatpush2.msra.mxu0 0.0
  %1113 = vmatprep.mubr.f32.mxu0 0.0
  %1114 = vmatmul.mubr.f32.gmra.mxu0 %v1019
  %v1115 = vpop.f32.mrf.mxu0
  %v1116 = vadd.f32 %v1010, %v1115
  %v1117 = vpop.f32.mrf.mxu0
  %v1118 = vadd.f32 %v1014, %v1117
  %1119 = vmatprep.mubr.f32.mxu0 0.0
  %1120 = vmatmul.mubr.f32.gmra.mxu0 %v1022
  %v1121 = vpop.f32.mrf.mxu0
  %v1122 = vadd.f32 %v1010, %v1121
  %v1123 = vpop.f32.mrf.mxu0
  %v1124 = vadd.f32 %v1014, %v1123
  %1125 = vmatprep.mubr.f32.mxu0 0.0
  %1126 = vmatmul.mubr.f32.gmra.mxu0 %v1025
  %v1127 = vpop.f32.mrf.mxu0
  %v1128 = vadd.f32 %v1010, %v1127
  %v1129 = vpop.f32.mrf.mxu0
  %v1130 = vadd.f32 %v1014, %v1129
  %1131 = vmatprep.mubr.f32.mxu0 0.0
  %1132 = vmatmul.mubr.f32.gmra.mxu0 %v1028
  %v1133 = vpop.f32.mrf.mxu0
  %v1134 = vadd.f32 %v1010, %v1133
  %v1135 = vpop.f32.mrf.mxu0
  %v1136 = vadd.f32 %v1014, %v1135
  %1137 = vmatprep.mubr.f32.mxu0 0.0
  %1138 = vmatmul.mubr.f32.gmra.mxu0 %v1031
  %v1139 = vpop.f32.mrf.mxu0
  %v1140 = vadd.f32 %v1010, %v1139
  %v1141 = vpop.f32.mrf.mxu0
  %v1142 = vadd.f32 %v1014, %v1141
  %1143 = vmatprep.mubr.f32.mxu0 0.0
  %1144 = vmatmul.mubr.f32.gmra.mxu0 %v1034
  %v1145 = vpop.f32.mrf.mxu0
  %v1146 = vadd.f32 %v1010, %v1145
  %v1147 = vpop.f32.mrf.mxu0
  %v1148 = vadd.f32 %v1014, %v1147
  %1149 = vmatprep.mubr.f32.mxu0 0.0
  %1150 = vmatmul.mubr.f32.gmra.mxu0 %v1037
  %v1151 = vpop.f32.mrf.mxu0
  %v1152 = vadd.f32 %v1010, %v1151
  %v1153 = vpop.f32.mrf.mxu0
  %v1154 = vadd.f32 %v1014, %v1153
  %1155 = vmatprep.mubr.f32.mxu0 0.0
  %1156 = vmatmul.mubr.f32.gmra.mxu0 %v1040
  %v1157 = vpop.f32.mrf.mxu0
  %v1158 = vadd.f32 %v1010, %v1157
  %v1159 = vpop.f32.mrf.mxu0
  %v1160 = vadd.f32 %v1014, %v1159
  %1161 = vdwg.mxu0
  %v1162 = vld [vmem:[%s2 + $0x20] sm:$0xff]
  %v1163 = vld [vmem:[%s2 + $0x28] sm:$0xff]
  %v1164 = vld [vmem:[%s2 + $0x30] sm:$0xff]
  %v1165 = vld [vmem:[%s2 + $0x38] sm:$0xff]
  %v1166 = vld [vmem:[%s2 + $0x40] sm:$0xff]
  %v1167 = vld [vmem:[%s2 + $0x48] sm:$0xff]
  %v1168 = vld [vmem:[%s2 + $0x50] sm:$0xff]
  %v1169 = vld [vmem:[%s2 + $0x58] sm:$0xff]
  %v1170 = vld [vmem:[%s2 + $0x60] sm:$0xff]
  %v1171 = vld [vmem:[%s2 + $0x68] sm:$0xff]
  %v1172 = vld [vmem:[%s2 + $0x70] sm:$0xff]
  %v1173 = vld [vmem:[%s2 + $0x78] sm:$0xff]
  %v1174 = vld [vmem:[%s2 + $0x80] sm:$0xff]
  %v1175 = vld [vmem:[%s2 + $0x88] sm:$0xff]
  %v1176 = vld [vmem:[%s2 + $0x90] sm:$0xff]
  %v1177 = vld [vmem:[%s2 + $0x98] sm:$0xff]
  %vm1178 = vcmask 523264
  %v1180 = vsel %vm1178, 0.0, 0
  %1182 = vmatprep.subr.mxu0 0.0
  %1183 = vmatpush1.msra.mxu0 0.0
  %1184 = vmatprep.subr.mxu0 0.0
  %1185 = vmatpush1.msra.mxu0 0.0
  %1186 = vmatprep.subr.mxu0 0.0
  %1187 = vmatpush1.msra.mxu0 0.0
  %1188 = vmatprep.subr.mxu0 0.0
  %1189 = vmatpush1.msra.mxu0 0.0
  %1190 = vmatprep.subr.mxu0 0.0
  %1191 = vmatpush1.msra.mxu0 0.0
  %1192 = vmatprep.subr.mxu0 0.0
  %1193 = vmatpush1.msra.mxu0 0.0
  %1194 = vmatprep.subr.mxu0 0.0
  %1195 = vmatpush1.msra.mxu0 0.0
  %1196 = vmatprep.subr.mxu0 0.0
  %1197 = vmatpush1.msra.mxu0 0.0
  %1198 = vmatprep.subr.mxu0 %v1177
  %1199 = vmatpush1.msra.mxu0 %v1176
  %1200 = vmatprep.subr.mxu0 %v1175
  %1201 = vmatpush1.msra.mxu0 %v1174
  %1202 = vmatprep.subr.mxu0 %v1173
  %1203 = vmatpush1.msra.mxu0 %v1172
  %1204 = vmatprep.subr.mxu0 %v1171
  %1205 = vmatpush1.msra.mxu0 %v1170
  %1206 = vmatprep.subr.mxu0 %v1169
  %1207 = vmatpush1.msra.mxu0 %v1168
  %1208 = vmatprep.subr.mxu0 %v1167
  %1209 = vmatpush1.msra.mxu0 %v1166
  %1210 = vmatprep.subr.mxu0 %v1165
  %1211 = vmatpush1.msra.mxu0 %v1164
  %1212 = vmatprep.subr.mxu0 %v1163
  %1213 = vmatpush1.msra.mxu0 %v1162
  %1214 = vmatprep.subr.mxu0 0.0
  %1215 = vmatpush2.msra.mxu0 0.0
  %1216 = vmatprep.subr.mxu0 0.0
  %1217 = vmatpush2.msra.mxu0 0.0
  %1218 = vmatprep.subr.mxu0 0.0
  %1219 = vmatpush2.msra.mxu0 0.0
  %1220 = vmatprep.subr.mxu0 0.0
  %1221 = vmatpush2.msra.mxu0 0.0
  %1222 = vmatprep.subr.mxu0 0.0
  %1223 = vmatpush2.msra.mxu0 0.0
  %1224 = vmatprep.subr.mxu0 0.0
  %1225 = vmatpush2.msra.mxu0 0.0
  %1226 = vmatprep.subr.mxu0 0.0
  %1227 = vmatpush2.msra.mxu0 0.0
  %1228 = vmatprep.subr.mxu0 0.0
  %1229 = vmatpush2.msra.mxu0 0.0
  %1230 = vmatprep.subr.mxu0 0.0
  %1231 = vmatpush2.msra.mxu0 0.0
  %1232 = vmatprep.subr.mxu0 0.0
  %1233 = vmatpush2.msra.mxu0 0.0
  %1234 = vmatprep.subr.mxu0 0.0
  %1235 = vmatpush2.msra.mxu0 0.0
  %1236 = vmatprep.subr.mxu0 0.0
  %1237 = vmatpush2.msra.mxu0 0.0
  %1238 = vmatprep.subr.mxu0 0.0
  %1239 = vmatpush2.msra.mxu0 0.0
  %1240 = vmatprep.subr.mxu0 0.0
  %1241 = vmatpush2.msra.mxu0 0.0
  %1242 = vmatprep.subr.mxu0 0.0
  %1243 = vmatpush2.msra.mxu0 0.0
  %1244 = vmatprep.subr.mxu0 0.0
  %1245 = vmatpush2.msra.mxu0 0.0
  %1246 = vmatprep.mubr.f32.mxu0 0.0
  %1247 = vmatmul.mubr.f32.gmra.mxu0 %v1180
  %v1248 = vpop.f32.mrf.mxu0
  %v1249 = vadd.f32 0.0, %v1248
  %v1250 = vpop.f32.mrf.mxu0
  %v1251 = vadd.f32 0.0, %v1250
  %1252 = vdwg.mxu0
  %v1253 = vadd.f32 %v1116, %v1249
  %v1254 = vadd.f32 %v1118, %v1251
  %v1255 = vxor.u32 %v1253, 2147483648
  %v1256 = vxor.u32 %v1254, 2147483648
  %v1257 = vmul.f32 %v1255, 1.442695
  %v1258 = vpow.pop %v1257
  %v1259 = vmul.f32 %v1256, 1.442695
  %v1260 = vpow.pop %v1259
  %v1261 = vadd.f32 %v1258, 1.0
  %v1262 = vadd.f32 %v1260, 1.0
  %v1263 = vrcp.pop %v1261
  %v1264 = vmul.f32 1.0, %v1263
  %v1265 = vrcp.pop %v1262
  %v1266 = vmul.f32 1.0, %v1265
  %v1267 = vtanh.pop %v1254
  %v1268 = vmul.f32 %v1264, 0.0
  %1270 = vrot.lane.b32.xlu0 %v1267, 64
  %v1271 = vpop.permute.xlu0 %1270
  %v1273 = vmul.f32 %v1264, %v1271
  %1275 = vrot.lane.b32.xlu0 %v1273, 64
  %v1276 = vpop.permute.xlu0 %1275
  %v1278 = vadd.f32 %v1268, %v1276
  %v1279 = vtanh.pop %v1278
  %1281 = vrot.lane.b32.xlu0 %v1279, 64
  %v1282 = vpop.permute.xlu0 %1281
  %v1284 = vmul.f32 %v1266, %v1282
  %v1286 = vsel %vm1178, %v1284, 0
  %1288 = vmatprep.subr.mxu0 0.0
  %1289 = vmatpush1.msra.mxu0 0.0
  %1290 = vmatprep.subr.mxu0 0.0
  %1291 = vmatpush1.msra.mxu0 0.0
  %1292 = vmatprep.subr.mxu0 0.0
  %1293 = vmatpush1.msra.mxu0 0.0
  %1294 = vmatprep.subr.mxu0 0.0
  %1295 = vmatpush1.msra.mxu0 0.0
  %1296 = vmatprep.subr.mxu0 0.0
  %1297 = vmatpush1.msra.mxu0 0.0
  %1298 = vmatprep.subr.mxu0 0.0
  %1299 = vmatpush1.msra.mxu0 0.0
  %1300 = vmatprep.subr.mxu0 0.0
  %1301 = vmatpush1.msra.mxu0 0.0
  %1302 = vmatprep.subr.mxu0 0.0
  %1303 = vmatpush1.msra.mxu0 0.0
  %1304 = vmatprep.subr.mxu0 %v1177
  %1305 = vmatpush1.msra.mxu0 %v1176
  %1306 = vmatprep.subr.mxu0 %v1175
  %1307 = vmatpush1.msra.mxu0 %v1174
  %1308 = vmatprep.subr.mxu0 %v1173
  %1309 = vmatpush1.msra.mxu0 %v1172
  %1310 = vmatprep.subr.mxu0 %v1171
  %1311 = vmatpush1.msra.mxu0 %v1170
  %1312 = vmatprep.subr.mxu0 %v1169
  %1313 = vmatpush1.msra.mxu0 %v1168
  %1314 = vmatprep.subr.mxu0 %v1167
  %1315 = vmatpush1.msra.mxu0 %v1166
  %1316 = vmatprep.subr.mxu0 %v1165
  %1317 = vmatpush1.msra.mxu0 %v1164
  %1318 = vmatprep.subr.mxu0 %v1163
  %1319 = vmatpush1.msra.mxu0 %v1162
  %1320 = vmatprep.subr.mxu0 0.0
  %1321 = vmatpush2.msra.mxu0 0.0
  %1322 = vmatprep.subr.mxu0 0.0
  %1323 = vmatpush2.msra.mxu0 0.0
  %1324 = vmatprep.subr.mxu0 0.0
  %1325 = vmatpush2.msra.mxu0 0.0
  %1326 = vmatprep.subr.mxu0 0.0
  %1327 = vmatpush2.msra.mxu0 0.0
  %1328 = vmatprep.subr.mxu0 0.0
  %1329 = vmatpush2.msra.mxu0 0.0
  %1330 = vmatprep.subr.mxu0 0.0
  %1331 = vmatpush2.msra.mxu0 0.0
  %1332 = vmatprep.subr.mxu0 0.0
  %1333 = vmatpush2.msra.mxu0 0.0
  %1334 = vmatprep.subr.mxu0 0.0
  %1335 = vmatpush2.msra.mxu0 0.0
  %1336 = vmatprep.subr.mxu0 0.0
  %1337 = vmatpush2.msra.mxu0 0.0
  %1338 = vmatprep.subr.mxu0 0.0
  %1339 = vmatpush2.msra.mxu0 0.0
  %1340 = vmatprep.subr.mxu0 0.0
  %1341 = vmatpush2.msra.mxu0 0.0
  %1342 = vmatprep.subr.mxu0 0.0
  %1343 = vmatpush2.msra.mxu0 0.0
  %1344 = vmatprep.subr.mxu0 0.0
  %1345 = vmatpush2.msra.mxu0 0.0
  %1346 = vmatprep.subr.mxu0 0.0
  %1347 = vmatpush2.msra.mxu0 0.0
  %1348 = vmatprep.subr.mxu0 0.0
  %1349 = vmatpush2.msra.mxu0 0.0
  %1350 = vmatprep.subr.mxu0 0.0
  %1351 = vmatpush2.msra.mxu0 0.0
  %1352 = vmatprep.mubr.f32.mxu0 0.0
  %1353 = vmatmul.mubr.f32.gmra.mxu0 %v1286
  %v1354 = vpop.f32.mrf.mxu0
  %v1355 = vadd.f32 0.0, %v1354
  %v1356 = vpop.f32.mrf.mxu0
  %v1357 = vadd.f32 0.0, %v1356
  %1358 = vdwg.mxu0
  %v1359 = vadd.f32 %v1122, %v1355
  %v1360 = vadd.f32 %v1124, %v1357
  %v1361 = vxor.u32 %v1359, 2147483648
  %v1362 = vxor.u32 %v1360, 2147483648
  %v1363 = vmul.f32 %v1361, 1.442695
  %v1364 = vpow.pop %v1363
  %v1365 = vmul.f32 %v1362, 1.442695
  %v1366 = vpow.pop %v1365
  %v1367 = vadd.f32 %v1364, 1.0
  %v1368 = vadd.f32 %v1366, 1.0
  %v1369 = vrcp.pop %v1367
  %v1370 = vmul.f32 1.0, %v1369
  %v1371 = vrcp.pop %v1368
  %v1372 = vmul.f32 1.0, %v1371
  %v1373 = vtanh.pop %v1360
  %v1374 = vmul.f32 %v1370, %v1278
  %1376 = vrot.lane.b32.xlu0 %v1373, 64
  %v1377 = vpop.permute.xlu0 %1376
  %v1379 = vmul.f32 %v1370, %v1377
  %1381 = vrot.lane.b32.xlu0 %v1379, 64
  %v1382 = vpop.permute.xlu0 %1381
  %v1384 = vadd.f32 %v1374, %v1382
  %v1385 = vtanh.pop %v1384
  %1387 = vrot.lane.b32.xlu0 %v1385, 64
  %v1388 = vpop.permute.xlu0 %1387
  %v1390 = vmul.f32 %v1372, %v1388
  %v1392 = vsel %vm1178, %v1390, 0
  %1394 = vmatprep.subr.mxu0 0.0
  %1395 = vmatpush1.msra.mxu0 0.0
  %1396 = vmatprep.subr.mxu0 0.0
  %1397 = vmatpush1.msra.mxu0 0.0
  %1398 = vmatprep.subr.mxu0 0.0
  %1399 = vmatpush1.msra.mxu0 0.0
  %1400 = vmatprep.subr.mxu0 0.0
  %1401 = vmatpush1.msra.mxu0 0.0
  %1402 = vmatprep.subr.mxu0 0.0
  %1403 = vmatpush1.msra.mxu0 0.0
  %1404 = vmatprep.subr.mxu0 0.0
  %1405 = vmatpush1.msra.mxu0 0.0
  %1406 = vmatprep.subr.mxu0 0.0
  %1407 = vmatpush1.msra.mxu0 0.0
  %1408 = vmatprep.subr.mxu0 0.0
  %1409 = vmatpush1.msra.mxu0 0.0
  %1410 = vmatprep.subr.mxu0 %v1177
  %1411 = vmatpush1.msra.mxu0 %v1176
  %1412 = vmatprep.subr.mxu0 %v1175
  %1413 = vmatpush1.msra.mxu0 %v1174
  %1414 = vmatprep.subr.mxu0 %v1173
  %1415 = vmatpush1.msra.mxu0 %v1172
  %1416 = vmatprep.subr.mxu0 %v1171
  %1417 = vmatpush1.msra.mxu0 %v1170
  %1418 = vmatprep.subr.mxu0 %v1169
  %1419 = vmatpush1.msra.mxu0 %v1168
  %1420 = vmatprep.subr.mxu0 %v1167
  %1421 = vmatpush1.msra.mxu0 %v1166
  %1422 = vmatprep.subr.mxu0 %v1165
  %1423 = vmatpush1.msra.mxu0 %v1164
  %1424 = vmatprep.subr.mxu0 %v1163
  %1425 = vmatpush1.msra.mxu0 %v1162
  %1426 = vmatprep.subr.mxu0 0.0
  %1427 = vmatpush2.msra.mxu0 0.0
  %1428 = vmatprep.subr.mxu0 0.0
  %1429 = vmatpush2.msra.mxu0 0.0
  %1430 = vmatprep.subr.mxu0 0.0
  %1431 = vmatpush2.msra.mxu0 0.0
  %1432 = vmatprep.subr.mxu0 0.0
  %1433 = vmatpush2.msra.mxu0 0.0
  %1434 = vmatprep.subr.mxu0 0.0
  %1435 = vmatpush2.msra.mxu0 0.0
  %1436 = vmatprep.subr.mxu0 0.0
  %1437 = vmatpush2.msra.mxu0 0.0
  %1438 = vmatprep.subr.mxu0 0.0
  %1439 = vmatpush2.msra.mxu0 0.0
  %1440 = vmatprep.subr.mxu0 0.0
  %1441 = vmatpush2.msra.mxu0 0.0
  %1442 = vmatprep.subr.mxu0 0.0
  %1443 = vmatpush2.msra.mxu0 0.0
  %1444 = vmatprep.subr.mxu0 0.0
  %1445 = vmatpush2.msra.mxu0 0.0
  %1446 = vmatprep.subr.mxu0 0.0
  %1447 = vmatpush2.msra.mxu0 0.0
  %1448 = vmatprep.subr.mxu0 0.0
  %1449 = vmatpush2.msra.mxu0 0.0
  %1450 = vmatprep.subr.mxu0 0.0
  %1451 = vmatpush2.msra.mxu0 0.0
  %1452 = vmatprep.subr.mxu0 0.0
  %1453 = vmatpush2.msra.mxu0 0.0
  %1454 = vmatprep.subr.mxu0 0.0
  %1455 = vmatpush2.msra.mxu0 0.0
  %1456 = vmatprep.subr.mxu0 0.0
  %1457 = vmatpush2.msra.mxu0 0.0
  %1458 = vmatprep.mubr.f32.mxu0 0.0
  %1459 = vmatmul.mubr.f32.gmra.mxu0 %v1392
  %v1460 = vpop.f32.mrf.mxu0
  %v1461 = vadd.f32 0.0, %v1460
  %v1462 = vpop.f32.mrf.mxu0
  %v1463 = vadd.f32 0.0, %v1462
  %1464 = vdwg.mxu0
  %v1465 = vadd.f32 %v1128, %v1461
  %v1466 = vadd.f32 %v1130, %v1463
  %v1467 = vxor.u32 %v1465, 2147483648
  %v1468 = vxor.u32 %v1466, 2147483648
  %v1469 = vmul.f32 %v1467, 1.442695
  %v1470 = vpow.pop %v1469
  %v1471 = vmul.f32 %v1468, 1.442695
  %v1472 = vpow.pop %v1471
  %v1473 = vadd.f32 %v1470, 1.0
  %v1474 = vadd.f32 %v1472, 1.0
  %v1475 = vrcp.pop %v1473
  %v1476 = vmul.f32 1.0, %v1475
  %v1477 = vrcp.pop %v1474
  %v1478 = vmul.f32 1.0, %v1477
  %v1479 = vtanh.pop %v1466
  %v1480 = vmul.f32 %v1476, %v1384
  %1482 = vrot.lane.b32.xlu0 %v1479, 64
  %v1483 = vpop.permute.xlu0 %1482
  %v1485 = vmul.f32 %v1476, %v1483
  %1487 = vrot.lane.b32.xlu0 %v1485, 64
  %v1488 = vpop.permute.xlu0 %1487
  %v1490 = vadd.f32 %v1480, %v1488
  %v1491 = vtanh.pop %v1490
  %1493 = vrot.lane.b32.xlu0 %v1491, 64
  %v1494 = vpop.permute.xlu0 %1493
  %v1496 = vmul.f32 %v1478, %v1494
  %v1498 = vsel %vm1178, %v1496, 0
  %1500 = vmatprep.subr.mxu0 0.0
  %1501 = vmatpush1.msra.mxu0 0.0
  %1502 = vmatprep.subr.mxu0 0.0
  %1503 = vmatpush1.msra.mxu0 0.0
  %1504 = vmatprep.subr.mxu0 0.0
  %1505 = vmatpush1.msra.mxu0 0.0
  %1506 = vmatprep.subr.mxu0 0.0
  %1507 = vmatpush1.msra.mxu0 0.0
  %1508 = vmatprep.subr.mxu0 0.0
  %1509 = vmatpush1.msra.mxu0 0.0
  %1510 = vmatprep.subr.mxu0 0.0
  %1511 = vmatpush1.msra.mxu0 0.0
  %1512 = vmatprep.subr.mxu0 0.0
  %1513 = vmatpush1.msra.mxu0 0.0
  %1514 = vmatprep.subr.mxu0 0.0
  %1515 = vmatpush1.msra.mxu0 0.0
  %1516 = vmatprep.subr.mxu0 %v1177
  %1517 = vmatpush1.msra.mxu0 %v1176
  %1518 = vmatprep.subr.mxu0 %v1175
  %1519 = vmatpush1.msra.mxu0 %v1174
  %1520 = vmatprep.subr.mxu0 %v1173
  %1521 = vmatpush1.msra.mxu0 %v1172
  %1522 = vmatprep.subr.mxu0 %v1171
  %1523 = vmatpush1.msra.mxu0 %v1170
  %1524 = vmatprep.subr.mxu0 %v1169
  %1525 = vmatpush1.msra.mxu0 %v1168
  %1526 = vmatprep.subr.mxu0 %v1167
  %1527 = vmatpush1.msra.mxu0 %v1166
  %1528 = vmatprep.subr.mxu0 %v1165
  %1529 = vmatpush1.msra.mxu0 %v1164
  %1530 = vmatprep.subr.mxu0 %v1163
  %1531 = vmatpush1.msra.mxu0 %v1162
  %1532 = vmatprep.subr.mxu0 0.0
  %1533 = vmatpush2.msra.mxu0 0.0
  %1534 = vmatprep.subr.mxu0 0.0
  %1535 = vmatpush2.msra.mxu0 0.0
  %1536 = vmatprep.subr.mxu0 0.0
  %1537 = vmatpush2.msra.mxu0 0.0
  %1538 = vmatprep.subr.mxu0 0.0
  %1539 = vmatpush2.msra.mxu0 0.0
  %1540 = vmatprep.subr.mxu0 0.0
  %1541 = vmatpush2.msra.mxu0 0.0
  %1542 = vmatprep.subr.mxu0 0.0
  %1543 = vmatpush2.msra.mxu0 0.0
  %1544 = vmatprep.subr.mxu0 0.0
  %1545 = vmatpush2.msra.mxu0 0.0
  %1546 = vmatprep.subr.mxu0 0.0
  %1547 = vmatpush2.msra.mxu0 0.0
  %1548 = vmatprep.subr.mxu0 0.0
  %1549 = vmatpush2.msra.mxu0 0.0
  %1550 = vmatprep.subr.mxu0 0.0
  %1551 = vmatpush2.msra.mxu0 0.0
  %1552 = vmatprep.subr.mxu0 0.0
  %1553 = vmatpush2.msra.mxu0 0.0
  %1554 = vmatprep.subr.mxu0 0.0
  %1555 = vmatpush2.msra.mxu0 0.0
  %1556 = vmatprep.subr.mxu0 0.0
  %1557 = vmatpush2.msra.mxu0 0.0
  %1558 = vmatprep.subr.mxu0 0.0
  %1559 = vmatpush2.msra.mxu0 0.0
  %1560 = vmatprep.subr.mxu0 0.0
  %1561 = vmatpush2.msra.mxu0 0.0
  %1562 = vmatprep.subr.mxu0 0.0
  %1563 = vmatpush2.msra.mxu0 0.0
  %1564 = vmatprep.mubr.f32.mxu0 0.0
  %1565 = vmatmul.mubr.f32.gmra.mxu0 %v1498
  %v1566 = vpop.f32.mrf.mxu0
  %v1567 = vadd.f32 0.0, %v1566
  %v1568 = vpop.f32.mrf.mxu0
  %v1569 = vadd.f32 0.0, %v1568
  %1570 = vdwg.mxu0
  %v1571 = vadd.f32 %v1134, %v1567
  %v1572 = vadd.f32 %v1136, %v1569
  %v1573 = vxor.u32 %v1571, 2147483648
  %v1574 = vxor.u32 %v1572, 2147483648
  %v1575 = vmul.f32 %v1573, 1.442695
  %v1576 = vpow.pop %v1575
  %v1577 = vmul.f32 %v1574, 1.442695
  %v1578 = vpow.pop %v1577
  %v1579 = vadd.f32 %v1576, 1.0
  %v1580 = vadd.f32 %v1578, 1.0
  %v1581 = vrcp.pop %v1579
  %v1582 = vmul.f32 1.0, %v1581
  %v1583 = vrcp.pop %v1580
  %v1584 = vmul.f32 1.0, %v1583
  %v1585 = vtanh.pop %v1572
  %v1586 = vmul.f32 %v1582, %v1490
  %1588 = vrot.lane.b32.xlu0 %v1585, 64
  %v1589 = vpop.permute.xlu0 %1588
  %v1591 = vmul.f32 %v1582, %v1589
  %1593 = vrot.lane.b32.xlu0 %v1591, 64
  %v1594 = vpop.permute.xlu0 %1593
  %v1596 = vadd.f32 %v1586, %v1594
  %v1597 = vtanh.pop %v1596
  %1599 = vrot.lane.b32.xlu0 %v1597, 64
  %v1600 = vpop.permute.xlu0 %1599
  %v1602 = vmul.f32 %v1584, %v1600
  %v1604 = vsel %vm1178, %v1602, 0
  %1606 = vmatprep.subr.mxu0 0.0
  %1607 = vmatpush1.msra.mxu0 0.0
  %1608 = vmatprep.subr.mxu0 0.0
  %1609 = vmatpush1.msra.mxu0 0.0
  %1610 = vmatprep.subr.mxu0 0.0
  %1611 = vmatpush1.msra.mxu0 0.0
  %1612 = vmatprep.subr.mxu0 0.0
  %1613 = vmatpush1.msra.mxu0 0.0
  %1614 = vmatprep.subr.mxu0 0.0
  %1615 = vmatpush1.msra.mxu0 0.0
  %1616 = vmatprep.subr.mxu0 0.0
  %1617 = vmatpush1.msra.mxu0 0.0
  %1618 = vmatprep.subr.mxu0 0.0
  %1619 = vmatpush1.msra.mxu0 0.0
  %1620 = vmatprep.subr.mxu0 0.0
  %1621 = vmatpush1.msra.mxu0 0.0
  %1622 = vmatprep.subr.mxu0 %v1177
  %1623 = vmatpush1.msra.mxu0 %v1176
  %1624 = vmatprep.subr.mxu0 %v1175
  %1625 = vmatpush1.msra.mxu0 %v1174
  %1626 = vmatprep.subr.mxu0 %v1173
  %1627 = vmatpush1.msra.mxu0 %v1172
  %1628 = vmatprep.subr.mxu0 %v1171
  %1629 = vmatpush1.msra.mxu0 %v1170
  %1630 = vmatprep.subr.mxu0 %v1169
  %1631 = vmatpush1.msra.mxu0 %v1168
  %1632 = vmatprep.subr.mxu0 %v1167
  %1633 = vmatpush1.msra.mxu0 %v1166
  %1634 = vmatprep.subr.mxu0 %v1165
  %1635 = vmatpush1.msra.mxu0 %v1164
  %1636 = vmatprep.subr.mxu0 %v1163
  %1637 = vmatpush1.msra.mxu0 %v1162
  %1638 = vmatprep.subr.mxu0 0.0
  %1639 = vmatpush2.msra.mxu0 0.0
  %1640 = vmatprep.subr.mxu0 0.0
  %1641 = vmatpush2.msra.mxu0 0.0
  %1642 = vmatprep.subr.mxu0 0.0
  %1643 = vmatpush2.msra.mxu0 0.0
  %1644 = vmatprep.subr.mxu0 0.0
  %1645 = vmatpush2.msra.mxu0 0.0
  %1646 = vmatprep.subr.mxu0 0.0
  %1647 = vmatpush2.msra.mxu0 0.0
  %1648 = vmatprep.subr.mxu0 0.0
  %1649 = vmatpush2.msra.mxu0 0.0
  %1650 = vmatprep.subr.mxu0 0.0
  %1651 = vmatpush2.msra.mxu0 0.0
  %1652 = vmatprep.subr.mxu0 0.0
  %1653 = vmatpush2.msra.mxu0 0.0
  %1654 = vmatprep.subr.mxu0 0.0
  %1655 = vmatpush2.msra.mxu0 0.0
  %1656 = vmatprep.subr.mxu0 0.0
  %1657 = vmatpush2.msra.mxu0 0.0
  %1658 = vmatprep.subr.mxu0 0.0
  %1659 = vmatpush2.msra.mxu0 0.0
  %1660 = vmatprep.subr.mxu0 0.0
  %1661 = vmatpush2.msra.mxu0 0.0
  %1662 = vmatprep.subr.mxu0 0.0
  %1663 = vmatpush2.msra.mxu0 0.0
  %1664 = vmatprep.subr.mxu0 0.0
  %1665 = vmatpush2.msra.mxu0 0.0
  %1666 = vmatprep.subr.mxu0 0.0
  %1667 = vmatpush2.msra.mxu0 0.0
  %1668 = vmatprep.subr.mxu0 0.0
  %1669 = vmatpush2.msra.mxu0 0.0
  %1670 = vmatprep.mubr.f32.mxu0 0.0
  %1671 = vmatmul.mubr.f32.gmra.mxu0 %v1604
  %v1672 = vpop.f32.mrf.mxu0
  %v1673 = vadd.f32 0.0, %v1672
  %v1674 = vpop.f32.mrf.mxu0
  %v1675 = vadd.f32 0.0, %v1674
  %1676 = vdwg.mxu0
  %v1677 = vadd.f32 %v1140, %v1673
  %v1678 = vadd.f32 %v1142, %v1675
  %v1679 = vxor.u32 %v1677, 2147483648
  %v1680 = vxor.u32 %v1678, 2147483648
  %v1681 = vmul.f32 %v1679, 1.442695
  %v1682 = vpow.pop %v1681
  %v1683 = vmul.f32 %v1680, 1.442695
  %v1684 = vpow.pop %v1683
  %v1685 = vadd.f32 %v1682, 1.0
  %v1686 = vadd.f32 %v1684, 1.0
  %v1687 = vrcp.pop %v1685
  %v1688 = vmul.f32 1.0, %v1687
  %v1689 = vrcp.pop %v1686
  %v1690 = vmul.f32 1.0, %v1689
  %v1691 = vtanh.pop %v1678
  %v1692 = vmul.f32 %v1688, %v1596
  %1694 = vrot.lane.b32.xlu0 %v1691, 64
  %v1695 = vpop.permute.xlu0 %1694
  %v1697 = vmul.f32 %v1688, %v1695
  %1699 = vrot.lane.b32.xlu0 %v1697, 64
  %v1700 = vpop.permute.xlu0 %1699
  %v1702 = vadd.f32 %v1692, %v1700
  %v1703 = vtanh.pop %v1702
  %1705 = vrot.lane.b32.xlu0 %v1703, 64
  %v1706 = vpop.permute.xlu0 %1705
  %v1708 = vmul.f32 %v1690, %v1706
  %v1710 = vsel %vm1178, %v1708, 0
  %1712 = vmatprep.subr.mxu0 0.0
  %1713 = vmatpush1.msra.mxu0 0.0
  %1714 = vmatprep.subr.mxu0 0.0
  %1715 = vmatpush1.msra.mxu0 0.0
  %1716 = vmatprep.subr.mxu0 0.0
  %1717 = vmatpush1.msra.mxu0 0.0
  %1718 = vmatprep.subr.mxu0 0.0
  %1719 = vmatpush1.msra.mxu0 0.0
  %1720 = vmatprep.subr.mxu0 0.0
  %1721 = vmatpush1.msra.mxu0 0.0
  %1722 = vmatprep.subr.mxu0 0.0
  %1723 = vmatpush1.msra.mxu0 0.0
  %1724 = vmatprep.subr.mxu0 0.0
  %1725 = vmatpush1.msra.mxu0 0.0
  %1726 = vmatprep.subr.mxu0 0.0
  %1727 = vmatpush1.msra.mxu0 0.0
  %1728 = vmatprep.subr.mxu0 %v1177
  %1729 = vmatpush1.msra.mxu0 %v1176
  %1730 = vmatprep.subr.mxu0 %v1175
  %1731 = vmatpush1.msra.mxu0 %v1174
  %1732 = vmatprep.subr.mxu0 %v1173
  %1733 = vmatpush1.msra.mxu0 %v1172
  %1734 = vmatprep.subr.mxu0 %v1171
  %1735 = vmatpush1.msra.mxu0 %v1170
  %1736 = vmatprep.subr.mxu0 %v1169
  %1737 = vmatpush1.msra.mxu0 %v1168
  %1738 = vmatprep.subr.mxu0 %v1167
  %1739 = vmatpush1.msra.mxu0 %v1166
  %1740 = vmatprep.subr.mxu0 %v1165
  %1741 = vmatpush1.msra.mxu0 %v1164
  %1742 = vmatprep.subr.mxu0 %v1163
  %1743 = vmatpush1.msra.mxu0 %v1162
  %1744 = vmatprep.subr.mxu0 0.0
  %1745 = vmatpush2.msra.mxu0 0.0
  %1746 = vmatprep.subr.mxu0 0.0
  %1747 = vmatpush2.msra.mxu0 0.0
  %1748 = vmatprep.subr.mxu0 0.0
  %1749 = vmatpush2.msra.mxu0 0.0
  %1750 = vmatprep.subr.mxu0 0.0
  %1751 = vmatpush2.msra.mxu0 0.0
  %1752 = vmatprep.subr.mxu0 0.0
  %1753 = vmatpush2.msra.mxu0 0.0
  %1754 = vmatprep.subr.mxu0 0.0
  %1755 = vmatpush2.msra.mxu0 0.0
  %1756 = vmatprep.subr.mxu0 0.0
  %1757 = vmatpush2.msra.mxu0 0.0
  %1758 = vmatprep.subr.mxu0 0.0
  %1759 = vmatpush2.msra.mxu0 0.0
  %1760 = vmatprep.subr.mxu0 0.0
  %1761 = vmatpush2.msra.mxu0 0.0
  %1762 = vmatprep.subr.mxu0 0.0
  %1763 = vmatpush2.msra.mxu0 0.0
  %1764 = vmatprep.subr.mxu0 0.0
  %1765 = vmatpush2.msra.mxu0 0.0
  %1766 = vmatprep.subr.mxu0 0.0
  %1767 = vmatpush2.msra.mxu0 0.0
  %1768 = vmatprep.subr.mxu0 0.0
  %1769 = vmatpush2.msra.mxu0 0.0
  %1770 = vmatprep.subr.mxu0 0.0
  %1771 = vmatpush2.msra.mxu0 0.0
  %1772 = vmatprep.subr.mxu0 0.0
  %1773 = vmatpush2.msra.mxu0 0.0
  %1774 = vmatprep.subr.mxu0 0.0
  %1775 = vmatpush2.msra.mxu0 0.0
  %1776 = vmatprep.mubr.f32.mxu0 0.0
  %1777 = vmatmul.mubr.f32.gmra.mxu0 %v1710
  %v1778 = vpop.f32.mrf.mxu0
  %v1779 = vadd.f32 0.0, %v1778
  %v1780 = vpop.f32.mrf.mxu0
  %v1781 = vadd.f32 0.0, %v1780
  %1782 = vdwg.mxu0
  %v1783 = vadd.f32 %v1146, %v1779
  %v1784 = vadd.f32 %v1148, %v1781
  %v1785 = vxor.u32 %v1783, 2147483648
  %v1786 = vxor.u32 %v1784, 2147483648
  %v1787 = vmul.f32 %v1785, 1.442695
  %v1788 = vpow.pop %v1787
  %v1789 = vmul.f32 %v1786, 1.442695
  %v1790 = vpow.pop %v1789
  %v1791 = vadd.f32 %v1788, 1.0
  %v1792 = vadd.f32 %v1790, 1.0
  %v1793 = vrcp.pop %v1791
  %v1794 = vmul.f32 1.0, %v1793
  %v1795 = vrcp.pop %v1792
  %v1796 = vmul.f32 1.0, %v1795
  %v1797 = vtanh.pop %v1784
  %v1798 = vmul.f32 %v1794, %v1702
  %1800 = vrot.lane.b32.xlu0 %v1797, 64
  %v1801 = vpop.permute.xlu0 %1800
  %v1803 = vmul.f32 %v1794, %v1801
  %1805 = vrot.lane.b32.xlu0 %v1803, 64
  %v1806 = vpop.permute.xlu0 %1805
  %v1808 = vadd.f32 %v1798, %v1806
  %v1809 = vtanh.pop %v1808
  %1811 = vrot.lane.b32.xlu0 %v1809, 64
  %v1812 = vpop.permute.xlu0 %1811
  %v1814 = vmul.f32 %v1796, %v1812
  %v1816 = vsel %vm1178, %v1814, 0
  %1818 = vmatprep.subr.mxu0 0.0
  %1819 = vmatpush1.msra.mxu0 0.0
  %1820 = vmatprep.subr.mxu0 0.0
  %1821 = vmatpush1.msra.mxu0 0.0
  %1822 = vmatprep.subr.mxu0 0.0
  %1823 = vmatpush1.msra.mxu0 0.0
  %1824 = vmatprep.subr.mxu0 0.0
  %1825 = vmatpush1.msra.mxu0 0.0
  %1826 = vmatprep.subr.mxu0 0.0
  %1827 = vmatpush1.msra.mxu0 0.0
  %1828 = vmatprep.subr.mxu0 0.0
  %1829 = vmatpush1.msra.mxu0 0.0
  %1830 = vmatprep.subr.mxu0 0.0
  %1831 = vmatpush1.msra.mxu0 0.0
  %1832 = vmatprep.subr.mxu0 0.0
  %1833 = vmatpush1.msra.mxu0 0.0
  %1834 = vmatprep.subr.mxu0 %v1177
  %1835 = vmatpush1.msra.mxu0 %v1176
  %1836 = vmatprep.subr.mxu0 %v1175
  %1837 = vmatpush1.msra.mxu0 %v1174
  %1838 = vmatprep.subr.mxu0 %v1173
  %1839 = vmatpush1.msra.mxu0 %v1172
  %1840 = vmatprep.subr.mxu0 %v1171
  %1841 = vmatpush1.msra.mxu0 %v1170
  %1842 = vmatprep.subr.mxu0 %v1169
  %1843 = vmatpush1.msra.mxu0 %v1168
  %1844 = vmatprep.subr.mxu0 %v1167
  %1845 = vmatpush1.msra.mxu0 %v1166
  %1846 = vmatprep.subr.mxu0 %v1165
  %1847 = vmatpush1.msra.mxu0 %v1164
  %1848 = vmatprep.subr.mxu0 %v1163
  %1849 = vmatpush1.msra.mxu0 %v1162
  %1850 = vmatprep.subr.mxu0 0.0
  %1851 = vmatpush2.msra.mxu0 0.0
  %1852 = vmatprep.subr.mxu0 0.0
  %1853 = vmatpush2.msra.mxu0 0.0
  %1854 = vmatprep.subr.mxu0 0.0
  %1855 = vmatpush2.msra.mxu0 0.0
  %1856 = vmatprep.subr.mxu0 0.0
  %1857 = vmatpush2.msra.mxu0 0.0
  %1858 = vmatprep.subr.mxu0 0.0
  %1859 = vmatpush2.msra.mxu0 0.0
  %1860 = vmatprep.subr.mxu0 0.0
  %1861 = vmatpush2.msra.mxu0 0.0
  %1862 = vmatprep.subr.mxu0 0.0
  %1863 = vmatpush2.msra.mxu0 0.0
  %1864 = vmatprep.subr.mxu0 0.0
  %1865 = vmatpush2.msra.mxu0 0.0
  %1866 = vmatprep.subr.mxu0 0.0
  %1867 = vmatpush2.msra.mxu0 0.0
  %1868 = vmatprep.subr.mxu0 0.0
  %1869 = vmatpush2.msra.mxu0 0.0
  %1870 = vmatprep.subr.mxu0 0.0
  %1871 = vmatpush2.msra.mxu0 0.0
  %1872 = vmatprep.subr.mxu0 0.0
  %1873 = vmatpush2.msra.mxu0 0.0
  %1874 = vmatprep.subr.mxu0 0.0
  %1875 = vmatpush2.msra.mxu0 0.0
  %1876 = vmatprep.subr.mxu0 0.0
  %1877 = vmatpush2.msra.mxu0 0.0
  %1878 = vmatprep.subr.mxu0 0.0
  %1879 = vmatpush2.msra.mxu0 0.0
  %1880 = vmatprep.subr.mxu0 0.0
  %1881 = vmatpush2.msra.mxu0 0.0
  %1882 = vmatprep.mubr.f32.mxu0 0.0
  %1883 = vmatmul.mubr.f32.gmra.mxu0 %v1816
  %v1884 = vpop.f32.mrf.mxu0
  %v1885 = vadd.f32 0.0, %v1884
  %v1886 = vpop.f32.mrf.mxu0
  %v1887 = vadd.f32 0.0, %v1886
  %1888 = vdwg.mxu0
  %v1889 = vadd.f32 %v1152, %v1885
  %v1890 = vadd.f32 %v1154, %v1887
  %v1891 = vxor.u32 %v1889, 2147483648
  %v1892 = vxor.u32 %v1890, 2147483648
  %v1893 = vmul.f32 %v1891, 1.442695
  %v1894 = vpow.pop %v1893
  %v1895 = vmul.f32 %v1892, 1.442695
  %v1896 = vpow.pop %v1895
  %v1897 = vadd.f32 %v1894, 1.0
  %v1898 = vadd.f32 %v1896, 1.0
  %v1899 = vrcp.pop %v1897
  %v1900 = vmul.f32 1.0, %v1899
  %v1901 = vrcp.pop %v1898
  %v1902 = vmul.f32 1.0, %v1901
  %v1903 = vtanh.pop %v1890
  %v1904 = vmul.f32 %v1900, %v1808
  %1906 = vrot.lane.b32.xlu0 %v1903, 64
  %v1907 = vpop.permute.xlu0 %1906
  %v1909 = vmul.f32 %v1900, %v1907
  %1911 = vrot.lane.b32.xlu0 %v1909, 64
  %v1912 = vpop.permute.xlu0 %1911
  %v1914 = vadd.f32 %v1904, %v1912
  %v1915 = vtanh.pop %v1914
  %1917 = vrot.lane.b32.xlu0 %v1915, 64
  %v1918 = vpop.permute.xlu0 %1917
  %v1920 = vmul.f32 %v1902, %v1918
  %v1922 = vsel %vm1178, %v1920, 0
  %1924 = vmatprep.subr.mxu0 0.0
  %1925 = vmatpush1.msra.mxu0 0.0
  %1926 = vmatprep.subr.mxu0 0.0
  %1927 = vmatpush1.msra.mxu0 0.0
  %1928 = vmatprep.subr.mxu0 0.0
  %1929 = vmatpush1.msra.mxu0 0.0
  %1930 = vmatprep.subr.mxu0 0.0
  %1931 = vmatpush1.msra.mxu0 0.0
  %1932 = vmatprep.subr.mxu0 0.0
  %1933 = vmatpush1.msra.mxu0 0.0
  %1934 = vmatprep.subr.mxu0 0.0
  %1935 = vmatpush1.msra.mxu0 0.0
  %1936 = vmatprep.subr.mxu0 0.0
  %1937 = vmatpush1.msra.mxu0 0.0
  %1938 = vmatprep.subr.mxu0 0.0
  %1939 = vmatpush1.msra.mxu0 0.0
  %1940 = vmatprep.subr.mxu0 %v1177
  %1941 = vmatpush1.msra.mxu0 %v1176
  %1942 = vmatprep.subr.mxu0 %v1175
  %1943 = vmatpush1.msra.mxu0 %v1174
  %1944 = vmatprep.subr.mxu0 %v1173
  %1945 = vmatpush1.msra.mxu0 %v1172
  %1946 = vmatprep.subr.mxu0 %v1171
  %1947 = vmatpush1.msra.mxu0 %v1170
  %1948 = vmatprep.subr.mxu0 %v1169
  %1949 = vmatpush1.msra.mxu0 %v1168
  %1950 = vmatprep.subr.mxu0 %v1167
  %1951 = vmatpush1.msra.mxu0 %v1166
  %1952 = vmatprep.subr.mxu0 %v1165
  %1953 = vmatpush1.msra.mxu0 %v1164
  %1954 = vmatprep.subr.mxu0 %v1163
  %1955 = vmatpush1.msra.mxu0 %v1162
  %1956 = vmatprep.subr.mxu0 0.0
  %1957 = vmatpush2.msra.mxu0 0.0
  %1958 = vmatprep.subr.mxu0 0.0
  %1959 = vmatpush2.msra.mxu0 0.0
  %1960 = vmatprep.subr.mxu0 0.0
  %1961 = vmatpush2.msra.mxu0 0.0
  %1962 = vmatprep.subr.mxu0 0.0
  %1963 = vmatpush2.msra.mxu0 0.0
  %1964 = vmatprep.subr.mxu0 0.0
  %1965 = vmatpush2.msra.mxu0 0.0
  %1966 = vmatprep.subr.mxu0 0.0
  %1967 = vmatpush2.msra.mxu0 0.0
  %1968 = vmatprep.subr.mxu0 0.0
  %1969 = vmatpush2.msra.mxu0 0.0
  %1970 = vmatprep.subr.mxu0 0.0
  %1971 = vmatpush2.msra.mxu0 0.0
  %1972 = vmatprep.subr.mxu0 0.0
  %1973 = vmatpush2.msra.mxu0 0.0
  %1974 = vmatprep.subr.mxu0 0.0
  %1975 = vmatpush2.msra.mxu0 0.0
  %1976 = vmatprep.subr.mxu0 0.0
  %1977 = vmatpush2.msra.mxu0 0.0
  %1978 = vmatprep.subr.mxu0 0.0
  %1979 = vmatpush2.msra.mxu0 0.0
  %1980 = vmatprep.subr.mxu0 0.0
  %1981 = vmatpush2.msra.mxu0 0.0
  %1982 = vmatprep.subr.mxu0 0.0
  %1983 = vmatpush2.msra.mxu0 0.0
  %1984 = vmatprep.subr.mxu0 0.0
  %1985 = vmatpush2.msra.mxu0 0.0
  %1986 = vmatprep.subr.mxu0 0.0
  %1987 = vmatpush2.msra.mxu0 0.0
  %1988 = vmatprep.mubr.f32.mxu0 0.0
  %1989 = vmatmul.mubr.f32.gmra.mxu0 %v1922
  %v1990 = vpop.f32.mrf.mxu0
  %v1991 = vadd.f32 0.0, %v1990
  %v1992 = vpop.f32.mrf.mxu0
  %v1993 = vadd.f32 0.0, %v1992
  %1994 = vdwg.mxu0
  %v1995 = vadd.f32 %v1158, %v1991
  %v1996 = vadd.f32 %v1160, %v1993
  %v1997 = vxor.u32 %v1995, 2147483648
  %v1998 = vxor.u32 %v1996, 2147483648
  %v1999 = vmul.f32 %v1997, 1.442695
  %v2000 = vpow.pop %v1999
  %v2001 = vmul.f32 %v1998, 1.442695
  %v2002 = vpow.pop %v2001
  %v2003 = vadd.f32 %v2000, 1.0
  %v2004 = vadd.f32 %v2002, 1.0
  %v2005 = vrcp.pop %v2003
  %v2006 = vmul.f32 1.0, %v2005
  %v2007 = vrcp.pop %v2004
  %v2008 = vmul.f32 1.0, %v2007
  %v2009 = vtanh.pop %v1996
  %v2010 = vmul.f32 %v2006, %v1914
  %2012 = vrot.lane.b32.xlu0 %v2009, 64
  %v2013 = vpop.permute.xlu0 %2012
  %v2015 = vmul.f32 %v2006, %v2013
  %2017 = vrot.lane.b32.xlu0 %v2015, 64
  %v2018 = vpop.permute.xlu0 %2017
  %v2020 = vadd.f32 %v2010, %v2018
  %v2021 = vtanh.pop %v2020
  %2023 = vrot.lane.b32.xlu0 %v2021, 64
  %v2024 = vpop.permute.xlu0 %2023
  %v2026 = vmul.f32 %v2008, %v2024
  %v2027 = vld [vmem:[%s0 + $0x40] sm:$0x3]
  %v2028 = vld [vmem:[%s1 + $0xa0] sm:$0xff]
  %v2029 = vld [vmem:[%s1 + $0xa8] sm:$0xff]
  %v2030 = vld [vmem:[%s1 + $0xb0] sm:$0x3]
  %v2031 = vld [vmem:[%s1 + $0xb8] sm:$0x1]
  %v2032 = vlaneseq
  %v2033 = vshrl.u32 %v2032, 7
  %v2034 = vsub.s32 0, %v2033
  %v2035 = vrot.slane %v2031, %v2034
  %vm2036 = vcmask 146432
  %v2038 = vsel %vm2036, %v2027, 0
  %vm2040 = vcmask 1041408
  %v2042 = vsel %vm2040, %v2030, 0
  %2044 = vmatprep.subr.mxu0 0.0
  %2045 = vmatpush1.msra.mxu0 0.0
  %2046 = vmatprep.subr.mxu0 0.0
  %2047 = vmatpush1.msra.mxu0 0.0
  %2048 = vmatprep.subr.mxu0 0.0
  %2049 = vmatpush1.msra.mxu0 0.0
  %2050 = vmatprep.subr.mxu0 0.0
  %2051 = vmatpush1.msra.mxu0 0.0
  %2052 = vmatprep.subr.mxu0 0.0
  %2053 = vmatpush1.msra.mxu0 0.0
  %2054 = vmatprep.subr.mxu0 0.0
  %2055 = vmatpush1.msra.mxu0 0.0
  %2056 = vmatprep.subr.mxu0 0.0
  %2057 = vmatpush1.msra.mxu0 0.0
  %2058 = vmatprep.subr.mxu0 0.0
  %2059 = vmatpush1.msra.mxu0 0.0
  %2060 = vmatprep.subr.mxu0 0.0
  %2061 = vmatpush1.msra.mxu0 0.0
  %2062 = vmatprep.subr.mxu0 0.0
  %2063 = vmatpush1.msra.mxu0 0.0
  %2064 = vmatprep.subr.mxu0 0.0
  %2065 = vmatpush1.msra.mxu0 0.0
  %2066 = vmatprep.subr.mxu0 0.0
  %2067 = vmatpush1.msra.mxu0 0.0
  %2068 = vmatprep.subr.mxu0 0.0
  %2069 = vmatpush1.msra.mxu0 0.0
  %2070 = vmatprep.subr.mxu0 0.0
  %2071 = vmatpush1.msra.mxu0 %v2042
  %2072 = vmatprep.subr.mxu0 0.0
  %2073 = vmatpush1.msra.mxu0 %v2029
  %2074 = vmatprep.subr.mxu0 0.0
  %2075 = vmatpush1.msra.mxu0 %v2028
  %2076 = vmatprep.subr.mxu0 0.0
  %2077 = vmatpush2.msra.mxu0 0.0
  %2078 = vmatprep.subr.mxu0 0.0
  %2079 = vmatpush2.msra.mxu0 0.0
  %2080 = vmatprep.subr.mxu0 0.0
  %2081 = vmatpush2.msra.mxu0 0.0
  %2082 = vmatprep.subr.mxu0 0.0
  %2083 = vmatpush2.msra.mxu0 0.0
  %2084 = vmatprep.subr.mxu0 0.0
  %2085 = vmatpush2.msra.mxu0 0.0
  %2086 = vmatprep.subr.mxu0 0.0
  %2087 = vmatpush2.msra.mxu0 0.0
  %2088 = vmatprep.subr.mxu0 0.0
  %2089 = vmatpush2.msra.mxu0 0.0
  %2090 = vmatprep.subr.mxu0 0.0
  %2091 = vmatpush2.msra.mxu0 0.0
  %2092 = vmatprep.subr.mxu0 0.0
  %2093 = vmatpush2.msra.mxu0 0.0
  %2094 = vmatprep.subr.mxu0 0.0
  %2095 = vmatpush2.msra.mxu0 0.0
  %2096 = vmatprep.subr.mxu0 0.0
  %2097 = vmatpush2.msra.mxu0 0.0
  %2098 = vmatprep.subr.mxu0 0.0
  %2099 = vmatpush2.msra.mxu0 0.0
  %2100 = vmatprep.subr.mxu0 0.0
  %2101 = vmatpush2.msra.mxu0 0.0
  %2102 = vmatprep.subr.mxu0 0.0
  %2103 = vmatpush2.msra.mxu0 0.0
  %2104 = vmatprep.subr.mxu0 0.0
  %2105 = vmatpush2.msra.mxu0 0.0
  %2106 = vmatprep.subr.mxu0 0.0
  %2107 = vmatpush2.msra.mxu0 0.0
  %2108 = vmatprep.mubr.f32.mxu0 0.0
  %2109 = vmatmul.mubr.f32.gmra.mxu0 %v2038
  %v2110 = vpop.f32.mrf.mxu0
  %v2111 = vadd.f32 %v2035, %v2110
  %v2112 = vpop.f32.mrf.mxu0
  %2113 = vdwg.mxu0
  %v2114 = vmax.f32 %v2111, 0.0
  %2116 = vrot.lane.b32.xlu0 %v2114, 32
  %v2117 = vpop.permute.xlu0 %2116
  %v2119 = vsel %vm131, %v2026, %v2117
  %v2120 = vld [vmem:[%s1 + $0xc0] sm:$0xff]
  %v2121 = vld [vmem:[%s1 + $0xc8] sm:$0xff]
  %v2122 = vld [vmem:[%s1 + $0xd0] sm:$0xff]
  %v2123 = vld [vmem:[%s1 + $0xd8] sm:$0xff]
  %v2124 = vld [vmem:[%s1 + $0xe0] sm:$0xff]
  %v2125 = vld [vmem:[%s1 + $0xe8] sm:$0xff]
  %v2126 = vld [vmem:[%s1 + $0xf0] sm:$0xff]
  %v2127 = vld [vmem:[%s1 + $0xf8] sm:$0xff]
  %v2128 = vld [vmem:[%s1 + $0x100] sm:$0x1]
  %v2129 = vlaneseq
  %v2130 = vshrl.u32 %v2129, 7
  %v2131 = vsub.s32 0, %v2130
  %v2132 = vrot.slane %v2128, %v2131
  %v2134 = vsel %vm1178, %v2119, 0
  %2136 = vmatprep.subr.mxu0 0.0
  %2137 = vmatpush1.msra.mxu0 0.0
  %2138 = vmatprep.subr.mxu0 0.0
  %2139 = vmatpush1.msra.mxu0 0.0
  %2140 = vmatprep.subr.mxu0 0.0
  %2141 = vmatpush1.msra.mxu0 0.0
  %2142 = vmatprep.subr.mxu0 0.0
  %2143 = vmatpush1.msra.mxu0 0.0
  %2144 = vmatprep.subr.mxu0 0.0
  %2145 = vmatpush1.msra.mxu0 0.0
  %2146 = vmatprep.subr.mxu0 0.0
  %2147 = vmatpush1.msra.mxu0 0.0
  %2148 = vmatprep.subr.mxu0 0.0
  %2149 = vmatpush1.msra.mxu0 0.0
  %2150 = vmatprep.subr.mxu0 0.0
  %2151 = vmatpush1.msra.mxu0 0.0
  %2152 = vmatprep.subr.mxu0 0.0
  %2153 = vmatpush1.msra.mxu0 %v2127
  %2154 = vmatprep.subr.mxu0 0.0
  %2155 = vmatpush1.msra.mxu0 %v2126
  %2156 = vmatprep.subr.mxu0 0.0
  %2157 = vmatpush1.msra.mxu0 %v2125
  %2158 = vmatprep.subr.mxu0 0.0
  %2159 = vmatpush1.msra.mxu0 %v2124
  %2160 = vmatprep.subr.mxu0 0.0
  %2161 = vmatpush1.msra.mxu0 %v2123
  %2162 = vmatprep.subr.mxu0 0.0
  %2163 = vmatpush1.msra.mxu0 %v2122
  %2164 = vmatprep.subr.mxu0 0.0
  %2165 = vmatpush1.msra.mxu0 %v2121
  %2166 = vmatprep.subr.mxu0 0.0
  %2167 = vmatpush1.msra.mxu0 %v2120
  %2168 = vmatprep.subr.mxu0 0.0
  %2169 = vmatpush2.msra.mxu0 0.0
  %2170 = vmatprep.subr.mxu0 0.0
  %2171 = vmatpush2.msra.mxu0 0.0
  %2172 = vmatprep.subr.mxu0 0.0
  %2173 = vmatpush2.msra.mxu0 0.0
  %2174 = vmatprep.subr.mxu0 0.0
  %2175 = vmatpush2.msra.mxu0 0.0
  %2176 = vmatprep.subr.mxu0 0.0
  %2177 = vmatpush2.msra.mxu0 0.0
  %2178 = vmatprep.subr.mxu0 0.0
  %2179 = vmatpush2.msra.mxu0 0.0
  %2180 = vmatprep.subr.mxu0 0.0
  %2181 = vmatpush2.msra.mxu0 0.0
  %2182 = vmatprep.subr.mxu0 0.0
  %2183 = vmatpush2.msra.mxu0 0.0
  %2184 = vmatprep.subr.mxu0 0.0
  %2185 = vmatpush2.msra.mxu0 0.0
  %2186 = vmatprep.subr.mxu0 0.0
  %2187 = vmatpush2.msra.mxu0 0.0
  %2188 = vmatprep.subr.mxu0 0.0
  %2189 = vmatpush2.msra.mxu0 0.0
  %2190 = vmatprep.subr.mxu0 0.0
  %2191 = vmatpush2.msra.mxu0 0.0
  %2192 = vmatprep.subr.mxu0 0.0
  %2193 = vmatpush2.msra.mxu0 0.0
  %2194 = vmatprep.subr.mxu0 0.0
  %2195 = vmatpush2.msra.mxu0 0.0
  %2196 = vmatprep.subr.mxu0 0.0
  %2197 = vmatpush2.msra.mxu0 0.0
  %2198 = vmatprep.subr.mxu0 0.0
  %2199 = vmatpush2.msra.mxu0 0.0
  %2200 = vmatprep.mubr.f32.mxu0 0.0
  %2201 = vmatmul.mubr.f32.gmra.mxu0 %v2134
  %v2202 = vpop.f32.mrf.mxu0
  %v2203 = vadd.f32 %v2132, %v2202
  %v2204 = vpop.f32.mrf.mxu0
  %2205 = vdwg.mxu0
  %v2206 = vmax.f32 %v2203, 0.0
  %v2207 = vld [vmem:[%s0 + $0x48] sm:$0xff]
  %v2208 = vld [vmem:[%s1 + $0x108] sm:$0xff]
  %v2209 = vld [vmem:[%s1 + $0x110] sm:$0xff]
  %v2210 = vld [vmem:[%s1 + $0x118] sm:$0x7]
  %v2211 = vld [vmem:[%s1 + $0x120] sm:$0x1]
  %v2212 = vlaneseq
  %v2213 = vshrl.u32 %v2212, 7
  %v2214 = vsub.s32 0, %v2213
  %v2215 = vrot.slane %v2211, %v2214
  %vm2216 = vcmask 154624
  %v2218 = vsel %vm2216, %v2207, 0
  %vm2220 = vcmask 1042432
  %v2222 = vsel %vm2220, %v2210, 0
  %2224 = vmatprep.subr.mxu0 0.0
  %2225 = vmatpush1.msra.mxu0 0.0
  %2226 = vmatprep.subr.mxu0 0.0
  %2227 = vmatpush1.msra.mxu0 0.0
  %2228 = vmatprep.subr.mxu0 0.0
  %2229 = vmatpush1.msra.mxu0 0.0
  %2230 = vmatprep.subr.mxu0 0.0
  %2231 = vmatpush1.msra.mxu0 0.0
  %2232 = vmatprep.subr.mxu0 0.0
  %2233 = vmatpush1.msra.mxu0 0.0
  %2234 = vmatprep.subr.mxu0 0.0
  %2235 = vmatpush1.msra.mxu0 0.0
  %2236 = vmatprep.subr.mxu0 0.0
  %2237 = vmatpush1.msra.mxu0 0.0
  %2238 = vmatprep.subr.mxu0 0.0
  %2239 = vmatpush1.msra.mxu0 0.0
  %2240 = vmatprep.subr.mxu0 0.0
  %2241 = vmatpush1.msra.mxu0 0.0
  %2242 = vmatprep.subr.mxu0 0.0
  %2243 = vmatpush1.msra.mxu0 0.0
  %2244 = vmatprep.subr.mxu0 0.0
  %2245 = vmatpush1.msra.mxu0 0.0
  %2246 = vmatprep.subr.mxu0 0.0
  %2247 = vmatpush1.msra.mxu0 0.0
  %2248 = vmatprep.subr.mxu0 0.0
  %2249 = vmatpush1.msra.mxu0 0.0
  %2250 = vmatprep.subr.mxu0 0.0
  %2251 = vmatpush1.msra.mxu0 %v2222
  %2252 = vmatprep.subr.mxu0 0.0
  %2253 = vmatpush1.msra.mxu0 %v2209
  %2254 = vmatprep.subr.mxu0 0.0
  %2255 = vmatpush1.msra.mxu0 %v2208
  %2256 = vmatprep.subr.mxu0 0.0
  %2257 = vmatpush2.msra.mxu0 0.0
  %2258 = vmatprep.subr.mxu0 0.0
  %2259 = vmatpush2.msra.mxu0 0.0
  %2260 = vmatprep.subr.mxu0 0.0
  %2261 = vmatpush2.msra.mxu0 0.0
  %2262 = vmatprep.subr.mxu0 0.0
  %2263 = vmatpush2.msra.mxu0 0.0
  %2264 = vmatprep.subr.mxu0 0.0
  %2265 = vmatpush2.msra.mxu0 0.0
  %2266 = vmatprep.subr.mxu0 0.0
  %2267 = vmatpush2.msra.mxu0 0.0
  %2268 = vmatprep.subr.mxu0 0.0
  %2269 = vmatpush2.msra.mxu0 0.0
  %2270 = vmatprep.subr.mxu0 0.0
  %2271 = vmatpush2.msra.mxu0 0.0
  %2272 = vmatprep.subr.mxu0 0.0
  %2273 = vmatpush2.msra.mxu0 0.0
  %2274 = vmatprep.subr.mxu0 0.0
  %2275 = vmatpush2.msra.mxu0 0.0
  %2276 = vmatprep.subr.mxu0 0.0
  %2277 = vmatpush2.msra.mxu0 0.0
  %2278 = vmatprep.subr.mxu0 0.0
  %2279 = vmatpush2.msra.mxu0 0.0
  %2280 = vmatprep.subr.mxu0 0.0
  %2281 = vmatpush2.msra.mxu0 0.0
  %2282 = vmatprep.subr.mxu0 0.0
  %2283 = vmatpush2.msra.mxu0 0.0
  %2284 = vmatprep.subr.mxu0 0.0
  %2285 = vmatpush2.msra.mxu0 0.0
  %2286 = vmatprep.subr.mxu0 0.0
  %2287 = vmatpush2.msra.mxu0 0.0
  %2288 = vmatprep.mubr.f32.mxu0 0.0
  %2289 = vmatmul.mubr.f32.gmra.mxu0 %v2218
  %v2290 = vpop.f32.mrf.mxu0
  %v2291 = vadd.f32 %v2215, %v2290
  %v2292 = vpop.f32.mrf.mxu0
  %2293 = vdwg.mxu0
  %v2294 = vmax.f32 %v2291, 0.0
  %2296 = vrot.lane.b32.xlu0 %v2026, 96
  %v2297 = vpop.permute.xlu0 %2296
  %2300 = vrot.lane.b32.xlu0 %v2294, 32
  %v2301 = vpop.permute.xlu0 %2300
  %2304 = vrot.lane.b32.xlu0 %v989, 64
  %v2305 = vpop.permute.xlu0 %2304
  %v2307 = vsel %vm131, %v2297, %v2301
  %v2308 = vsel %vm1178, %v2307, %v2305
  %v2309 = vld [vmem:[%s1 + $0x128] sm:$0xff]
  %v2310 = vld [vmem:[%s1 + $0x130] sm:$0xff]
  %v2311 = vld [vmem:[%s1 + $0x138] sm:$0xff]
  %v2312 = vld [vmem:[%s1 + $0x140] sm:$0xff]
  %v2313 = vld [vmem:[%s1 + $0x148] sm:$0xff]
  %v2314 = vld [vmem:[%s1 + $0x150] sm:$0xff]
  %v2315 = vld [vmem:[%s1 + $0x158] sm:$0xff]
  %v2316 = vld [vmem:[%s1 + $0x160] sm:$0xff]
  %v2317 = vld [vmem:[%s1 + $0x168] sm:$0xff]
  %v2318 = vld [vmem:[%s1 + $0x170] sm:$0xff]
  %v2319 = vld [vmem:[%s1 + $0x178] sm:$0xff]
  %v2320 = vld [vmem:[%s1 + $0x180] sm:$0xff]
  %v2321 = vld [vmem:[%s1 + $0x188] sm:$0x1]
  %v2322 = vlaneseq
  %v2323 = vshrl.u32 %v2322, 7
  %v2324 = vsub.s32 0, %v2323
  %v2325 = vrot.slane %v2321, %v2324
  %vm2326 = vcmask 785408
  %v2328 = vsel %vm2326, %v2308, 0
  %2330 = vmatprep.subr.mxu0 0.0
  %2331 = vmatpush1.msra.mxu0 0.0
  %2332 = vmatprep.subr.mxu0 0.0
  %2333 = vmatpush1.msra.mxu0 0.0
  %2334 = vmatprep.subr.mxu0 0.0
  %2335 = vmatpush1.msra.mxu0 0.0
  %2336 = vmatprep.subr.mxu0 0.0
  %2337 = vmatpush1.msra.mxu0 0.0
  %2338 = vmatprep.subr.mxu0 0.0
  %2339 = vmatpush1.msra.mxu0 %v2320
  %2340 = vmatprep.subr.mxu0 0.0
  %2341 = vmatpush1.msra.mxu0 %v2319
  %2342 = vmatprep.subr.mxu0 0.0
  %2343 = vmatpush1.msra.mxu0 %v2318
  %2344 = vmatprep.subr.mxu0 0.0
  %2345 = vmatpush1.msra.mxu0 %v2317
  %2346 = vmatprep.subr.mxu0 0.0
  %2347 = vmatpush1.msra.mxu0 %v2316
  %2348 = vmatprep.subr.mxu0 0.0
  %2349 = vmatpush1.msra.mxu0 %v2315
  %2350 = vmatprep.subr.mxu0 0.0
  %2351 = vmatpush1.msra.mxu0 %v2314
  %2352 = vmatprep.subr.mxu0 0.0
  %2353 = vmatpush1.msra.mxu0 %v2313
  %2354 = vmatprep.subr.mxu0 0.0
  %2355 = vmatpush1.msra.mxu0 %v2312
  %2356 = vmatprep.subr.mxu0 0.0
  %2357 = vmatpush1.msra.mxu0 %v2311
  %2358 = vmatprep.subr.mxu0 0.0
  %2359 = vmatpush1.msra.mxu0 %v2310
  %2360 = vmatprep.subr.mxu0 0.0
  %2361 = vmatpush1.msra.mxu0 %v2309
  %2362 = vmatprep.subr.mxu0 0.0
  %2363 = vmatpush2.msra.mxu0 0.0
  %2364 = vmatprep.subr.mxu0 0.0
  %2365 = vmatpush2.msra.mxu0 0.0
  %2366 = vmatprep.subr.mxu0 0.0
  %2367 = vmatpush2.msra.mxu0 0.0
  %2368 = vmatprep.subr.mxu0 0.0
  %2369 = vmatpush2.msra.mxu0 0.0
  %2370 = vmatprep.subr.mxu0 0.0
  %2371 = vmatpush2.msra.mxu0 0.0
  %2372 = vmatprep.subr.mxu0 0.0
  %2373 = vmatpush2.msra.mxu0 0.0
  %2374 = vmatprep.subr.mxu0 0.0
  %2375 = vmatpush2.msra.mxu0 0.0
  %2376 = vmatprep.subr.mxu0 0.0
  %2377 = vmatpush2.msra.mxu0 0.0
  %2378 = vmatprep.subr.mxu0 0.0
  %2379 = vmatpush2.msra.mxu0 0.0
  %2380 = vmatprep.subr.mxu0 0.0
  %2381 = vmatpush2.msra.mxu0 0.0
  %2382 = vmatprep.subr.mxu0 0.0
  %2383 = vmatpush2.msra.mxu0 0.0
  %2384 = vmatprep.subr.mxu0 0.0
  %2385 = vmatpush2.msra.mxu0 0.0
  %2386 = vmatprep.subr.mxu0 0.0
  %2387 = vmatpush2.msra.mxu0 0.0
  %2388 = vmatprep.subr.mxu0 0.0
  %2389 = vmatpush2.msra.mxu0 0.0
  %2390 = vmatprep.subr.mxu0 0.0
  %2391 = vmatpush2.msra.mxu0 0.0
  %2392 = vmatprep.subr.mxu0 0.0
  %2393 = vmatpush2.msra.mxu0 0.0
  %2394 = vmatprep.mubr.f32.mxu0 0.0
  %2395 = vmatmul.mubr.f32.gmra.mxu0 %v2328
  %v2396 = vpop.f32.mrf.mxu0
  %v2397 = vadd.f32 %v2325, %v2396
  %v2398 = vpop.f32.mrf.mxu0
  %2399 = vdwg.mxu0
  %v2400 = vmax.f32 %v2397, 0.0
  %v2401 = vld [vmem:[%s0 + $0xc8] sm:$0xff]
  %v2402 = vld [vmem:[%s0 + $0xd0] sm:$0x3]
  %vm2403 = vcmask 15360
  %v2405 = vsel %vm2403, %v2401, 0
  %v2408 = vsel %vm2040, %v2206, 0
  %2410 = vmatprep.subr.mxu0 0.0
  %2411 = vmatpush1.msra.mxu0 0.0
  %2412 = vmatprep.subr.mxu0 0.0
  %2413 = vmatpush1.msra.mxu0 0.0
  %2414 = vmatprep.subr.mxu0 0.0
  %2415 = vmatpush1.msra.mxu0 0.0
  %2416 = vmatprep.subr.mxu0 0.0
  %2417 = vmatpush1.msra.mxu0 0.0
  %2418 = vmatprep.subr.mxu0 0.0
  %2419 = vmatpush1.msra.mxu0 0.0
  %2420 = vmatprep.subr.mxu0 0.0
  %2421 = vmatpush1.msra.mxu0 0.0
  %2422 = vmatprep.subr.mxu0 0.0
  %2423 = vmatpush1.msra.mxu0 0.0
  %2424 = vmatprep.subr.mxu0 0.0
  %2425 = vmatpush1.msra.mxu0 0.0
  %2426 = vmatprep.subr.mxu0 0.0
  %2427 = vmatpush1.msra.mxu0 0.0
  %2428 = vmatprep.subr.mxu0 0.0
  %2429 = vmatpush1.msra.mxu0 0.0
  %2430 = vmatprep.subr.mxu0 0.0
  %2431 = vmatpush1.msra.mxu0 0.0
  %2432 = vmatprep.subr.mxu0 0.0
  %2433 = vmatpush1.msra.mxu0 0.0
  %2434 = vmatprep.subr.mxu0 0.0
  %2435 = vmatpush1.msra.mxu0 0.0
  %2436 = vmatprep.subr.mxu0 0.0
  %2437 = vmatpush1.msra.mxu0 0.0
  %2438 = vmatprep.subr.mxu0 0.0
  %2439 = vmatpush1.msra.mxu0 0.0
  %2440 = vmatprep.subr.mxu0 0.0
  %2441 = vmatpush1.msra.mxu0 %v2408
  %2442 = vmatprep.subr.mxu0 0.0
  %2443 = vmatpush2.msra.mxu0 0.0
  %2444 = vmatprep.subr.mxu0 0.0
  %2445 = vmatpush2.msra.mxu0 0.0
  %2446 = vmatprep.subr.mxu0 0.0
  %2447 = vmatpush2.msra.mxu0 0.0
  %2448 = vmatprep.subr.mxu0 0.0
  %2449 = vmatpush2.msra.mxu0 0.0
  %2450 = vmatprep.subr.mxu0 0.0
  %2451 = vmatpush2.msra.mxu0 0.0
  %2452 = vmatprep.subr.mxu0 0.0
  %2453 = vmatpush2.msra.mxu0 0.0
  %2454 = vmatprep.subr.mxu0 0.0
  %2455 = vmatpush2.msra.mxu0 0.0
  %2456 = vmatprep.subr.mxu0 0.0
  %2457 = vmatpush2.msra.mxu0 0.0
  %2458 = vmatprep.subr.mxu0 0.0
  %2459 = vmatpush2.msra.mxu0 0.0
  %2460 = vmatprep.subr.mxu0 0.0
  %2461 = vmatpush2.msra.mxu0 0.0
  %2462 = vmatprep.subr.mxu0 0.0
  %2463 = vmatpush2.msra.mxu0 0.0
  %2464 = vmatprep.subr.mxu0 0.0
  %2465 = vmatpush2.msra.mxu0 0.0
  %2466 = vmatprep.subr.mxu0 0.0
  %2467 = vmatpush2.msra.mxu0 0.0
  %2468 = vmatprep.subr.mxu0 0.0
  %2469 = vmatpush2.msra.mxu0 0.0
  %2470 = vmatprep.subr.mxu0 0.0
  %2471 = vmatpush2.msra.mxu0 0.0
  %2472 = vmatprep.subr.mxu0 0.0
  %2473 = vmatpush2.msra.mxu0 0.0
  %2474 = vmatprep.mubr.f32.mxu0 0.0
  %2475 = vmatmul.mubr.f32.gmra.mxu0 %v2405
  %v2476 = vpop.f32.mrf.mxu0
  %v2477 = vadd.f32 0.0, %v2476
  %v2478 = vpop.f32.mrf.mxu0
  %2479 = vdwg.mxu0
  %2481 = vrot.lane.b32.xlu0 %v2477, 64
  %v2482 = vpop.permute.xlu0 %2481
  %v2484 = vsel %vm1178, %v2400, %v2482
  %v2485 = vld [vmem:[%s1 + $0x190] sm:$0xff]
  %v2486 = vld [vmem:[%s1 + $0x198] sm:$0xff]
  %v2487 = vld [vmem:[%s1 + $0x1a0] sm:$0xff]
  %v2488 = vld [vmem:[%s1 + $0x1a8] sm:$0xff]
  %v2489 = vld [vmem:[%s1 + $0x1b0] sm:$0xff]
  %v2490 = vld [vmem:[%s1 + $0x1b8] sm:$0xff]
  %v2491 = vld [vmem:[%s1 + $0x1c0] sm:$0xff]
  %v2492 = vld [vmem:[%s1 + $0x1c8] sm:$0xff]
  %v2493 = vld [vmem:[%s1 + $0x1d0] sm:$0xff]
  %v2494 = vld [vmem:[%s1 + $0x1d8] sm:$0xff]
  %v2495 = vld [vmem:[%s1 + $0x1e0] sm:$0xff]
  %v2496 = vld [vmem:[%s1 + $0x1e8] sm:$0xff]
  %v2497 = vld [vmem:[%s1 + $0x1f0] sm:$0xff]
  %v2498 = vld [vmem:[%s1 + $0x1f8] sm:$0xff]
  %v2499 = vld [vmem:[%s1 + $0x200] sm:$0xff]
  %v2500 = vld [vmem:[%s1 + $0x208] sm:$0xff]
  %v2501 = vld [vmem:[%s1 + $0x210] sm:$0x1]
  %v2502 = vlaneseq
  %v2503 = vshrl.u32 %v2502, 7
  %v2504 = vsub.s32 0, %v2503
  %v2505 = vrot.slane %v2501, %v2504
  %2506 = vmatprep.subr.mxu0 0.0
  %2507 = vmatpush1.msra.mxu0 %v2500
  %2508 = vmatprep.subr.mxu0 0.0
  %2509 = vmatpush1.msra.mxu0 %v2499
  %2510 = vmatprep.subr.mxu0 0.0
  %2511 = vmatpush1.msra.mxu0 %v2498
  %2512 = vmatprep.subr.mxu0 0.0
  %2513 = vmatpush1.msra.mxu0 %v2497
  %2514 = vmatprep.subr.mxu0 0.0
  %2515 = vmatpush1.msra.mxu0 %v2496
  %2516 = vmatprep.subr.mxu0 0.0
  %2517 = vmatpush1.msra.mxu0 %v2495
  %2518 = vmatprep.subr.mxu0 0.0
  %2519 = vmatpush1.msra.mxu0 %v2494
  %2520 = vmatprep.subr.mxu0 0.0
  %2521 = vmatpush1.msra.mxu0 %v2493
  %2522 = vmatprep.subr.mxu0 0.0
  %2523 = vmatpush1.msra.mxu0 %v2492
  %2524 = vmatprep.subr.mxu0 0.0
  %2525 = vmatpush1.msra.mxu0 %v2491
  %2526 = vmatprep.subr.mxu0 0.0
  %2527 = vmatpush1.msra.mxu0 %v2490
  %2528 = vmatprep.subr.mxu0 0.0
  %2529 = vmatpush1.msra.mxu0 %v2489
  %2530 = vmatprep.subr.mxu0 0.0
  %2531 = vmatpush1.msra.mxu0 %v2488
  %2532 = vmatprep.subr.mxu0 0.0
  %2533 = vmatpush1.msra.mxu0 %v2487
  %2534 = vmatprep.subr.mxu0 0.0
  %2535 = vmatpush1.msra.mxu0 %v2486
  %2536 = vmatprep.subr.mxu0 0.0
  %2537 = vmatpush1.msra.mxu0 %v2485
  %2538 = vmatprep.subr.mxu0 0.0
  %2539 = vmatpush2.msra.mxu0 0.0
  %2540 = vmatprep.subr.mxu0 0.0
  %2541 = vmatpush2.msra.mxu0 0.0
  %2542 = vmatprep.subr.mxu0 0.0
  %2543 = vmatpush2.msra.mxu0 0.0
  %2544 = vmatprep.subr.mxu0 0.0
  %2545 = vmatpush2.msra.mxu0 0.0
  %2546 = vmatprep.subr.mxu0 0.0
  %2547 = vmatpush2.msra.mxu0 0.0
  %2548 = vmatprep.subr.mxu0 0.0
  %2549 = vmatpush2.msra.mxu0 0.0
  %2550 = vmatprep.subr.mxu0 0.0
  %2551 = vmatpush2.msra.mxu0 0.0
  %2552 = vmatprep.subr.mxu0 0.0
  %2553 = vmatpush2.msra.mxu0 0.0
  %2554 = vmatprep.subr.mxu0 0.0
  %2555 = vmatpush2.msra.mxu0 0.0
  %2556 = vmatprep.subr.mxu0 0.0
  %2557 = vmatpush2.msra.mxu0 0.0
  %2558 = vmatprep.subr.mxu0 0.0
  %2559 = vmatpush2.msra.mxu0 0.0
  %2560 = vmatprep.subr.mxu0 0.0
  %2561 = vmatpush2.msra.mxu0 0.0
  %2562 = vmatprep.subr.mxu0 0.0
  %2563 = vmatpush2.msra.mxu0 0.0
  %2564 = vmatprep.subr.mxu0 0.0
  %2565 = vmatpush2.msra.mxu0 0.0
  %2566 = vmatprep.subr.mxu0 0.0
  %2567 = vmatpush2.msra.mxu0 0.0
  %2568 = vmatprep.subr.mxu0 0.0
  %2569 = vmatpush2.msra.mxu0 0.0
  %2570 = vmatprep.mubr.f32.mxu0 0.0
  %2571 = vmatmul.mubr.f32.gmra.mxu0 %v2484
  %v2572 = vpop.f32.mrf.mxu0
  %v2573 = vadd.f32 %v2505, %v2572
  %v2574 = vpop.f32.mrf.mxu0
  %2575 = vdwg.mxu0
  %v2576 = vmax.f32 %v2573, 0.0
  %v2577 = vld [vmem:[%s1 + $0x218] sm:$0xff]
  %v2578 = vld [vmem:[%s1 + $0x220] sm:$0xff]
  %v2579 = vld [vmem:[%s1 + $0x228] sm:$0x1]
  %v2580 = vlaneseq
  %v2581 = vshrl.u32 %v2580, 7
  %v2582 = vsub.s32 0, %v2581
  %v2583 = vrot.slane %v2579, %v2582
  %vm2584 = vcmask 130048
  %v2586 = vsel %vm2584, %v2576, 0
  %2588 = vmatprep.subr.mxu0 0.0
  %2589 = vmatpush1.msra.mxu0 0.0
  %2590 = vmatprep.subr.mxu0 0.0
  %2591 = vmatpush1.msra.mxu0 0.0
  %2592 = vmatprep.subr.mxu0 0.0
  %2593 = vmatpush1.msra.mxu0 0.0
  %2594 = vmatprep.subr.mxu0 0.0
  %2595 = vmatpush1.msra.mxu0 0.0
  %2596 = vmatprep.subr.mxu0 0.0
  %2597 = vmatpush1.msra.mxu0 0.0
  %2598 = vmatprep.subr.mxu0 0.0
  %2599 = vmatpush1.msra.mxu0 0.0
  %2600 = vmatprep.subr.mxu0 0.0
  %2601 = vmatpush1.msra.mxu0 0.0
  %2602 = vmatprep.subr.mxu0 0.0
  %2603 = vmatpush1.msra.mxu0 0.0
  %2604 = vmatprep.subr.mxu0 0.0
  %2605 = vmatpush1.msra.mxu0 0.0
  %2606 = vmatprep.subr.mxu0 0.0
  %2607 = vmatpush1.msra.mxu0 0.0
  %2608 = vmatprep.subr.mxu0 0.0
  %2609 = vmatpush1.msra.mxu0 0.0
  %2610 = vmatprep.subr.mxu0 0.0
  %2611 = vmatpush1.msra.mxu0 0.0
  %2612 = vmatprep.subr.mxu0 0.0
  %2613 = vmatpush1.msra.mxu0 0.0
  %2614 = vmatprep.subr.mxu0 0.0
  %2615 = vmatpush1.msra.mxu0 0.0
  %2616 = vmatprep.subr.mxu0 0.0
  %2617 = vmatpush1.msra.mxu0 %v2578
  %2618 = vmatprep.subr.mxu0 0.0
  %2619 = vmatpush1.msra.mxu0 %v2577
  %2620 = vmatprep.subr.mxu0 0.0
  %2621 = vmatpush2.msra.mxu0 0.0
  %2622 = vmatprep.subr.mxu0 0.0
  %2623 = vmatpush2.msra.mxu0 0.0
  %2624 = vmatprep.subr.mxu0 0.0
  %2625 = vmatpush2.msra.mxu0 0.0
  %2626 = vmatprep.subr.mxu0 0.0
  %2627 = vmatpush2.msra.mxu0 0.0
  %2628 = vmatprep.subr.mxu0 0.0
  %2629 = vmatpush2.msra.mxu0 0.0
  %2630 = vmatprep.subr.mxu0 0.0
  %2631 = vmatpush2.msra.mxu0 0.0
  %2632 = vmatprep.subr.mxu0 0.0
  %2633 = vmatpush2.msra.mxu0 0.0
  %2634 = vmatprep.subr.mxu0 0.0
  %2635 = vmatpush2.msra.mxu0 0.0
  %2636 = vmatprep.subr.mxu0 0.0
  %2637 = vmatpush2.msra.mxu0 0.0
  %2638 = vmatprep.subr.mxu0 0.0
  %2639 = vmatpush2.msra.mxu0 0.0
  %2640 = vmatprep.subr.mxu0 0.0
  %2641 = vmatpush2.msra.mxu0 0.0
  %2642 = vmatprep.subr.mxu0 0.0
  %2643 = vmatpush2.msra.mxu0 0.0
  %2644 = vmatprep.subr.mxu0 0.0
  %2645 = vmatpush2.msra.mxu0 0.0
  %2646 = vmatprep.subr.mxu0 0.0
  %2647 = vmatpush2.msra.mxu0 0.0
  %2648 = vmatprep.subr.mxu0 0.0
  %2649 = vmatpush2.msra.mxu0 0.0
  %2650 = vmatprep.subr.mxu0 0.0
  %2651 = vmatpush2.msra.mxu0 0.0
  %2652 = vmatprep.mubr.f32.mxu0 0.0
  %2653 = vmatmul.mubr.f32.gmra.mxu0 %v2586
  %v2654 = vpop.f32.mrf.mxu0
  %v2655 = vadd.f32 %v2583, %v2654
  %v2656 = vpop.f32.mrf.mxu0
  %2657 = vdwg.mxu0
  %v2658 = vld [vmem:[%s0 + $0x50] sm:$0xff]
  %v2659 = vmul.f32 %v2655, %v2658
  %v2660 = vld [vmem:[%s0 + $0xd8] sm:$0xff]
  %2662 = vset.pattern.permute.xlu0 0
  %2663 = vperm.xlu0 %2662, %v2659
  %v2664 = vpop.permute.xlu0 %2663
  %v2666 = vmul.f32 %v2664, %v2660
  %vm2667 = vcmask 64512
  %v2669 = vsel %vm2667, %v2402, 0
  %2671 = vmatprep.subr.mxu0 0.0
  %2672 = vmatpush1.msra.mxu0 0.0
  %2673 = vmatprep.subr.mxu0 0.0
  %2674 = vmatpush1.msra.mxu0 0.0
  %2675 = vmatprep.subr.mxu0 0.0
  %2676 = vmatpush1.msra.mxu0 0.0
  %2677 = vmatprep.subr.mxu0 0.0
  %2678 = vmatpush1.msra.mxu0 0.0
  %2679 = vmatprep.subr.mxu0 0.0
  %2680 = vmatpush1.msra.mxu0 0.0
  %2681 = vmatprep.subr.mxu0 0.0
  %2682 = vmatpush1.msra.mxu0 0.0
  %2683 = vmatprep.subr.mxu0 0.0
  %2684 = vmatpush1.msra.mxu0 0.0
  %2685 = vmatprep.subr.mxu0 0.0
  %2686 = vmatpush1.msra.mxu0 0.0
  %2687 = vmatprep.subr.mxu0 0.0
  %2688 = vmatpush1.msra.mxu0 0.0
  %2689 = vmatprep.subr.mxu0 0.0
  %2690 = vmatpush1.msra.mxu0 0.0
  %2691 = vmatprep.subr.mxu0 0.0
  %2692 = vmatpush1.msra.mxu0 0.0
  %2693 = vmatprep.subr.mxu0 0.0
  %2694 = vmatpush1.msra.mxu0 0.0
  %2695 = vmatprep.subr.mxu0 0.0
  %2696 = vmatpush1.msra.mxu0 0.0
  %2697 = vmatprep.subr.mxu0 0.0
  %2698 = vmatpush1.msra.mxu0 0.0
  %2699 = vmatprep.subr.mxu0 0.0
  %2700 = vmatpush1.msra.mxu0 0.0
  %2701 = vmatprep.subr.mxu0 0.0
  %2702 = vmatpush1.msra.mxu0 %v2666
  %2703 = vmatprep.subr.mxu0 0.0
  %2704 = vmatpush2.msra.mxu0 0.0
  %2705 = vmatprep.subr.mxu0 0.0
  %2706 = vmatpush2.msra.mxu0 0.0
  %2707 = vmatprep.subr.mxu0 0.0
  %2708 = vmatpush2.msra.mxu0 0.0
  %2709 = vmatprep.subr.mxu0 0.0
  %2710 = vmatpush2.msra.mxu0 0.0
  %2711 = vmatprep.subr.mxu0 0.0
  %2712 = vmatpush2.msra.mxu0 0.0
  %2713 = vmatprep.subr.mxu0 0.0
  %2714 = vmatpush2.msra.mxu0 0.0
  %2715 = vmatprep.subr.mxu0 0.0
  %2716 = vmatpush2.msra.mxu0 0.0
  %2717 = vmatprep.subr.mxu0 0.0
  %2718 = vmatpush2.msra.mxu0 0.0
  %2719 = vmatprep.subr.mxu0 0.0
  %2720 = vmatpush2.msra.mxu0 0.0
  %2721 = vmatprep.subr.mxu0 0.0
  %2722 = vmatpush2.msra.mxu0 0.0
  %2723 = vmatprep.subr.mxu0 0.0
  %2724 = vmatpush2.msra.mxu0 0.0
  %2725 = vmatprep.subr.mxu0 0.0
  %2726 = vmatpush2.msra.mxu0 0.0
  %2727 = vmatprep.subr.mxu0 0.0
  %2728 = vmatpush2.msra.mxu0 0.0
  %2729 = vmatprep.subr.mxu0 0.0
  %2730 = vmatpush2.msra.mxu0 0.0
  %2731 = vmatprep.subr.mxu0 0.0
  %2732 = vmatpush2.msra.mxu0 0.0
  %2733 = vmatprep.subr.mxu0 0.0
  %2734 = vmatpush2.msra.mxu0 0.0
  %2735 = vmatprep.mubr.f32.mxu0 0.0
  %2736 = vmatmul.mubr.f32.gmra.mxu0 %v2669
  %v2737 = vpop.f32.mrf.mxu0
  %v2738 = vadd.f32 0.0, %v2737
  %v2739 = vpop.f32.mrf.mxu0
  %2740 = vdwg.mxu0
  %vm2741 = vcmask 25600
  %v2742 = vsel %vm2741, %v2738, -inf
  %2743 = vmax.xlane.f32.xlu0 %v2742
  %v2744 = vpop.xlane.xlu0 %2743
  %v2746 = vsel %vm2040, %v2744, 0
  %2748 = vmatprep.subr.mxu0 0.0
  %2749 = vmatpush1.msra.mxu0 0.0
  %2750 = vmatprep.subr.mxu0 0.0
  %2751 = vmatpush1.msra.mxu0 0.0
  %2752 = vmatprep.subr.mxu0 0.0
  %2753 = vmatpush1.msra.mxu0 0.0
  %2754 = vmatprep.subr.mxu0 0.0
  %2755 = vmatpush1.msra.mxu0 0.0
  %2756 = vmatprep.subr.mxu0 0.0
  %2757 = vmatpush1.msra.mxu0 0.0
  %2758 = vmatprep.subr.mxu0 0.0
  %2759 = vmatpush1.msra.mxu0 0.0
  %2760 = vmatprep.subr.mxu0 0.0
  %2761 = vmatpush1.msra.mxu0 0.0
  %2762 = vmatprep.subr.mxu0 0.0
  %2763 = vmatpush1.msra.mxu0 0.0
  %2764 = vmatprep.subr.mxu0 0.0
  %2765 = vmatpush1.msra.mxu0 0.0
  %2766 = vmatprep.subr.mxu0 0.0
  %2767 = vmatpush1.msra.mxu0 0.0
  %2768 = vmatprep.subr.mxu0 0.0
  %2769 = vmatpush1.msra.mxu0 0.0
  %2770 = vmatprep.subr.mxu0 0.0
  %2771 = vmatpush1.msra.mxu0 0.0
  %2772 = vmatprep.subr.mxu0 0.0
  %2773 = vmatpush1.msra.mxu0 0.0
  %2774 = vmatprep.subr.mxu0 0.0
  %2775 = vmatpush1.msra.mxu0 0.0
  %2776 = vmatprep.subr.mxu0 0.0
  %2777 = vmatpush1.msra.mxu0 0.0
  %2778 = vmatprep.subr.mxu0 0.0
  %2779 = vmatpush1.msra.mxu0 %v2746
  %2780 = vmatprep.subr.mxu0 0.0
  %2781 = vmatpush2.msra.mxu0 0.0
  %2782 = vmatprep.subr.mxu0 0.0
  %2783 = vmatpush2.msra.mxu0 0.0
  %2784 = vmatprep.subr.mxu0 0.0
  %2785 = vmatpush2.msra.mxu0 0.0
  %2786 = vmatprep.subr.mxu0 0.0
  %2787 = vmatpush2.msra.mxu0 0.0
  %2788 = vmatprep.subr.mxu0 0.0
  %2789 = vmatpush2.msra.mxu0 0.0
  %2790 = vmatprep.subr.mxu0 0.0
  %2791 = vmatpush2.msra.mxu0 0.0
  %2792 = vmatprep.subr.mxu0 0.0
  %2793 = vmatpush2.msra.mxu0 0.0
  %2794 = vmatprep.subr.mxu0 0.0
  %2795 = vmatpush2.msra.mxu0 0.0
  %2796 = vmatprep.subr.mxu0 0.0
  %2797 = vmatpush2.msra.mxu0 0.0
  %2798 = vmatprep.subr.mxu0 0.0
  %2799 = vmatpush2.msra.mxu0 0.0
  %2800 = vmatprep.subr.mxu0 0.0
  %2801 = vmatpush2.msra.mxu0 0.0
  %2802 = vmatprep.subr.mxu0 0.0
  %2803 = vmatpush2.msra.mxu0 0.0
  %2804 = vmatprep.subr.mxu0 0.0
  %2805 = vmatpush2.msra.mxu0 0.0
  %2806 = vmatprep.subr.mxu0 0.0
  %2807 = vmatpush2.msra.mxu0 0.0
  %2808 = vmatprep.subr.mxu0 0.0
  %2809 = vmatpush2.msra.mxu0 0.0
  %2810 = vmatprep.subr.mxu0 0.0
  %2811 = vmatpush2.msra.mxu0 0.0
  %2812 = vmatprep.mubr.f32.mxu0 0.0
  %2813 = vmatmul.mubr.f32.gmra.mxu0 %v2405
  %v2814 = vpop.f32.mrf.mxu0
  %v2815 = vadd.f32 0.0, %v2814
  %v2816 = vpop.f32.mrf.mxu0
  %2817 = vdwg.mxu0
  %v2818 = vsub.f32 %v2659, %v2815
  %v2819 = vmul.f32 %v2818, 1.442695
  %v2820 = vpow.pop %v2819
  %2821 = vmatprep.subr.mxu0 0.0
  %2822 = vmatpush1.msra.mxu0 0.0
  %2823 = vmatprep.subr.mxu0 0.0
  %2824 = vmatpush1.msra.mxu0 0.0
  %2825 = vmatprep.subr.mxu0 0.0
  %2826 = vmatpush1.msra.mxu0 0.0
  %2827 = vmatprep.subr.mxu0 0.0
  %2828 = vmatpush1.msra.mxu0 0.0
  %2829 = vmatprep.subr.mxu0 0.0
  %2830 = vmatpush1.msra.mxu0 0.0
  %2831 = vmatprep.subr.mxu0 0.0
  %2832 = vmatpush1.msra.mxu0 0.0
  %2833 = vmatprep.subr.mxu0 0.0
  %2834 = vmatpush1.msra.mxu0 0.0
  %2835 = vmatprep.subr.mxu0 0.0
  %2836 = vmatpush1.msra.mxu0 0.0
  %2837 = vmatprep.subr.mxu0 0.0
  %2838 = vmatpush1.msra.mxu0 0.0
  %2839 = vmatprep.subr.mxu0 0.0
  %2840 = vmatpush1.msra.mxu0 0.0
  %2841 = vmatprep.subr.mxu0 0.0
  %2842 = vmatpush1.msra.mxu0 0.0
  %2843 = vmatprep.subr.mxu0 0.0
  %2844 = vmatpush1.msra.mxu0 0.0
  %2845 = vmatprep.subr.mxu0 0.0
  %2846 = vmatpush1.msra.mxu0 0.0
  %2847 = vmatprep.subr.mxu0 0.0
  %2848 = vmatpush1.msra.mxu0 0.0
  %2849 = vmatprep.subr.mxu0 0.0
  %2850 = vmatpush1.msra.mxu0 0.0
  %2851 = vmatprep.subr.mxu0 0.0
  %2852 = vmatpush1.msra.mxu0 %v2820
  %2853 = vmatprep.subr.mxu0 0.0
  %2854 = vmatpush2.msra.mxu0 0.0
  %2855 = vmatprep.subr.mxu0 0.0
  %2856 = vmatpush2.msra.mxu0 0.0
  %2857 = vmatprep.subr.mxu0 0.0
  %2858 = vmatpush2.msra.mxu0 0.0
  %2859 = vmatprep.subr.mxu0 0.0
  %2860 = vmatpush2.msra.mxu0 0.0
  %2861 = vmatprep.subr.mxu0 0.0
  %2862 = vmatpush2.msra.mxu0 0.0
  %2863 = vmatprep.subr.mxu0 0.0
  %2864 = vmatpush2.msra.mxu0 0.0
  %2865 = vmatprep.subr.mxu0 0.0
  %2866 = vmatpush2.msra.mxu0 0.0
  %2867 = vmatprep.subr.mxu0 0.0
  %2868 = vmatpush2.msra.mxu0 0.0
  %2869 = vmatprep.subr.mxu0 0.0
  %2870 = vmatpush2.msra.mxu0 0.0
  %2871 = vmatprep.subr.mxu0 0.0
  %2872 = vmatpush2.msra.mxu0 0.0
  %2873 = vmatprep.subr.mxu0 0.0
  %2874 = vmatpush2.msra.mxu0 0.0
  %2875 = vmatprep.subr.mxu0 0.0
  %2876 = vmatpush2.msra.mxu0 0.0
  %2877 = vmatprep.subr.mxu0 0.0
  %2878 = vmatpush2.msra.mxu0 0.0
  %2879 = vmatprep.subr.mxu0 0.0
  %2880 = vmatpush2.msra.mxu0 0.0
  %2881 = vmatprep.subr.mxu0 0.0
  %2882 = vmatpush2.msra.mxu0 0.0
  %2883 = vmatprep.subr.mxu0 0.0
  %2884 = vmatpush2.msra.mxu0 0.0
  %2885 = vmatprep.mubr.f32.mxu0 0.0
  %2886 = vmatmul.mubr.f32.gmra.mxu0 %v2669
  %v2887 = vpop.f32.mrf.mxu0
  %v2888 = vadd.f32 0.0, %v2887
  %v2889 = vpop.f32.mrf.mxu0
  %2890 = vdwg.mxu0
  %2892 = vset.pattern.permute.xlu0 0
  %2893 = vperm.xlu0 %2892, %v2820
  %v2894 = vpop.permute.xlu0 %2893
  %v2896 = vmul.f32 %v2894, %v2400
  %2897 = vmatprep.subr.mxu0 0.0
  %2898 = vmatpush1.msra.mxu0 0.0
  %2899 = vmatprep.subr.mxu0 0.0
  %2900 = vmatpush1.msra.mxu0 0.0
  %2901 = vmatprep.subr.mxu0 0.0
  %2902 = vmatpush1.msra.mxu0 0.0
  %2903 = vmatprep.subr.mxu0 0.0
  %2904 = vmatpush1.msra.mxu0 0.0
  %2905 = vmatprep.subr.mxu0 0.0
  %2906 = vmatpush1.msra.mxu0 0.0
  %2907 = vmatprep.subr.mxu0 0.0
  %2908 = vmatpush1.msra.mxu0 0.0
  %2909 = vmatprep.subr.mxu0 0.0
  %2910 = vmatpush1.msra.mxu0 0.0
  %2911 = vmatprep.subr.mxu0 0.0
  %2912 = vmatpush1.msra.mxu0 0.0
  %2913 = vmatprep.subr.mxu0 0.0
  %2914 = vmatpush1.msra.mxu0 0.0
  %2915 = vmatprep.subr.mxu0 0.0
  %2916 = vmatpush1.msra.mxu0 0.0
  %2917 = vmatprep.subr.mxu0 0.0
  %2918 = vmatpush1.msra.mxu0 0.0
  %2919 = vmatprep.subr.mxu0 0.0
  %2920 = vmatpush1.msra.mxu0 0.0
  %2921 = vmatprep.subr.mxu0 0.0
  %2922 = vmatpush1.msra.mxu0 0.0
  %2923 = vmatprep.subr.mxu0 0.0
  %2924 = vmatpush1.msra.mxu0 0.0
  %2925 = vmatprep.subr.mxu0 0.0
  %2926 = vmatpush1.msra.mxu0 0.0
  %2927 = vmatprep.subr.mxu0 0.0
  %2928 = vmatpush1.msra.mxu0 %v2896
  %2929 = vmatprep.subr.mxu0 0.0
  %2930 = vmatpush2.msra.mxu0 0.0
  %2931 = vmatprep.subr.mxu0 0.0
  %2932 = vmatpush2.msra.mxu0 0.0
  %2933 = vmatprep.subr.mxu0 0.0
  %2934 = vmatpush2.msra.mxu0 0.0
  %2935 = vmatprep.subr.mxu0 0.0
  %2936 = vmatpush2.msra.mxu0 0.0
  %2937 = vmatprep.subr.mxu0 0.0
  %2938 = vmatpush2.msra.mxu0 0.0
  %2939 = vmatprep.subr.mxu0 0.0
  %2940 = vmatpush2.msra.mxu0 0.0
  %2941 = vmatprep.subr.mxu0 0.0
  %2942 = vmatpush2.msra.mxu0 0.0
  %2943 = vmatprep.subr.mxu0 0.0
  %2944 = vmatpush2.msra.mxu0 0.0
  %2945 = vmatprep.subr.mxu0 0.0
  %2946 = vmatpush2.msra.mxu0 0.0
  %2947 = vmatprep.subr.mxu0 0.0
  %2948 = vmatpush2.msra.mxu0 0.0
  %2949 = vmatprep.subr.mxu0 0.0
  %2950 = vmatpush2.msra.mxu0 0.0
  %2951 = vmatprep.subr.mxu0 0.0
  %2952 = vmatpush2.msra.mxu0 0.0
  %2953 = vmatprep.subr.mxu0 0.0
  %2954 = vmatpush2.msra.mxu0 0.0
  %2955 = vmatprep.subr.mxu0 0.0
  %2956 = vmatpush2.msra.mxu0 0.0
  %2957 = vmatprep.subr.mxu0 0.0
  %2958 = vmatpush2.msra.mxu0 0.0
  %2959 = vmatprep.subr.mxu0 0.0
  %2960 = vmatpush2.msra.mxu0 0.0
  %2961 = vmatprep.mubr.f32.mxu0 0.0
  %2962 = vmatmul.mubr.f32.gmra.mxu0 %v2669
  %v2963 = vpop.f32.mrf.mxu0
  %v2964 = vadd.f32 0.0, %v2963
  %v2965 = vpop.f32.mrf.mxu0
  %2966 = vdwg.mxu0
  %2968 = vset.pattern.permute.xlu0 0
  %2969 = vperm.xlu0 %2968, %v2888
  %v2970 = vpop.permute.xlu0 %2969
  %v2972 = vrcp.pop %v2970
  %v2973 = vmul.f32 %v2964, %v2972
  %v2974 = vmax.f32 %v2973, 0.0
  %2976 = vrot.lane.b32.xlu0 %v2974, 64
  %v2977 = vpop.permute.xlu0 %2976
  %v2979 = vsel %vm1178, %v2206, %v2977
  %v2980 = vld [vmem:[%s1 + $0x230] sm:$0xff]
  %v2981 = vld [vmem:[%s1 + $0x238] sm:$0xff]
  %v2982 = vld [vmem:[%s1 + $0x240] sm:$0xff]
  %v2983 = vld [vmem:[%s1 + $0x248] sm:$0xff]
  %v2984 = vld [vmem:[%s1 + $0x250] sm:$0xff]
  %v2985 = vld [vmem:[%s1 + $0x258] sm:$0xff]
  %v2986 = vld [vmem:[%s1 + $0x260] sm:$0xff]
  %v2987 = vld [vmem:[%s1 + $0x268] sm:$0xff]
  %v2988 = vld [vmem:[%s1 + $0x270] sm:$0xff]
  %v2989 = vld [vmem:[%s1 + $0x278] sm:$0xff]
  %v2990 = vld [vmem:[%s1 + $0x280] sm:$0xff]
  %v2991 = vld [vmem:[%s1 + $0x288] sm:$0xff]
  %v2992 = vld [vmem:[%s1 + $0x290] sm:$0xff]
  %v2993 = vld [vmem:[%s1 + $0x298] sm:$0xff]
  %v2994 = vld [vmem:[%s1 + $0x2a0] sm:$0xff]
  %v2995 = vld [vmem:[%s1 + $0x2a8] sm:$0xff]
  %v2996 = vld [vmem:[%s1 + $0x2d0] sm:$0x1]
  %v2997 = vlaneseq
  %v2998 = vshrl.u32 %v2997, 7
  %v2999 = vsub.s32 0, %v2998
  %v3000 = vrot.slane %v2996, %v2999
  %3001 = vmatprep.subr.mxu0 0.0
  %3002 = vmatpush1.msra.mxu0 %v2995
  %3003 = vmatprep.subr.mxu0 0.0
  %3004 = vmatpush1.msra.mxu0 %v2994
  %3005 = vmatprep.subr.mxu0 0.0
  %3006 = vmatpush1.msra.mxu0 %v2993
  %3007 = vmatprep.subr.mxu0 0.0
  %3008 = vmatpush1.msra.mxu0 %v2992
  %3009 = vmatprep.subr.mxu0 0.0
  %3010 = vmatpush1.msra.mxu0 %v2991
  %3011 = vmatprep.subr.mxu0 0.0
  %3012 = vmatpush1.msra.mxu0 %v2990
  %3013 = vmatprep.subr.mxu0 0.0
  %3014 = vmatpush1.msra.mxu0 %v2989
  %3015 = vmatprep.subr.mxu0 0.0
  %3016 = vmatpush1.msra.mxu0 %v2988
  %3017 = vmatprep.subr.mxu0 0.0
  %3018 = vmatpush1.msra.mxu0 %v2987
  %3019 = vmatprep.subr.mxu0 0.0
  %3020 = vmatpush1.msra.mxu0 %v2986
  %3021 = vmatprep.subr.mxu0 0.0
  %3022 = vmatpush1.msra.mxu0 %v2985
  %3023 = vmatprep.subr.mxu0 0.0
  %3024 = vmatpush1.msra.mxu0 %v2984
  %3025 = vmatprep.subr.mxu0 0.0
  %3026 = vmatpush1.msra.mxu0 %v2983
  %3027 = vmatprep.subr.mxu0 0.0
  %3028 = vmatpush1.msra.mxu0 %v2982
  %3029 = vmatprep.subr.mxu0 0.0
  %3030 = vmatpush1.msra.mxu0 %v2981
  %3031 = vmatprep.subr.mxu0 0.0
  %3032 = vmatpush1.msra.mxu0 %v2980
  %3033 = vmatprep.subr.mxu0 0.0
  %3034 = vmatpush2.msra.mxu0 0.0
  %3035 = vmatprep.subr.mxu0 0.0
  %3036 = vmatpush2.msra.mxu0 0.0
  %3037 = vmatprep.subr.mxu0 0.0
  %3038 = vmatpush2.msra.mxu0 0.0
  %3039 = vmatprep.subr.mxu0 0.0
  %3040 = vmatpush2.msra.mxu0 0.0
  %3041 = vmatprep.subr.mxu0 0.0
  %3042 = vmatpush2.msra.mxu0 0.0
  %3043 = vmatprep.subr.mxu0 0.0
  %3044 = vmatpush2.msra.mxu0 0.0
  %3045 = vmatprep.subr.mxu0 0.0
  %3046 = vmatpush2.msra.mxu0 0.0
  %3047 = vmatprep.subr.mxu0 0.0
  %3048 = vmatpush2.msra.mxu0 0.0
  %3049 = vmatprep.subr.mxu0 0.0
  %3050 = vmatpush2.msra.mxu0 0.0
  %3051 = vmatprep.subr.mxu0 0.0
  %3052 = vmatpush2.msra.mxu0 0.0
  %3053 = vmatprep.subr.mxu0 0.0
  %3054 = vmatpush2.msra.mxu0 0.0
  %3055 = vmatprep.subr.mxu0 0.0
  %3056 = vmatpush2.msra.mxu0 0.0
  %3057 = vmatprep.subr.mxu0 0.0
  %3058 = vmatpush2.msra.mxu0 0.0
  %3059 = vmatprep.subr.mxu0 0.0
  %3060 = vmatpush2.msra.mxu0 0.0
  %3061 = vmatprep.subr.mxu0 0.0
  %3062 = vmatpush2.msra.mxu0 0.0
  %3063 = vmatprep.subr.mxu0 0.0
  %3064 = vmatpush2.msra.mxu0 0.0
  %3065 = vmatprep.mubr.f32.mxu0 0.0
  %3066 = vmatmul.mubr.f32.gmra.mxu0 %v2979
  %v3067 = vpop.f32.mrf.mxu0
  %v3068 = vadd.f32 %v3000, %v3067
  %v3069 = vpop.f32.mrf.mxu0
  %3070 = vdwg.mxu0
  %v3071 = vld [vmem:[%s1 + $0x2b0] sm:$0xff]
  %v3072 = vld [vmem:[%s1 + $0x2b8] sm:$0xff]
  %v3073 = vld [vmem:[%s1 + $0x2c0] sm:$0xff]
  %v3074 = vld [vmem:[%s1 + $0x2c8] sm:$0xff]
  %v3075 = vld [vmem:[%s1 + $0x2d8] sm:$0x1]
  %v3076 = vld [vmem:[%s1 + $0x2e0] sm:$0xff]
  %v3077 = vld [vmem:[%s1 + $0x2e8] sm:$0xff]
  %v3078 = vld [vmem:[%s1 + $0x2f0] sm:$0xff]
  %v3079 = vld [vmem:[%s1 + $0x2f8] sm:$0xff]
  %v3080 = vld [vmem:[%s1 + $0x300] sm:$0x1]
  %v3081 = vld [vmem:[%s0 + $0x58] sm:$0x3]
  %v3082 = vlaneseq
  %v3083 = vshrl.u32 %v3082, 7
  %v3084 = vsub.s32 0, %v3083
  %v3085 = vrot.slane %v3080, %v3084
  %v3087 = vsel %vm131, %v3081, 0
  %3089 = vmatprep.subr.mxu0 0.0
  %3090 = vmatpush1.msra.mxu0 0.0
  %3091 = vmatprep.subr.mxu0 0.0
  %3092 = vmatpush1.msra.mxu0 0.0
  %3093 = vmatprep.subr.mxu0 0.0
  %3094 = vmatpush1.msra.mxu0 0.0
  %3095 = vmatprep.subr.mxu0 0.0
  %3096 = vmatpush1.msra.mxu0 0.0
  %3097 = vmatprep.subr.mxu0 0.0
  %3098 = vmatpush1.msra.mxu0 0.0
  %3099 = vmatprep.subr.mxu0 0.0
  %3100 = vmatpush1.msra.mxu0 0.0
  %3101 = vmatprep.subr.mxu0 0.0
  %3102 = vmatpush1.msra.mxu0 0.0
  %3103 = vmatprep.subr.mxu0 0.0
  %3104 = vmatpush1.msra.mxu0 0.0
  %3105 = vmatprep.subr.mxu0 0.0
  %3106 = vmatpush1.msra.mxu0 0.0
  %3107 = vmatprep.subr.mxu0 0.0
  %3108 = vmatpush1.msra.mxu0 0.0
  %3109 = vmatprep.subr.mxu0 0.0
  %3110 = vmatpush1.msra.mxu0 0.0
  %3111 = vmatprep.subr.mxu0 0.0
  %3112 = vmatpush1.msra.mxu0 0.0
  %3113 = vmatprep.subr.mxu0 0.0
  %3114 = vmatpush1.msra.mxu0 %v3079
  %3115 = vmatprep.subr.mxu0 0.0
  %3116 = vmatpush1.msra.mxu0 %v3078
  %3117 = vmatprep.subr.mxu0 0.0
  %3118 = vmatpush1.msra.mxu0 %v3077
  %3119 = vmatprep.subr.mxu0 0.0
  %3120 = vmatpush1.msra.mxu0 %v3076
  %3121 = vmatprep.subr.mxu0 0.0
  %3122 = vmatpush2.msra.mxu0 0.0
  %3123 = vmatprep.subr.mxu0 0.0
  %3124 = vmatpush2.msra.mxu0 0.0
  %3125 = vmatprep.subr.mxu0 0.0
  %3126 = vmatpush2.msra.mxu0 0.0
  %3127 = vmatprep.subr.mxu0 0.0
  %3128 = vmatpush2.msra.mxu0 0.0
  %3129 = vmatprep.subr.mxu0 0.0
  %3130 = vmatpush2.msra.mxu0 0.0
  %3131 = vmatprep.subr.mxu0 0.0
  %3132 = vmatpush2.msra.mxu0 0.0
  %3133 = vmatprep.subr.mxu0 0.0
  %3134 = vmatpush2.msra.mxu0 0.0
  %3135 = vmatprep.subr.mxu0 0.0
  %3136 = vmatpush2.msra.mxu0 0.0
  %3137 = vmatprep.subr.mxu0 0.0
  %3138 = vmatpush2.msra.mxu0 0.0
  %3139 = vmatprep.subr.mxu0 0.0
  %3140 = vmatpush2.msra.mxu0 0.0
  %3141 = vmatprep.subr.mxu0 0.0
  %3142 = vmatpush2.msra.mxu0 0.0
  %3143 = vmatprep.subr.mxu0 0.0
  %3144 = vmatpush2.msra.mxu0 0.0
  %3145 = vmatprep.subr.mxu0 0.0
  %3146 = vmatpush2.msra.mxu0 0.0
  %3147 = vmatprep.subr.mxu0 0.0
  %3148 = vmatpush2.msra.mxu0 0.0
  %3149 = vmatprep.subr.mxu0 0.0
  %3150 = vmatpush2.msra.mxu0 0.0
  %3151 = vmatprep.subr.mxu0 0.0
  %3152 = vmatpush2.msra.mxu0 0.0
  %3153 = vmatprep.mubr.f32.mxu0 0.0
  %3154 = vmatmul.mubr.f32.gmra.mxu0 %v3087
  %v3155 = vpop.f32.mrf.mxu0
  %v3156 = vadd.f32 %v3085, %v3155
  %v3157 = vpop.f32.mrf.mxu0
  %3158 = vdwg.mxu0
  %v3159 = vmax.f32 %v3156, 0.0
  %v3161 = vsel %vm131, %v3159, 0
  %3163 = vmatprep.subr.mxu0 0.0
  %3164 = vmatpush1.msra.mxu0 0.0
  %3165 = vmatprep.subr.mxu0 0.0
  %3166 = vmatpush1.msra.mxu0 0.0
  %3167 = vmatprep.subr.mxu0 0.0
  %3168 = vmatpush1.msra.mxu0 0.0
  %3169 = vmatprep.subr.mxu0 0.0
  %3170 = vmatpush1.msra.mxu0 0.0
  %3171 = vmatprep.subr.mxu0 0.0
  %3172 = vmatpush1.msra.mxu0 0.0
  %3173 = vmatprep.subr.mxu0 0.0
  %3174 = vmatpush1.msra.mxu0 0.0
  %3175 = vmatprep.subr.mxu0 0.0
  %3176 = vmatpush1.msra.mxu0 0.0
  %3177 = vmatprep.subr.mxu0 0.0
  %3178 = vmatpush1.msra.mxu0 0.0
  %3179 = vmatprep.subr.mxu0 0.0
  %3180 = vmatpush1.msra.mxu0 0.0
  %3181 = vmatprep.subr.mxu0 0.0
  %3182 = vmatpush1.msra.mxu0 0.0
  %3183 = vmatprep.subr.mxu0 0.0
  %3184 = vmatpush1.msra.mxu0 0.0
  %3185 = vmatprep.subr.mxu0 0.0
  %3186 = vmatpush1.msra.mxu0 0.0
  %3187 = vmatprep.subr.mxu0 0.0
  %3188 = vmatpush1.msra.mxu0 %v3074
  %3189 = vmatprep.subr.mxu0 0.0
  %3190 = vmatpush1.msra.mxu0 %v3073
  %3191 = vmatprep.subr.mxu0 0.0
  %3192 = vmatpush1.msra.mxu0 %v3072
  %3193 = vmatprep.subr.mxu0 0.0
  %3194 = vmatpush1.msra.mxu0 %v3071
  %3195 = vmatprep.subr.mxu0 0.0
  %3196 = vmatpush2.msra.mxu0 0.0
  %3197 = vmatprep.subr.mxu0 0.0
  %3198 = vmatpush2.msra.mxu0 0.0
  %3199 = vmatprep.subr.mxu0 0.0
  %3200 = vmatpush2.msra.mxu0 0.0
  %3201 = vmatprep.subr.mxu0 0.0
  %3202 = vmatpush2.msra.mxu0 0.0
  %3203 = vmatprep.subr.mxu0 0.0
  %3204 = vmatpush2.msra.mxu0 0.0
  %3205 = vmatprep.subr.mxu0 0.0
  %3206 = vmatpush2.msra.mxu0 0.0
  %3207 = vmatprep.subr.mxu0 0.0
  %3208 = vmatpush2.msra.mxu0 0.0
  %3209 = vmatprep.subr.mxu0 0.0
  %3210 = vmatpush2.msra.mxu0 0.0
  %3211 = vmatprep.subr.mxu0 0.0
  %3212 = vmatpush2.msra.mxu0 0.0
  %3213 = vmatprep.subr.mxu0 0.0
  %3214 = vmatpush2.msra.mxu0 0.0
  %3215 = vmatprep.subr.mxu0 0.0
  %3216 = vmatpush2.msra.mxu0 0.0
  %3217 = vmatprep.subr.mxu0 0.0
  %3218 = vmatpush2.msra.mxu0 0.0
  %3219 = vmatprep.subr.mxu0 0.0
  %3220 = vmatpush2.msra.mxu0 0.0
  %3221 = vmatprep.subr.mxu0 0.0
  %3222 = vmatpush2.msra.mxu0 0.0
  %3223 = vmatprep.subr.mxu0 0.0
  %3224 = vmatpush2.msra.mxu0 0.0
  %3225 = vmatprep.subr.mxu0 0.0
  %3226 = vmatpush2.msra.mxu0 0.0
  %3227 = vmatprep.mubr.f32.mxu0 0.0
  %3228 = vmatmul.mubr.f32.gmra.mxu0 %v3161
  %v3229 = vpop.f32.mrf.mxu0
  %v3230 = vadd.f32 0.0, %v3229
  %v3231 = vpop.f32.mrf.mxu0
  %3232 = vdwg.mxu0
  %v3233 = vadd.f32 %v3068, %v3230
  %v3234 = vxor.u32 %v3233, 2147483648
  %v3235 = vmul.f32 %v3234, 1.442695
  %v3236 = vpow.pop %v3235
  %v3237 = vadd.f32 %v3236, 1.0
  %v3238 = vrcp.pop %v3237
  %v3239 = vmul.f32 1.0, %v3238
  %v3240 = vlaneseq
  %v3241 = vshrl.u32 %v3240, 7
  %v3242 = vsub.s32 0, %v3241
  %v3243 = vrot.slane %v3075, %v3242
  %v3244 = vmul.f32 %v3239, %v3243
  %3246 = vrot.lane.b32.xlu0 %v3244, 64
  %v3247 = vpop.permute.xlu0 %3246
  %v3249 = vadd.f32 %v3233, %v3247
  %v3250 = vtanh.pop %v3249
  %v3251 = vsub.f32 1.0, %v3239
  %3253 = vrot.lane.b32.xlu0 %v3250, 96
  %v3254 = vpop.permute.xlu0 %3253
  %v3256 = vmul.f32 %v3251, %v3254
  %3258 = vrot.lane.b32.xlu0 %v3256, 96
  %v3259 = vpop.permute.xlu0 %3258
  %v3260 = vsel %vm131, %v3259, 0
  %3262 = vmatprep.subr.mxu0 0.0
  %3263 = vmatpush1.msra.mxu0 0.0
  %3264 = vmatprep.subr.mxu0 0.0
  %3265 = vmatpush1.msra.mxu0 0.0
  %3266 = vmatprep.subr.mxu0 0.0
  %3267 = vmatpush1.msra.mxu0 0.0
  %3268 = vmatprep.subr.mxu0 0.0
  %3269 = vmatpush1.msra.mxu0 0.0
  %3270 = vmatprep.subr.mxu0 0.0
  %3271 = vmatpush1.msra.mxu0 0.0
  %3272 = vmatprep.subr.mxu0 0.0
  %3273 = vmatpush1.msra.mxu0 0.0
  %3274 = vmatprep.subr.mxu0 0.0
  %3275 = vmatpush1.msra.mxu0 0.0
  %3276 = vmatprep.subr.mxu0 0.0
  %3277 = vmatpush1.msra.mxu0 0.0
  %3278 = vmatprep.subr.mxu0 0.0
  %3279 = vmatpush1.msra.mxu0 0.0
  %3280 = vmatprep.subr.mxu0 0.0
  %3281 = vmatpush1.msra.mxu0 0.0
  %3282 = vmatprep.subr.mxu0 0.0
  %3283 = vmatpush1.msra.mxu0 0.0
  %3284 = vmatprep.subr.mxu0 0.0
  %3285 = vmatpush1.msra.mxu0 0.0
  %3286 = vmatprep.subr.mxu0 0.0
  %3287 = vmatpush1.msra.mxu0 %v3079
  %3288 = vmatprep.subr.mxu0 0.0
  %3289 = vmatpush1.msra.mxu0 %v3078
  %3290 = vmatprep.subr.mxu0 0.0
  %3291 = vmatpush1.msra.mxu0 %v3077
  %3292 = vmatprep.subr.mxu0 0.0
  %3293 = vmatpush1.msra.mxu0 %v3076
  %3294 = vmatprep.subr.mxu0 0.0
  %3295 = vmatpush2.msra.mxu0 0.0
  %3296 = vmatprep.subr.mxu0 0.0
  %3297 = vmatpush2.msra.mxu0 0.0
  %3298 = vmatprep.subr.mxu0 0.0
  %3299 = vmatpush2.msra.mxu0 0.0
  %3300 = vmatprep.subr.mxu0 0.0
  %3301 = vmatpush2.msra.mxu0 0.0
  %3302 = vmatprep.subr.mxu0 0.0
  %3303 = vmatpush2.msra.mxu0 0.0
  %3304 = vmatprep.subr.mxu0 0.0
  %3305 = vmatpush2.msra.mxu0 0.0
  %3306 = vmatprep.subr.mxu0 0.0
  %3307 = vmatpush2.msra.mxu0 0.0
  %3308 = vmatprep.subr.mxu0 0.0
  %3309 = vmatpush2.msra.mxu0 0.0
  %3310 = vmatprep.subr.mxu0 0.0
  %3311 = vmatpush2.msra.mxu0 0.0
  %3312 = vmatprep.subr.mxu0 0.0
  %3313 = vmatpush2.msra.mxu0 0.0
  %3314 = vmatprep.subr.mxu0 0.0
  %3315 = vmatpush2.msra.mxu0 0.0
  %3316 = vmatprep.subr.mxu0 0.0
  %3317 = vmatpush2.msra.mxu0 0.0
  %3318 = vmatprep.subr.mxu0 0.0
  %3319 = vmatpush2.msra.mxu0 0.0
  %3320 = vmatprep.subr.mxu0 0.0
  %3321 = vmatpush2.msra.mxu0 0.0
  %3322 = vmatprep.subr.mxu0 0.0
  %3323 = vmatpush2.msra.mxu0 0.0
  %3324 = vmatprep.subr.mxu0 0.0
  %3325 = vmatpush2.msra.mxu0 0.0
  %3326 = vmatprep.mubr.f32.mxu0 0.0
  %3327 = vmatmul.mubr.f32.gmra.mxu0 %v3260
  %v3328 = vpop.f32.mrf.mxu0
  %v3329 = vadd.f32 %v3085, %v3328
  %v3330 = vpop.f32.mrf.mxu0
  %3331 = vdwg.mxu0
  %v3332 = vmax.f32 %v3329, 0.0
  %v3334 = vsel %vm131, %v3332, 0
  %3336 = vmatprep.subr.mxu0 0.0
  %3337 = vmatpush1.msra.mxu0 0.0
  %3338 = vmatprep.subr.mxu0 0.0
  %3339 = vmatpush1.msra.mxu0 0.0
  %3340 = vmatprep.subr.mxu0 0.0
  %3341 = vmatpush1.msra.mxu0 0.0
  %3342 = vmatprep.subr.mxu0 0.0
  %3343 = vmatpush1.msra.mxu0 0.0
  %3344 = vmatprep.subr.mxu0 0.0
  %3345 = vmatpush1.msra.mxu0 0.0
  %3346 = vmatprep.subr.mxu0 0.0
  %3347 = vmatpush1.msra.mxu0 0.0
  %3348 = vmatprep.subr.mxu0 0.0
  %3349 = vmatpush1.msra.mxu0 0.0
  %3350 = vmatprep.subr.mxu0 0.0
  %3351 = vmatpush1.msra.mxu0 0.0
  %3352 = vmatprep.subr.mxu0 0.0
  %3353 = vmatpush1.msra.mxu0 0.0
  %3354 = vmatprep.subr.mxu0 0.0
  %3355 = vmatpush1.msra.mxu0 0.0
  %3356 = vmatprep.subr.mxu0 0.0
  %3357 = vmatpush1.msra.mxu0 0.0
  %3358 = vmatprep.subr.mxu0 0.0
  %3359 = vmatpush1.msra.mxu0 0.0
  %3360 = vmatprep.subr.mxu0 0.0
  %3361 = vmatpush1.msra.mxu0 %v3074
  %3362 = vmatprep.subr.mxu0 0.0
  %3363 = vmatpush1.msra.mxu0 %v3073
  %3364 = vmatprep.subr.mxu0 0.0
  %3365 = vmatpush1.msra.mxu0 %v3072
  %3366 = vmatprep.subr.mxu0 0.0
  %3367 = vmatpush1.msra.mxu0 %v3071
  %3368 = vmatprep.subr.mxu0 0.0
  %3369 = vmatpush2.msra.mxu0 0.0
  %3370 = vmatprep.subr.mxu0 0.0
  %3371 = vmatpush2.msra.mxu0 0.0
  %3372 = vmatprep.subr.mxu0 0.0
  %3373 = vmatpush2.msra.mxu0 0.0
  %3374 = vmatprep.subr.mxu0 0.0
  %3375 = vmatpush2.msra.mxu0 0.0
  %3376 = vmatprep.subr.mxu0 0.0
  %3377 = vmatpush2.msra.mxu0 0.0
  %3378 = vmatprep.subr.mxu0 0.0
  %3379 = vmatpush2.msra.mxu0 0.0
  %3380 = vmatprep.subr.mxu0 0.0
  %3381 = vmatpush2.msra.mxu0 0.0
  %3382 = vmatprep.subr.mxu0 0.0
  %3383 = vmatpush2.msra.mxu0 0.0
  %3384 = vmatprep.subr.mxu0 0.0
  %3385 = vmatpush2.msra.mxu0 0.0
  %3386 = vmatprep.subr.mxu0 0.0
  %3387 = vmatpush2.msra.mxu0 0.0
  %3388 = vmatprep.subr.mxu0 0.0
  %3389 = vmatpush2.msra.mxu0 0.0
  %3390 = vmatprep.subr.mxu0 0.0
  %3391 = vmatpush2.msra.mxu0 0.0
  %3392 = vmatprep.subr.mxu0 0.0
  %3393 = vmatpush2.msra.mxu0 0.0
  %3394 = vmatprep.subr.mxu0 0.0
  %3395 = vmatpush2.msra.mxu0 0.0
  %3396 = vmatprep.subr.mxu0 0.0
  %3397 = vmatpush2.msra.mxu0 0.0
  %3398 = vmatprep.subr.mxu0 0.0
  %3399 = vmatpush2.msra.mxu0 0.0
  %3400 = vmatprep.mubr.f32.mxu0 0.0
  %3401 = vmatmul.mubr.f32.gmra.mxu0 %v3334
  %v3402 = vpop.f32.mrf.mxu0
  %v3403 = vadd.f32 0.0, %v3402
  %v3404 = vpop.f32.mrf.mxu0
  %3405 = vdwg.mxu0
  %v3406 = vadd.f32 %v3068, %v3403
  %v3407 = vxor.u32 %v3406, 2147483648
  %v3408 = vmul.f32 %v3407, 1.442695
  %v3409 = vpow.pop %v3408
  %v3410 = vadd.f32 %v3409, 1.0
  %v3411 = vrcp.pop %v3410
  %v3412 = vmul.f32 1.0, %v3411
  %v3413 = vmul.f32 %v3412, %v3243
  %3415 = vrot.lane.b32.xlu0 %v3413, 64
  %v3416 = vpop.permute.xlu0 %3415
  %v3418 = vadd.f32 %v3406, %v3416
  %v3419 = vtanh.pop %v3418
  %v3420 = vsub.f32 1.0, %v3412
  %3422 = vrot.lane.b32.xlu0 %v3419, 96
  %v3423 = vpop.permute.xlu0 %3422
  %v3425 = vmul.f32 %v3420, %v3423
  %v3426 = vld [vmem:[%s1 + $0x308] sm:$0xff]
  %v3427 = vld [vmem:[%s1 + $0x310] sm:$0xff]
  %v3428 = vld [vmem:[%s1 + $0x318] sm:$0xff]
  %v3429 = vld [vmem:[%s1 + $0x320] sm:$0xff]
  %v3430 = vld [vmem:[%s1 + $0x328] sm:$0x1]
  %v3431 = vlaneseq
  %v3432 = vshrl.u32 %v3431, 7
  %v3433 = vsub.s32 0, %v3432
  %v3434 = vrot.slane %v3430, %v3433
  %3436 = vrot.lane.b32.xlu0 %v3425, 96
  %v3437 = vpop.permute.xlu0 %3436
  %v3438 = vsel %vm131, %v3437, 0
  %3440 = vmatprep.subr.mxu0 0.0
  %3441 = vmatpush1.msra.mxu0 0.0
  %3442 = vmatprep.subr.mxu0 0.0
  %3443 = vmatpush1.msra.mxu0 0.0
  %3444 = vmatprep.subr.mxu0 0.0
  %3445 = vmatpush1.msra.mxu0 0.0
  %3446 = vmatprep.subr.mxu0 0.0
  %3447 = vmatpush1.msra.mxu0 0.0
  %3448 = vmatprep.subr.mxu0 0.0
  %3449 = vmatpush1.msra.mxu0 0.0
  %3450 = vmatprep.subr.mxu0 0.0
  %3451 = vmatpush1.msra.mxu0 0.0
  %3452 = vmatprep.subr.mxu0 0.0
  %3453 = vmatpush1.msra.mxu0 0.0
  %3454 = vmatprep.subr.mxu0 0.0
  %3455 = vmatpush1.msra.mxu0 0.0
  %3456 = vmatprep.subr.mxu0 0.0
  %3457 = vmatpush1.msra.mxu0 0.0
  %3458 = vmatprep.subr.mxu0 0.0
  %3459 = vmatpush1.msra.mxu0 0.0
  %3460 = vmatprep.subr.mxu0 0.0
  %3461 = vmatpush1.msra.mxu0 0.0
  %3462 = vmatprep.subr.mxu0 0.0
  %3463 = vmatpush1.msra.mxu0 0.0
  %3464 = vmatprep.subr.mxu0 0.0
  %3465 = vmatpush1.msra.mxu0 %v3429
  %3466 = vmatprep.subr.mxu0 0.0
  %3467 = vmatpush1.msra.mxu0 %v3428
  %3468 = vmatprep.subr.mxu0 0.0
  %3469 = vmatpush1.msra.mxu0 %v3427
  %3470 = vmatprep.subr.mxu0 0.0
  %3471 = vmatpush1.msra.mxu0 %v3426
  %3472 = vmatprep.subr.mxu0 0.0
  %3473 = vmatpush2.msra.mxu0 0.0
  %3474 = vmatprep.subr.mxu0 0.0
  %3475 = vmatpush2.msra.mxu0 0.0
  %3476 = vmatprep.subr.mxu0 0.0
  %3477 = vmatpush2.msra.mxu0 0.0
  %3478 = vmatprep.subr.mxu0 0.0
  %3479 = vmatpush2.msra.mxu0 0.0
  %3480 = vmatprep.subr.mxu0 0.0
  %3481 = vmatpush2.msra.mxu0 0.0
  %3482 = vmatprep.subr.mxu0 0.0
  %3483 = vmatpush2.msra.mxu0 0.0
  %3484 = vmatprep.subr.mxu0 0.0
  %3485 = vmatpush2.msra.mxu0 0.0
  %3486 = vmatprep.subr.mxu0 0.0
  %3487 = vmatpush2.msra.mxu0 0.0
  %3488 = vmatprep.subr.mxu0 0.0
  %3489 = vmatpush2.msra.mxu0 0.0
  %3490 = vmatprep.subr.mxu0 0.0
  %3491 = vmatpush2.msra.mxu0 0.0
  %3492 = vmatprep.subr.mxu0 0.0
  %3493 = vmatpush2.msra.mxu0 0.0
  %3494 = vmatprep.subr.mxu0 0.0
  %3495 = vmatpush2.msra.mxu0 0.0
  %3496 = vmatprep.subr.mxu0 0.0
  %3497 = vmatpush2.msra.mxu0 0.0
  %3498 = vmatprep.subr.mxu0 0.0
  %3499 = vmatpush2.msra.mxu0 0.0
  %3500 = vmatprep.subr.mxu0 0.0
  %3501 = vmatpush2.msra.mxu0 0.0
  %3502 = vmatprep.subr.mxu0 0.0
  %3503 = vmatpush2.msra.mxu0 0.0
  %3504 = vmatprep.mubr.f32.mxu0 0.0
  %3505 = vmatmul.mubr.f32.gmra.mxu0 %v3438
  %v3506 = vpop.f32.mrf.mxu0
  %v3507 = vadd.f32 %v3434, %v3506
  %v3508 = vpop.f32.mrf.mxu0
  %3509 = vdwg.mxu0
  %vm3510 = vcmask 1024
  %3511 = vst.msk [vmem:[%s3] sm:$0x3] %vm3510, %v3507
  // Predicated region
  $region14: #{mvgfrnn_forward.1} parent=0 // pred_check
    _
  $region15: #{mvgfrnn_forward.1} parent=0 // pred_check_branch
    %3513 = sbr.rel (0) target = $region17
  $region16: #{mvgfrnn_forward.1} parent=0 // pred_region
    _
  $region17: #{mvgfrnn_forward.1} parent=0 // pred_fallthru
    _
  // Predicated region
  $region18: #{mvgfrnn_forward.1} parent=0 // pred_check
    _
  $region19: #{mvgfrnn_forward.1} parent=0 // pred_check_branch
    %3515 = sbr.rel (0) target = $region21
  $region20: #{mvgfrnn_forward.1} parent=0 // pred_region
    _
  $region21: #{mvgfrnn_forward.1} parent=0 // pred_fallthru
    _

</llo_original>
